<compile_context>
chip_gen: v7x
topology: tpu7x:2x2x1
jax: 0.10.0
libtpu: 0.0.40
codegen_flags: <defaults>
</compile_context>

<pallas_src>
import jax
import jax.numpy as jnp
from jax import lax
from jax.experimental import pallas as pl
from jax.experimental.pallas import tpu as pltpu

HIDDEN_SIZE = 30
INPUT_SIZE = 36
SEQ_LEN = 20
OUTPUT_SIZE = 6

GP = 128        # per-gate lane-padded width (hidden 30 -> 128)
IPAD = 128      # padded input feature dim  (36 -> 128)
OPAD = 128      # padded head output dim    (6 -> 128)
NGATES = 4      # fused gate order: i | f | o | g


def lstm_kernel(x_ref,       # (T, Bp, IPAD)  time-major, zero-padded input
                w_ih_ref,    # (IPAD, 4*GP)   fused input->gates (transposed)
                w_hh_ref,    # (GP, 4*GP)     fused hidden->gates (transposed)
                b_ref,       # (1, 4*GP)      fused b_ih + b_hh
                wl_ref,      # (GP, OPAD)     head weight (transposed, padded)
                bl_ref,      # (1, OPAD)      head bias (padded)
                y_ref,       # (Bp, OPAD)     output
                xproj_scr):  # (T, Bp, 4*GP)  VMEM scratch for hoisted projection
    T, Bp, Ip = x_ref.shape
    G4 = NGATES * GP

    # --- Hoisted input projection (one batched matmul, bias folded in) ---
    xp = jnp.dot(x_ref[...].reshape(T * Bp, Ip), w_ih_ref[...],
                 preferred_element_type=jnp.float32) + b_ref[...]
    xproj_scr[...] = xp.reshape(T, Bp, G4)

    # --- Serial recurrence: one recurrent matmul + 2 transcendental pushes/step ---
    def step(t, carry):
        h, c = carry
        gates = xproj_scr[t] + jnp.dot(h, w_hh_ref[...],
                                       preferred_element_type=jnp.float32)
        ifo = jax.nn.sigmoid(gates[:, :3 * GP])    # i|f|o in one 384-lane block
        g_t = jnp.tanh(gates[:, 3 * GP:])          # g in the last 128 lanes
        i_t = ifo[:, 0 * GP:1 * GP]
        f_t = ifo[:, 1 * GP:2 * GP]
        o_t = ifo[:, 2 * GP:3 * GP]
        c_new = f_t * c + i_t * g_t
        h_new = o_t * jnp.tanh(c_new)
        return (h_new, c_new)

    h0 = jnp.zeros((Bp, GP), jnp.float32)
    c0 = jnp.zeros((Bp, GP), jnp.float32)
    h_fin, _ = lax.fori_loop(0, T, step, (h0, c0), unroll=True)

    # --- y = sigmoid(Linear(h_T)), lane-dense padded output ---
    y_ref[...] = jax.nn.sigmoid(
        jnp.dot(h_fin, wl_ref[...], preferred_element_type=jnp.float32)
        + bl_ref[...])


def pack_params(params):
    """Build fused, lane-padded weights (gate order i|f|o|g) from per-gate params."""
    (wii, wif, wig, wio, whi, whf, whg, who, bi, bf, bg, bo, wl, bl) = params
    H, O = HIDDEN_SIZE, OUTPUT_SIZE

    gate_ih = (wii, wif, wio, wig)   # i | f | o | g
    gate_hh = (whi, whf, who, whg)
    gate_b = (bi, bf, bo, bg)

    w_ih_f = jnp.zeros((IPAD, NGATES * GP), jnp.float32)
    w_hh_f = jnp.zeros((GP, NGATES * GP), jnp.float32)
    b_f = jnp.zeros((1, NGATES * GP), jnp.float32)
    for gi in range(NGATES):
        lo = gi * GP
        w_ih_f = w_ih_f.at[:INPUT_SIZE, lo:lo + H].set(gate_ih[gi])
        w_hh_f = w_hh_f.at[:H, lo:lo + H].set(gate_hh[gi])
        b_f = b_f.at[:, lo:lo + H].set(gate_b[gi])

    wl_p = jnp.zeros((GP, OPAD), jnp.float32).at[:H, :O].set(wl)
    bl_p = jnp.zeros((1, OPAD), jnp.float32).at[:, :O].set(bl)
    return (w_ih_f, w_hh_f, b_f, wl_p, bl_p)


def my_lstm_forward(x, params):
    """x: (B, T, I) float32, batch-first like the PyTorch module."""
    B, T, I = x.shape
    Bp = ((B + 7) // 8) * 8                               # sublane-align batch
    packed = pack_params(params)

    x_tm = jnp.transpose(x, (1, 0, 2))                    # (T, B, I) time-major
    x_p = jnp.zeros((T, Bp, IPAD), jnp.float32).at[:, :B, :I].set(x_tm)

    vmem = pl.BlockSpec(memory_space=pltpu.MemorySpace.VMEM)
    y_pad = pl.pallas_call(
        lstm_kernel,
        out_shape=jax.ShapeDtypeStruct((Bp, OPAD), jnp.float32),
        in_specs=[vmem] * (1 + len(packed)),
        out_specs=vmem,
        scratch_shapes=[pltpu.VMEM((T, Bp, NGATES * GP), jnp.float32)],
    )(x_p, *packed)
    return y_pad[:B, :OUTPUT_SIZE]


def init_params(key):
    """Deterministic init mimicking nn.LSTM / nn.Linear uniform(-1/sqrt(H), 1/sqrt(H))."""
    k = 1.0 / jnp.sqrt(jnp.float32(HIDDEN_SIZE))
    keys = jax.random.split(key, 18)

    def u(kk, shape):
        return jax.random.uniform(kk, shape, jnp.float32, -k, k)

    # input-to-hidden gate weights, stored transposed: (I, H)
    w_ih = [u(keys[i], (INPUT_SIZE, HIDDEN_SIZE)) for i in range(4)]
    # hidden-to-hidden gate weights, stored transposed: (H, H)
    w_hh = [u(keys[4 + i], (HIDDEN_SIZE, HIDDEN_SIZE)) for i in range(4)]
    # biases: b_ih + b_hh fused per gate, kept 2D (1, H)
    b = [u(keys[8 + i], (1, HIDDEN_SIZE)) + u(keys[12 + i], (1, HIDDEN_SIZE))
         for i in range(4)]
    # linear head: (H, O) transposed weight, (1, O) bias
    wl = u(keys[16], (HIDDEN_SIZE, OUTPUT_SIZE))
    bl = u(keys[17], (1, OUTPUT_SIZE))

    return tuple(w_ih) + tuple(w_hh) + tuple(b) + (wl, bl)


def reference_forward(x, params):
    """Pure-JAX reference matching the PyTorch forward."""
    (wii, wif, wig, wio, whi, whf, whg, who, bi, bf, bg, bo, wl, bl) = params
    B = x.shape[0]
    h = jnp.zeros((B, HIDDEN_SIZE), jnp.float32)
    c = jnp.zeros((B, HIDDEN_SIZE), jnp.float32)
    for t in range(SEQ_LEN):
        x_t = x[:, t, :]
        i_t = jax.nn.sigmoid(x_t @ wii + h @ whi + bi)
        f_t = jax.nn.sigmoid(x_t @ wif + h @ whf + bf)
        g_t = jnp.tanh(x_t @ wig + h @ whg + bg)
        o_t = jax.nn.sigmoid(x_t @ wio + h @ who + bo)
        c = f_t * c + i_t * g_t
        h = o_t * jnp.tanh(c)
    return jax.nn.sigmoid(h @ wl + bl)


if __name__ == "__main__":
    key = jax.random.PRNGKey(0)
    pkey, xkey = jax.random.split(key)
    params = init_params(pkey)

    batch = 2
    x = jax.random.normal(xkey, (batch, SEQ_LEN, INPUT_SIZE), jnp.float32)

    y = my_lstm_forward(x, params)
    y = jax.block_until_ready(y)

    y_ref = reference_forward(x, params)
    assert y.shape == (batch, OUTPUT_SIZE)
    assert jnp.allclose(y, y_ref, rtol=1e-4, atol=1e-4), (y, y_ref)

    print("KERNEL_OK")
</pallas_src>

<mosaic_0001>
module attributes {stable_mosaic.version = 11 : i64} {
  func.func @lstm_kernel(%arg0: memref<20x8x128xf32, #tpu.memory_space<vmem>>, %arg1: memref<128x512xf32, #tpu.memory_space<vmem>>, %arg2: memref<128x512xf32, #tpu.memory_space<vmem>>, %arg3: memref<1x512xf32, #tpu.memory_space<vmem>>, %arg4: memref<128x128xf32, #tpu.memory_space<vmem>>, %arg5: memref<1x128xf32, #tpu.memory_space<vmem>>, %arg6: memref<8x128xf32, #tpu.memory_space<vmem>>, %arg7: memref<20x8x512xf32, #tpu.memory_space<vmem>>) attributes {dimension_semantics = [], scalar_prefetch = 0 : i64, scratch_operands = 1 : i64, tpu.core_type = #tpu.core_type<tc>} {
    %c0 = arith.constant 0 : index
    %c0_0 = arith.constant 0 : index
    %c0_1 = arith.constant 0 : index
    %0 = vector.load %arg0[%c0, %c0_0, %c0_1] : memref<20x8x128xf32, #tpu.memory_space<vmem>>, vector<20x8x128xf32>
    %1 = vector.shape_cast %0 : vector<20x8x128xf32> to vector<160x128xf32>
    %c0_2 = arith.constant 0 : index
    %c0_3 = arith.constant 0 : index
    %2 = vector.load %arg1[%c0_2, %c0_3] : memref<128x512xf32, #tpu.memory_space<vmem>>, vector<128x512xf32>
    %cst = arith.constant dense<0.000000e+00> : vector<160x512xf32>
    %3 = tpu.matmul %1, %2, %cst {dimension_numbers = #tpu.dot_dimension_numbers<[1], [0], [0], [1], [0, 0, 1, 1], [], []>} : vector<160x128xf32>, vector<128x512xf32>, vector<160x512xf32> -> vector<160x512xf32>
    %c0_4 = arith.constant 0 : index
    %c0_5 = arith.constant 0 : index
    %4 = vector.load %arg3[%c0_4, %c0_5] : memref<1x512xf32, #tpu.memory_space<vmem>>, vector<1x512xf32>
    %5 = vector.broadcast %4 : vector<1x512xf32> to vector<160x512xf32>
    %6 = arith.addf %3, %5 : vector<160x512xf32>
    %7 = vector.shape_cast %6 : vector<160x512xf32> to vector<20x8x512xf32>
    %c0_6 = arith.constant 0 : index
    %c0_7 = arith.constant 0 : index
    %c0_8 = arith.constant 0 : index
    %8 = vector.load %arg7[%c0_6, %c0_7, %c0_8] : memref<20x8x512xf32, #tpu.memory_space<vmem>>, vector<20x8x512xf32>
    tpu.vector_store %arg7[%c0_6, %c0_7, %c0_8], %7 {strides = array<i32>} : memref<20x8x512xf32, #tpu.memory_space<vmem>>, vector<20x8x512xf32>,
    %cst_9 = arith.constant 0.000000e+00 : f32
    %9 = vector.broadcast %cst_9 : f32 to vector<8x128xf32>
    %cst_10 = arith.constant 0.000000e+00 : f32
    %10 = vector.broadcast %cst_10 : f32 to vector<8x128xf32>
    %c0_i32 = arith.constant 0 : i32
    %11 = arith.index_cast %c0_i32 : i32 to index
    %c0_11 = arith.constant 0 : index
    %c0_12 = arith.constant 0 : index
    %12 = vector.load %arg7[%11, %c0_11, %c0_12] : memref<20x8x512xf32, #tpu.memory_space<vmem>>, vector<1x8x512xf32>
    %13 = vector.shape_cast %12 : vector<1x8x512xf32> to vector<8x512xf32>
    %c0_13 = arith.constant 0 : index
    %c0_14 = arith.constant 0 : index
    %14 = vector.load %arg2[%c0_13, %c0_14] : memref<128x512xf32, #tpu.memory_space<vmem>>, vector<128x512xf32>
    %cst_15 = arith.constant dense<0.000000e+00> : vector<8x512xf32>
    %15 = tpu.matmul %9, %14, %cst_15 {dimension_numbers = #tpu.dot_dimension_numbers<[1], [0], [0], [1], [0, 0, 1, 1], [], []>} : vector<8x128xf32>, vector<128x512xf32>, vector<8x512xf32> -> vector<8x512xf32>
    %16 = arith.addf %13, %15 : vector<8x512xf32>
    %17 = vector.extract_strided_slice %16 {offsets = [0, 0], sizes = [8, 384], strides = [1, 1]} : vector<8x512xf32> to vector<8x384xf32>
    %18 = arith.negf %17 : vector<8x384xf32>
    %19 = math.exp %18 : vector<8x384xf32>
    %cst_16 = arith.constant 1.000000e+00 : f32
    %20 = vector.broadcast %cst_16 : f32 to vector<8x384xf32>
    %21 = arith.addf %20, %19 : vector<8x384xf32>
    %22 = arith.divf %20, %21 : vector<8x384xf32>
    %23 = vector.extract_strided_slice %16 {offsets = [0, 384], sizes = [8, 128], strides = [1, 1]} : vector<8x512xf32> to vector<8x128xf32>
    %24 = math.tanh %23 : vector<8x128xf32>
    %25 = vector.extract_strided_slice %22 {offsets = [0, 0], sizes = [8, 128], strides = [1, 1]} : vector<8x384xf32> to vector<8x128xf32>
    %26 = vector.extract_strided_slice %22 {offsets = [0, 128], sizes = [8, 128], strides = [1, 1]} : vector<8x384xf32> to vector<8x128xf32>
    %27 = vector.extract_strided_slice %22 {offsets = [0, 256], sizes = [8, 128], strides = [1, 1]} : vector<8x384xf32> to vector<8x128xf32>
    %28 = arith.mulf %26, %10 : vector<8x128xf32>
    %29 = arith.mulf %25, %24 : vector<8x128xf32>
    %30 = arith.addf %28, %29 : vector<8x128xf32>
    %31 = math.tanh %30 : vector<8x128xf32>
    %32 = arith.mulf %27, %31 : vector<8x128xf32>
    %c1_i32 = arith.constant 1 : i32
    %33 = arith.index_cast %c1_i32 : i32 to index
    %c0_17 = arith.constant 0 : index
    %c0_18 = arith.constant 0 : index
    %34 = vector.load %arg7[%33, %c0_17, %c0_18] : memref<20x8x512xf32, #tpu.memory_space<vmem>>, vector<1x8x512xf32>
    %35 = vector.shape_cast %34 : vector<1x8x512xf32> to vector<8x512xf32>
    %c0_19 = arith.constant 0 : index
    %c0_20 = arith.constant 0 : index
    %36 = vector.load %arg2[%c0_19, %c0_20] : memref<128x512xf32, #tpu.memory_space<vmem>>, vector<128x512xf32>
    %cst_21 = arith.constant dense<0.000000e+00> : vector<8x512xf32>
    %37 = tpu.matmul %32, %36, %cst_21 {dimension_numbers = #tpu.dot_dimension_numbers<[1], [0], [0], [1], [0, 0, 1, 1], [], []>} : vector<8x128xf32>, vector<128x512xf32>, vector<8x512xf32> -> vector<8x512xf32>
    %38 = arith.addf %35, %37 : vector<8x512xf32>
    %39 = vector.extract_strided_slice %38 {offsets = [0, 0], sizes = [8, 384], strides = [1, 1]} : vector<8x512xf32> to vector<8x384xf32>
    %40 = arith.negf %39 : vector<8x384xf32>
    %41 = math.exp %40 : vector<8x384xf32>
    %cst_22 = arith.constant 1.000000e+00 : f32
    %42 = vector.broadcast %cst_22 : f32 to vector<8x384xf32>
    %43 = arith.addf %42, %41 : vector<8x384xf32>
    %44 = arith.divf %42, %43 : vector<8x384xf32>
    %45 = vector.extract_strided_slice %38 {offsets = [0, 384], sizes = [8, 128], strides = [1, 1]} : vector<8x512xf32> to vector<8x128xf32>
    %46 = math.tanh %45 : vector<8x128xf32>
    %47 = vector.extract_strided_slice %44 {offsets = [0, 0], sizes = [8, 128], strides = [1, 1]} : vector<8x384xf32> to vector<8x128xf32>
    %48 = vector.extract_strided_slice %44 {offsets = [0, 128], sizes = [8, 128], strides = [1, 1]} : vector<8x384xf32> to vector<8x128xf32>
    %49 = vector.extract_strided_slice %44 {offsets = [0, 256], sizes = [8, 128], strides = [1, 1]} : vector<8x384xf32> to vector<8x128xf32>
    %50 = arith.mulf %48, %30 : vector<8x128xf32>
    %51 = arith.mulf %47, %46 : vector<8x128xf32>
    %52 = arith.addf %50, %51 : vector<8x128xf32>
    %53 = math.tanh %52 : vector<8x128xf32>
    %54 = arith.mulf %49, %53 : vector<8x128xf32>
    %c2_i32 = arith.constant 2 : i32
    %55 = arith.index_cast %c2_i32 : i32 to index
    %c0_23 = arith.constant 0 : index
    %c0_24 = arith.constant 0 : index
    %56 = vector.load %arg7[%55, %c0_23, %c0_24] : memref<20x8x512xf32, #tpu.memory_space<vmem>>, vector<1x8x512xf32>
    %57 = vector.shape_cast %56 : vector<1x8x512xf32> to vector<8x512xf32>
    %c0_25 = arith.constant 0 : index
    %c0_26 = arith.constant 0 : index
    %58 = vector.load %arg2[%c0_25, %c0_26] : memref<128x512xf32, #tpu.memory_space<vmem>>, vector<128x512xf32>
    %cst_27 = arith.constant dense<0.000000e+00> : vector<8x512xf32>
    %59 = tpu.matmul %54, %58, %cst_27 {dimension_numbers = #tpu.dot_dimension_numbers<[1], [0], [0], [1], [0, 0, 1, 1], [], []>} : vector<8x128xf32>, vector<128x512xf32>, vector<8x512xf32> -> vector<8x512xf32>
    %60 = arith.addf %57, %59 : vector<8x512xf32>
    %61 = vector.extract_strided_slice %60 {offsets = [0, 0], sizes = [8, 384], strides = [1, 1]} : vector<8x512xf32> to vector<8x384xf32>
    %62 = arith.negf %61 : vector<8x384xf32>
    %63 = math.exp %62 : vector<8x384xf32>
    %cst_28 = arith.constant 1.000000e+00 : f32
    %64 = vector.broadcast %cst_28 : f32 to vector<8x384xf32>
    %65 = arith.addf %64, %63 : vector<8x384xf32>
    %66 = arith.divf %64, %65 : vector<8x384xf32>
    %67 = vector.extract_strided_slice %60 {offsets = [0, 384], sizes = [8, 128], strides = [1, 1]} : vector<8x512xf32> to vector<8x128xf32>
    %68 = math.tanh %67 : vector<8x128xf32>
    %69 = vector.extract_strided_slice %66 {offsets = [0, 0], sizes = [8, 128], strides = [1, 1]} : vector<8x384xf32> to vector<8x128xf32>
    %70 = vector.extract_strided_slice %66 {offsets = [0, 128], sizes = [8, 128], strides = [1, 1]} : vector<8x384xf32> to vector<8x128xf32>
    %71 = vector.extract_strided_slice %66 {offsets = [0, 256], sizes = [8, 128], strides = [1, 1]} : vector<8x384xf32> to vector<8x128xf32>
    %72 = arith.mulf %70, %52 : vector<8x128xf32>
    %73 = arith.mulf %69, %68 : vector<8x128xf32>
    %74 = arith.addf %72, %73 : vector<8x128xf32>
    %75 = math.tanh %74 : vector<8x128xf32>
    %76 = arith.mulf %71, %75 : vector<8x128xf32>
    %c3_i32 = arith.constant 3 : i32
    %77 = arith.index_cast %c3_i32 : i32 to index
    %c0_29 = arith.constant 0 : index
    %c0_30 = arith.constant 0 : index
    %78 = vector.load %arg7[%77, %c0_29, %c0_30] : memref<20x8x512xf32, #tpu.memory_space<vmem>>, vector<1x8x512xf32>
    %79 = vector.shape_cast %78 : vector<1x8x512xf32> to vector<8x512xf32>
    %c0_31 = arith.constant 0 : index
    %c0_32 = arith.constant 0 : index
    %80 = vector.load %arg2[%c0_31, %c0_32] : memref<128x512xf32, #tpu.memory_space<vmem>>, vector<128x512xf32>
    %cst_33 = arith.constant dense<0.000000e+00> : vector<8x512xf32>
    %81 = tpu.matmul %76, %80, %cst_33 {dimension_numbers = #tpu.dot_dimension_numbers<[1], [0], [0], [1], [0, 0, 1, 1], [], []>} : vector<8x128xf32>, vector<128x512xf32>, vector<8x512xf32> -> vector<8x512xf32>
    %82 = arith.addf %79, %81 : vector<8x512xf32>
    %83 = vector.extract_strided_slice %82 {offsets = [0, 0], sizes = [8, 384], strides = [1, 1]} : vector<8x512xf32> to vector<8x384xf32>
    %84 = arith.negf %83 : vector<8x384xf32>
    %85 = math.exp %84 : vector<8x384xf32>
    %cst_34 = arith.constant 1.000000e+00 : f32
    %86 = vector.broadcast %cst_34 : f32 to vector<8x384xf32>
    %87 = arith.addf %86, %85 : vector<8x384xf32>
    %88 = arith.divf %86, %87 : vector<8x384xf32>
    %89 = vector.extract_strided_slice %82 {offsets = [0, 384], sizes = [8, 128], strides = [1, 1]} : vector<8x512xf32> to vector<8x128xf32>
    %90 = math.tanh %89 : vector<8x128xf32>
    %91 = vector.extract_strided_slice %88 {offsets = [0, 0], sizes = [8, 128], strides = [1, 1]} : vector<8x384xf32> to vector<8x128xf32>
    %92 = vector.extract_strided_slice %88 {offsets = [0, 128], sizes = [8, 128], strides = [1, 1]} : vector<8x384xf32> to vector<8x128xf32>
    %93 = vector.extract_strided_slice %88 {offsets = [0, 256], sizes = [8, 128], strides = [1, 1]} : vector<8x384xf32> to vector<8x128xf32>
    %94 = arith.mulf %92, %74 : vector<8x128xf32>
    %95 = arith.mulf %91, %90 : vector<8x128xf32>
    %96 = arith.addf %94, %95 : vector<8x128xf32>
    %97 = math.tanh %96 : vector<8x128xf32>
    %98 = arith.mulf %93, %97 : vector<8x128xf32>
    %c4_i32 = arith.constant 4 : i32
    %99 = arith.index_cast %c4_i32 : i32 to index
    %c0_35 = arith.constant 0 : index
    %c0_36 = arith.constant 0 : index
    %100 = vector.load %arg7[%99, %c0_35, %c0_36] : memref<20x8x512xf32, #tpu.memory_space<vmem>>, vector<1x8x512xf32>
    %101 = vector.shape_cast %100 : vector<1x8x512xf32> to vector<8x512xf32>
    %c0_37 = arith.constant 0 : index
    %c0_38 = arith.constant 0 : index
    %102 = vector.load %arg2[%c0_37, %c0_38] : memref<128x512xf32, #tpu.memory_space<vmem>>, vector<128x512xf32>
    %cst_39 = arith.constant dense<0.000000e+00> : vector<8x512xf32>
    %103 = tpu.matmul %98, %102, %cst_39 {dimension_numbers = #tpu.dot_dimension_numbers<[1], [0], [0], [1], [0, 0, 1, 1], [], []>} : vector<8x128xf32>, vector<128x512xf32>, vector<8x512xf32> -> vector<8x512xf32>
    %104 = arith.addf %101, %103 : vector<8x512xf32>
    %105 = vector.extract_strided_slice %104 {offsets = [0, 0], sizes = [8, 384], strides = [1, 1]} : vector<8x512xf32> to vector<8x384xf32>
    %106 = arith.negf %105 : vector<8x384xf32>
    %107 = math.exp %106 : vector<8x384xf32>
    %cst_40 = arith.constant 1.000000e+00 : f32
    %108 = vector.broadcast %cst_40 : f32 to vector<8x384xf32>
    %109 = arith.addf %108, %107 : vector<8x384xf32>
    %110 = arith.divf %108, %109 : vector<8x384xf32>
    %111 = vector.extract_strided_slice %104 {offsets = [0, 384], sizes = [8, 128], strides = [1, 1]} : vector<8x512xf32> to vector<8x128xf32>
    %112 = math.tanh %111 : vector<8x128xf32>
    %113 = vector.extract_strided_slice %110 {offsets = [0, 0], sizes = [8, 128], strides = [1, 1]} : vector<8x384xf32> to vector<8x128xf32>
    %114 = vector.extract_strided_slice %110 {offsets = [0, 128], sizes = [8, 128], strides = [1, 1]} : vector<8x384xf32> to vector<8x128xf32>
    %115 = vector.extract_strided_slice %110 {offsets = [0, 256], sizes = [8, 128], strides = [1, 1]} : vector<8x384xf32> to vector<8x128xf32>
    %116 = arith.mulf %114, %96 : vector<8x128xf32>
    %117 = arith.mulf %113, %112 : vector<8x128xf32>
    %118 = arith.addf %116, %117 : vector<8x128xf32>
    %119 = math.tanh %118 : vector<8x128xf32>
    %120 = arith.mulf %115, %119 : vector<8x128xf32>
    %c5_i32 = arith.constant 5 : i32
    %121 = arith.index_cast %c5_i32 : i32 to index
    %c0_41 = arith.constant 0 : index
    %c0_42 = arith.constant 0 : index
    %122 = vector.load %arg7[%121, %c0_41, %c0_42] : memref<20x8x512xf32, #tpu.memory_space<vmem>>, vector<1x8x512xf32>
    %123 = vector.shape_cast %122 : vector<1x8x512xf32> to vector<8x512xf32>
    %c0_43 = arith.constant 0 : index
    %c0_44 = arith.constant 0 : index
    %124 = vector.load %arg2[%c0_43, %c0_44] : memref<128x512xf32, #tpu.memory_space<vmem>>, vector<128x512xf32>
    %cst_45 = arith.constant dense<0.000000e+00> : vector<8x512xf32>
    %125 = tpu.matmul %120, %124, %cst_45 {dimension_numbers = #tpu.dot_dimension_numbers<[1], [0], [0], [1], [0, 0, 1, 1], [], []>} : vector<8x128xf32>, vector<128x512xf32>, vector<8x512xf32> -> vector<8x512xf32>
    %126 = arith.addf %123, %125 : vector<8x512xf32>
    %127 = vector.extract_strided_slice %126 {offsets = [0, 0], sizes = [8, 384], strides = [1, 1]} : vector<8x512xf32> to vector<8x384xf32>
    %128 = arith.negf %127 : vector<8x384xf32>
    %129 = math.exp %128 : vector<8x384xf32>
    %cst_46 = arith.constant 1.000000e+00 : f32
    %130 = vector.broadcast %cst_46 : f32 to vector<8x384xf32>
    %131 = arith.addf %130, %129 : vector<8x384xf32>
    %132 = arith.divf %130, %131 : vector<8x384xf32>
    %133 = vector.extract_strided_slice %126 {offsets = [0, 384], sizes = [8, 128], strides = [1, 1]} : vector<8x512xf32> to vector<8x128xf32>
    %134 = math.tanh %133 : vector<8x128xf32>
    %135 = vector.extract_strided_slice %132 {offsets = [0, 0], sizes = [8, 128], strides = [1, 1]} : vector<8x384xf32> to vector<8x128xf32>
    %136 = vector.extract_strided_slice %132 {offsets = [0, 128], sizes = [8, 128], strides = [1, 1]} : vector<8x384xf32> to vector<8x128xf32>
    %137 = vector.extract_strided_slice %132 {offsets = [0, 256], sizes = [8, 128], strides = [1, 1]} : vector<8x384xf32> to vector<8x128xf32>
    %138 = arith.mulf %136, %118 : vector<8x128xf32>
    %139 = arith.mulf %135, %134 : vector<8x128xf32>
    %140 = arith.addf %138, %139 : vector<8x128xf32>
    %141 = math.tanh %140 : vector<8x128xf32>
    %142 = arith.mulf %137, %141 : vector<8x128xf32>
    %c6_i32 = arith.constant 6 : i32
    %143 = arith.index_cast %c6_i32 : i32 to index
    %c0_47 = arith.constant 0 : index
    %c0_48 = arith.constant 0 : index
    %144 = vector.load %arg7[%143, %c0_47, %c0_48] : memref<20x8x512xf32, #tpu.memory_space<vmem>>, vector<1x8x512xf32>
    %145 = vector.shape_cast %144 : vector<1x8x512xf32> to vector<8x512xf32>
    %c0_49 = arith.constant 0 : index
    %c0_50 = arith.constant 0 : index
    %146 = vector.load %arg2[%c0_49, %c0_50] : memref<128x512xf32, #tpu.memory_space<vmem>>, vector<128x512xf32>
    %cst_51 = arith.constant dense<0.000000e+00> : vector<8x512xf32>
    %147 = tpu.matmul %142, %146, %cst_51 {dimension_numbers = #tpu.dot_dimension_numbers<[1], [0], [0], [1], [0, 0, 1, 1], [], []>} : vector<8x128xf32>, vector<128x512xf32>, vector<8x512xf32> -> vector<8x512xf32>
    %148 = arith.addf %145, %147 : vector<8x512xf32>
    %149 = vector.extract_strided_slice %148 {offsets = [0, 0], sizes = [8, 384], strides = [1, 1]} : vector<8x512xf32> to vector<8x384xf32>
    %150 = arith.negf %149 : vector<8x384xf32>
    %151 = math.exp %150 : vector<8x384xf32>
    %cst_52 = arith.constant 1.000000e+00 : f32
    %152 = vector.broadcast %cst_52 : f32 to vector<8x384xf32>
    %153 = arith.addf %152, %151 : vector<8x384xf32>
    %154 = arith.divf %152, %153 : vector<8x384xf32>
    %155 = vector.extract_strided_slice %148 {offsets = [0, 384], sizes = [8, 128], strides = [1, 1]} : vector<8x512xf32> to vector<8x128xf32>
    %156 = math.tanh %155 : vector<8x128xf32>
    %157 = vector.extract_strided_slice %154 {offsets = [0, 0], sizes = [8, 128], strides = [1, 1]} : vector<8x384xf32> to vector<8x128xf32>
    %158 = vector.extract_strided_slice %154 {offsets = [0, 128], sizes = [8, 128], strides = [1, 1]} : vector<8x384xf32> to vector<8x128xf32>
    %159 = vector.extract_strided_slice %154 {offsets = [0, 256], sizes = [8, 128], strides = [1, 1]} : vector<8x384xf32> to vector<8x128xf32>
    %160 = arith.mulf %158, %140 : vector<8x128xf32>
    %161 = arith.mulf %157, %156 : vector<8x128xf32>
    %162 = arith.addf %160, %161 : vector<8x128xf32>
    %163 = math.tanh %162 : vector<8x128xf32>
    %164 = arith.mulf %159, %163 : vector<8x128xf32>
    %c7_i32 = arith.constant 7 : i32
    %165 = arith.index_cast %c7_i32 : i32 to index
    %c0_53 = arith.constant 0 : index
    %c0_54 = arith.constant 0 : index
    %166 = vector.load %arg7[%165, %c0_53, %c0_54] : memref<20x8x512xf32, #tpu.memory_space<vmem>>, vector<1x8x512xf32>
    %167 = vector.shape_cast %166 : vector<1x8x512xf32> to vector<8x512xf32>
    %c0_55 = arith.constant 0 : index
    %c0_56 = arith.constant 0 : index
    %168 = vector.load %arg2[%c0_55, %c0_56] : memref<128x512xf32, #tpu.memory_space<vmem>>, vector<128x512xf32>
    %cst_57 = arith.constant dense<0.000000e+00> : vector<8x512xf32>
    %169 = tpu.matmul %164, %168, %cst_57 {dimension_numbers = #tpu.dot_dimension_numbers<[1], [0], [0], [1], [0, 0, 1, 1], [], []>} : vector<8x128xf32>, vector<128x512xf32>, vector<8x512xf32> -> vector<8x512xf32>
    %170 = arith.addf %167, %169 : vector<8x512xf32>
    %171 = vector.extract_strided_slice %170 {offsets = [0, 0], sizes = [8, 384], strides = [1, 1]} : vector<8x512xf32> to vector<8x384xf32>
    %172 = arith.negf %171 : vector<8x384xf32>
    %173 = math.exp %172 : vector<8x384xf32>
    %cst_58 = arith.constant 1.000000e+00 : f32
    %174 = vector.broadcast %cst_58 : f32 to vector<8x384xf32>
    %175 = arith.addf %174, %173 : vector<8x384xf32>
    %176 = arith.divf %174, %175 : vector<8x384xf32>
    %177 = vector.extract_strided_slice %170 {offsets = [0, 384], sizes = [8, 128], strides = [1, 1]} : vector<8x512xf32> to vector<8x128xf32>
    %178 = math.tanh %177 : vector<8x128xf32>
    %179 = vector.extract_strided_slice %176 {offsets = [0, 0], sizes = [8, 128], strides = [1, 1]} : vector<8x384xf32> to vector<8x128xf32>
    %180 = vector.extract_strided_slice %176 {offsets = [0, 128], sizes = [8, 128], strides = [1, 1]} : vector<8x384xf32> to vector<8x128xf32>
    %181 = vector.extract_strided_slice %176 {offsets = [0, 256], sizes = [8, 128], strides = [1, 1]} : vector<8x384xf32> to vector<8x128xf32>
    %182 = arith.mulf %180, %162 : vector<8x128xf32>
    %183 = arith.mulf %179, %178 : vector<8x128xf32>
    %184 = arith.addf %182, %183 : vector<8x128xf32>
    %185 = math.tanh %184 : vector<8x128xf32>
    %186 = arith.mulf %181, %185 : vector<8x128xf32>
    %c8_i32 = arith.constant 8 : i32
    %187 = arith.index_cast %c8_i32 : i32 to index
    %c0_59 = arith.constant 0 : index
    %c0_60 = arith.constant 0 : index
    %188 = vector.load %arg7[%187, %c0_59, %c0_60] : memref<20x8x512xf32, #tpu.memory_space<vmem>>, vector<1x8x512xf32>
    %189 = vector.shape_cast %188 : vector<1x8x512xf32> to vector<8x512xf32>
    %c0_61 = arith.constant 0 : index
    %c0_62 = arith.constant 0 : index
    %190 = vector.load %arg2[%c0_61, %c0_62] : memref<128x512xf32, #tpu.memory_space<vmem>>, vector<128x512xf32>
    %cst_63 = arith.constant dense<0.000000e+00> : vector<8x512xf32>
    %191 = tpu.matmul %186, %190, %cst_63 {dimension_numbers = #tpu.dot_dimension_numbers<[1], [0], [0], [1], [0, 0, 1, 1], [], []>} : vector<8x128xf32>, vector<128x512xf32>, vector<8x512xf32> -> vector<8x512xf32>
    %192 = arith.addf %189, %191 : vector<8x512xf32>
    %193 = vector.extract_strided_slice %192 {offsets = [0, 0], sizes = [8, 384], strides = [1, 1]} : vector<8x512xf32> to vector<8x384xf32>
    %194 = arith.negf %193 : vector<8x384xf32>
    %195 = math.exp %194 : vector<8x384xf32>
    %cst_64 = arith.constant 1.000000e+00 : f32
    %196 = vector.broadcast %cst_64 : f32 to vector<8x384xf32>
    %197 = arith.addf %196, %195 : vector<8x384xf32>
    %198 = arith.divf %196, %197 : vector<8x384xf32>
    %199 = vector.extract_strided_slice %192 {offsets = [0, 384], sizes = [8, 128], strides = [1, 1]} : vector<8x512xf32> to vector<8x128xf32>
    %200 = math.tanh %199 : vector<8x128xf32>
    %201 = vector.extract_strided_slice %198 {offsets = [0, 0], sizes = [8, 128], strides = [1, 1]} : vector<8x384xf32> to vector<8x128xf32>
    %202 = vector.extract_strided_slice %198 {offsets = [0, 128], sizes = [8, 128], strides = [1, 1]} : vector<8x384xf32> to vector<8x128xf32>
    %203 = vector.extract_strided_slice %198 {offsets = [0, 256], sizes = [8, 128], strides = [1, 1]} : vector<8x384xf32> to vector<8x128xf32>
    %204 = arith.mulf %202, %184 : vector<8x128xf32>
    %205 = arith.mulf %201, %200 : vector<8x128xf32>
    %206 = arith.addf %204, %205 : vector<8x128xf32>
    %207 = math.tanh %206 : vector<8x128xf32>
    %208 = arith.mulf %203, %207 : vector<8x128xf32>
    %c9_i32 = arith.constant 9 : i32
    %209 = arith.index_cast %c9_i32 : i32 to index
    %c0_65 = arith.constant 0 : index
    %c0_66 = arith.constant 0 : index
    %210 = vector.load %arg7[%209, %c0_65, %c0_66] : memref<20x8x512xf32, #tpu.memory_space<vmem>>, vector<1x8x512xf32>
    %211 = vector.shape_cast %210 : vector<1x8x512xf32> to vector<8x512xf32>
    %c0_67 = arith.constant 0 : index
    %c0_68 = arith.constant 0 : index
    %212 = vector.load %arg2[%c0_67, %c0_68] : memref<128x512xf32, #tpu.memory_space<vmem>>, vector<128x512xf32>
    %cst_69 = arith.constant dense<0.000000e+00> : vector<8x512xf32>
    %213 = tpu.matmul %208, %212, %cst_69 {dimension_numbers = #tpu.dot_dimension_numbers<[1], [0], [0], [1], [0, 0, 1, 1], [], []>} : vector<8x128xf32>, vector<128x512xf32>, vector<8x512xf32> -> vector<8x512xf32>
    %214 = arith.addf %211, %213 : vector<8x512xf32>
    %215 = vector.extract_strided_slice %214 {offsets = [0, 0], sizes = [8, 384], strides = [1, 1]} : vector<8x512xf32> to vector<8x384xf32>
    %216 = arith.negf %215 : vector<8x384xf32>
    %217 = math.exp %216 : vector<8x384xf32>
    %cst_70 = arith.constant 1.000000e+00 : f32
    %218 = vector.broadcast %cst_70 : f32 to vector<8x384xf32>
    %219 = arith.addf %218, %217 : vector<8x384xf32>
    %220 = arith.divf %218, %219 : vector<8x384xf32>
    %221 = vector.extract_strided_slice %214 {offsets = [0, 384], sizes = [8, 128], strides = [1, 1]} : vector<8x512xf32> to vector<8x128xf32>
    %222 = math.tanh %221 : vector<8x128xf32>
    %223 = vector.extract_strided_slice %220 {offsets = [0, 0], sizes = [8, 128], strides = [1, 1]} : vector<8x384xf32> to vector<8x128xf32>
    %224 = vector.extract_strided_slice %220 {offsets = [0, 128], sizes = [8, 128], strides = [1, 1]} : vector<8x384xf32> to vector<8x128xf32>
    %225 = vector.extract_strided_slice %220 {offsets = [0, 256], sizes = [8, 128], strides = [1, 1]} : vector<8x384xf32> to vector<8x128xf32>
    %226 = arith.mulf %224, %206 : vector<8x128xf32>
    %227 = arith.mulf %223, %222 : vector<8x128xf32>
    %228 = arith.addf %226, %227 : vector<8x128xf32>
    %229 = math.tanh %228 : vector<8x128xf32>
    %230 = arith.mulf %225, %229 : vector<8x128xf32>
    %c10_i32 = arith.constant 10 : i32
    %231 = arith.index_cast %c10_i32 : i32 to index
    %c0_71 = arith.constant 0 : index
    %c0_72 = arith.constant 0 : index
    %232 = vector.load %arg7[%231, %c0_71, %c0_72] : memref<20x8x512xf32, #tpu.memory_space<vmem>>, vector<1x8x512xf32>
    %233 = vector.shape_cast %232 : vector<1x8x512xf32> to vector<8x512xf32>
    %c0_73 = arith.constant 0 : index
    %c0_74 = arith.constant 0 : index
    %234 = vector.load %arg2[%c0_73, %c0_74] : memref<128x512xf32, #tpu.memory_space<vmem>>, vector<128x512xf32>
    %cst_75 = arith.constant dense<0.000000e+00> : vector<8x512xf32>
    %235 = tpu.matmul %230, %234, %cst_75 {dimension_numbers = #tpu.dot_dimension_numbers<[1], [0], [0], [1], [0, 0, 1, 1], [], []>} : vector<8x128xf32>, vector<128x512xf32>, vector<8x512xf32> -> vector<8x512xf32>
    %236 = arith.addf %233, %235 : vector<8x512xf32>
    %237 = vector.extract_strided_slice %236 {offsets = [0, 0], sizes = [8, 384], strides = [1, 1]} : vector<8x512xf32> to vector<8x384xf32>
    %238 = arith.negf %237 : vector<8x384xf32>
    %239 = math.exp %238 : vector<8x384xf32>
    %cst_76 = arith.constant 1.000000e+00 : f32
    %240 = vector.broadcast %cst_76 : f32 to vector<8x384xf32>
    %241 = arith.addf %240, %239 : vector<8x384xf32>
    %242 = arith.divf %240, %241 : vector<8x384xf32>
    %243 = vector.extract_strided_slice %236 {offsets = [0, 384], sizes = [8, 128], strides = [1, 1]} : vector<8x512xf32> to vector<8x128xf32>
    %244 = math.tanh %243 : vector<8x128xf32>
    %245 = vector.extract_strided_slice %242 {offsets = [0, 0], sizes = [8, 128], strides = [1, 1]} : vector<8x384xf32> to vector<8x128xf32>
    %246 = vector.extract_strided_slice %242 {offsets = [0, 128], sizes = [8, 128], strides = [1, 1]} : vector<8x384xf32> to vector<8x128xf32>
    %247 = vector.extract_strided_slice %242 {offsets = [0, 256], sizes = [8, 128], strides = [1, 1]} : vector<8x384xf32> to vector<8x128xf32>
    %248 = arith.mulf %246, %228 : vector<8x128xf32>
    %249 = arith.mulf %245, %244 : vector<8x128xf32>
    %250 = arith.addf %248, %249 : vector<8x128xf32>
    %251 = math.tanh %250 : vector<8x128xf32>
    %252 = arith.mulf %247, %251 : vector<8x128xf32>
    %c11_i32 = arith.constant 11 : i32
    %253 = arith.index_cast %c11_i32 : i32 to index
    %c0_77 = arith.constant 0 : index
    %c0_78 = arith.constant 0 : index
    %254 = vector.load %arg7[%253, %c0_77, %c0_78] : memref<20x8x512xf32, #tpu.memory_space<vmem>>, vector<1x8x512xf32>
    %255 = vector.shape_cast %254 : vector<1x8x512xf32> to vector<8x512xf32>
    %c0_79 = arith.constant 0 : index
    %c0_80 = arith.constant 0 : index
    %256 = vector.load %arg2[%c0_79, %c0_80] : memref<128x512xf32, #tpu.memory_space<vmem>>, vector<128x512xf32>
    %cst_81 = arith.constant dense<0.000000e+00> : vector<8x512xf32>
    %257 = tpu.matmul %252, %256, %cst_81 {dimension_numbers = #tpu.dot_dimension_numbers<[1], [0], [0], [1], [0, 0, 1, 1], [], []>} : vector<8x128xf32>, vector<128x512xf32>, vector<8x512xf32> -> vector<8x512xf32>
    %258 = arith.addf %255, %257 : vector<8x512xf32>
    %259 = vector.extract_strided_slice %258 {offsets = [0, 0], sizes = [8, 384], strides = [1, 1]} : vector<8x512xf32> to vector<8x384xf32>
    %260 = arith.negf %259 : vector<8x384xf32>
    %261 = math.exp %260 : vector<8x384xf32>
    %cst_82 = arith.constant 1.000000e+00 : f32
    %262 = vector.broadcast %cst_82 : f32 to vector<8x384xf32>
    %263 = arith.addf %262, %261 : vector<8x384xf32>
    %264 = arith.divf %262, %263 : vector<8x384xf32>
    %265 = vector.extract_strided_slice %258 {offsets = [0, 384], sizes = [8, 128], strides = [1, 1]} : vector<8x512xf32> to vector<8x128xf32>
    %266 = math.tanh %265 : vector<8x128xf32>
    %267 = vector.extract_strided_slice %264 {offsets = [0, 0], sizes = [8, 128], strides = [1, 1]} : vector<8x384xf32> to vector<8x128xf32>
    %268 = vector.extract_strided_slice %264 {offsets = [0, 128], sizes = [8, 128], strides = [1, 1]} : vector<8x384xf32> to vector<8x128xf32>
    %269 = vector.extract_strided_slice %264 {offsets = [0, 256], sizes = [8, 128], strides = [1, 1]} : vector<8x384xf32> to vector<8x128xf32>
    %270 = arith.mulf %268, %250 : vector<8x128xf32>
    %271 = arith.mulf %267, %266 : vector<8x128xf32>
    %272 = arith.addf %270, %271 : vector<8x128xf32>
    %273 = math.tanh %272 : vector<8x128xf32>
    %274 = arith.mulf %269, %273 : vector<8x128xf32>
    %c12_i32 = arith.constant 12 : i32
    %275 = arith.index_cast %c12_i32 : i32 to index
    %c0_83 = arith.constant 0 : index
    %c0_84 = arith.constant 0 : index
    %276 = vector.load %arg7[%275, %c0_83, %c0_84] : memref<20x8x512xf32, #tpu.memory_space<vmem>>, vector<1x8x512xf32>
    %277 = vector.shape_cast %276 : vector<1x8x512xf32> to vector<8x512xf32>
    %c0_85 = arith.constant 0 : index
    %c0_86 = arith.constant 0 : index
    %278 = vector.load %arg2[%c0_85, %c0_86] : memref<128x512xf32, #tpu.memory_space<vmem>>, vector<128x512xf32>
    %cst_87 = arith.constant dense<0.000000e+00> : vector<8x512xf32>
    %279 = tpu.matmul %274, %278, %cst_87 {dimension_numbers = #tpu.dot_dimension_numbers<[1], [0], [0], [1], [0, 0, 1, 1], [], []>} : vector<8x128xf32>, vector<128x512xf32>, vector<8x512xf32> -> vector<8x512xf32>
    %280 = arith.addf %277, %279 : vector<8x512xf32>
    %281 = vector.extract_strided_slice %280 {offsets = [0, 0], sizes = [8, 384], strides = [1, 1]} : vector<8x512xf32> to vector<8x384xf32>
    %282 = arith.negf %281 : vector<8x384xf32>
    %283 = math.exp %282 : vector<8x384xf32>
    %cst_88 = arith.constant 1.000000e+00 : f32
    %284 = vector.broadcast %cst_88 : f32 to vector<8x384xf32>
    %285 = arith.addf %284, %283 : vector<8x384xf32>
    %286 = arith.divf %284, %285 : vector<8x384xf32>
    %287 = vector.extract_strided_slice %280 {offsets = [0, 384], sizes = [8, 128], strides = [1, 1]} : vector<8x512xf32> to vector<8x128xf32>
    %288 = math.tanh %287 : vector<8x128xf32>
    %289 = vector.extract_strided_slice %286 {offsets = [0, 0], sizes = [8, 128], strides = [1, 1]} : vector<8x384xf32> to vector<8x128xf32>
    %290 = vector.extract_strided_slice %286 {offsets = [0, 128], sizes = [8, 128], strides = [1, 1]} : vector<8x384xf32> to vector<8x128xf32>
    %291 = vector.extract_strided_slice %286 {offsets = [0, 256], sizes = [8, 128], strides = [1, 1]} : vector<8x384xf32> to vector<8x128xf32>
    %292 = arith.mulf %290, %272 : vector<8x128xf32>
    %293 = arith.mulf %289, %288 : vector<8x128xf32>
    %294 = arith.addf %292, %293 : vector<8x128xf32>
    %295 = math.tanh %294 : vector<8x128xf32>
    %296 = arith.mulf %291, %295 : vector<8x128xf32>
    %c13_i32 = arith.constant 13 : i32
    %297 = arith.index_cast %c13_i32 : i32 to index
    %c0_89 = arith.constant 0 : index
    %c0_90 = arith.constant 0 : index
    %298 = vector.load %arg7[%297, %c0_89, %c0_90] : memref<20x8x512xf32, #tpu.memory_space<vmem>>, vector<1x8x512xf32>
    %299 = vector.shape_cast %298 : vector<1x8x512xf32> to vector<8x512xf32>
    %c0_91 = arith.constant 0 : index
    %c0_92 = arith.constant 0 : index
    %300 = vector.load %arg2[%c0_91, %c0_92] : memref<128x512xf32, #tpu.memory_space<vmem>>, vector<128x512xf32>
    %cst_93 = arith.constant dense<0.000000e+00> : vector<8x512xf32>
    %301 = tpu.matmul %296, %300, %cst_93 {dimension_numbers = #tpu.dot_dimension_numbers<[1], [0], [0], [1], [0, 0, 1, 1], [], []>} : vector<8x128xf32>, vector<128x512xf32>, vector<8x512xf32> -> vector<8x512xf32>
    %302 = arith.addf %299, %301 : vector<8x512xf32>
    %303 = vector.extract_strided_slice %302 {offsets = [0, 0], sizes = [8, 384], strides = [1, 1]} : vector<8x512xf32> to vector<8x384xf32>
    %304 = arith.negf %303 : vector<8x384xf32>
    %305 = math.exp %304 : vector<8x384xf32>
    %cst_94 = arith.constant 1.000000e+00 : f32
    %306 = vector.broadcast %cst_94 : f32 to vector<8x384xf32>
    %307 = arith.addf %306, %305 : vector<8x384xf32>
    %308 = arith.divf %306, %307 : vector<8x384xf32>
    %309 = vector.extract_strided_slice %302 {offsets = [0, 384], sizes = [8, 128], strides = [1, 1]} : vector<8x512xf32> to vector<8x128xf32>
    %310 = math.tanh %309 : vector<8x128xf32>
    %311 = vector.extract_strided_slice %308 {offsets = [0, 0], sizes = [8, 128], strides = [1, 1]} : vector<8x384xf32> to vector<8x128xf32>
    %312 = vector.extract_strided_slice %308 {offsets = [0, 128], sizes = [8, 128], strides = [1, 1]} : vector<8x384xf32> to vector<8x128xf32>
    %313 = vector.extract_strided_slice %308 {offsets = [0, 256], sizes = [8, 128], strides = [1, 1]} : vector<8x384xf32> to vector<8x128xf32>
    %314 = arith.mulf %312, %294 : vector<8x128xf32>
    %315 = arith.mulf %311, %310 : vector<8x128xf32>
    %316 = arith.addf %314, %315 : vector<8x128xf32>
    %317 = math.tanh %316 : vector<8x128xf32>
    %318 = arith.mulf %313, %317 : vector<8x128xf32>
    %c14_i32 = arith.constant 14 : i32
    %319 = arith.index_cast %c14_i32 : i32 to index
    %c0_95 = arith.constant 0 : index
    %c0_96 = arith.constant 0 : index
    %320 = vector.load %arg7[%319, %c0_95, %c0_96] : memref<20x8x512xf32, #tpu.memory_space<vmem>>, vector<1x8x512xf32>
    %321 = vector.shape_cast %320 : vector<1x8x512xf32> to vector<8x512xf32>
    %c0_97 = arith.constant 0 : index
    %c0_98 = arith.constant 0 : index
    %322 = vector.load %arg2[%c0_97, %c0_98] : memref<128x512xf32, #tpu.memory_space<vmem>>, vector<128x512xf32>
    %cst_99 = arith.constant dense<0.000000e+00> : vector<8x512xf32>
    %323 = tpu.matmul %318, %322, %cst_99 {dimension_numbers = #tpu.dot_dimension_numbers<[1], [0], [0], [1], [0, 0, 1, 1], [], []>} : vector<8x128xf32>, vector<128x512xf32>, vector<8x512xf32> -> vector<8x512xf32>
    %324 = arith.addf %321, %323 : vector<8x512xf32>
    %325 = vector.extract_strided_slice %324 {offsets = [0, 0], sizes = [8, 384], strides = [1, 1]} : vector<8x512xf32> to vector<8x384xf32>
    %326 = arith.negf %325 : vector<8x384xf32>
    %327 = math.exp %326 : vector<8x384xf32>
    %cst_100 = arith.constant 1.000000e+00 : f32
    %328 = vector.broadcast %cst_100 : f32 to vector<8x384xf32>
    %329 = arith.addf %328, %327 : vector<8x384xf32>
    %330 = arith.divf %328, %329 : vector<8x384xf32>
    %331 = vector.extract_strided_slice %324 {offsets = [0, 384], sizes = [8, 128], strides = [1, 1]} : vector<8x512xf32> to vector<8x128xf32>
    %332 = math.tanh %331 : vector<8x128xf32>
    %333 = vector.extract_strided_slice %330 {offsets = [0, 0], sizes = [8, 128], strides = [1, 1]} : vector<8x384xf32> to vector<8x128xf32>
    %334 = vector.extract_strided_slice %330 {offsets = [0, 128], sizes = [8, 128], strides = [1, 1]} : vector<8x384xf32> to vector<8x128xf32>
    %335 = vector.extract_strided_slice %330 {offsets = [0, 256], sizes = [8, 128], strides = [1, 1]} : vector<8x384xf32> to vector<8x128xf32>
    %336 = arith.mulf %334, %316 : vector<8x128xf32>
    %337 = arith.mulf %333, %332 : vector<8x128xf32>
    %338 = arith.addf %336, %337 : vector<8x128xf32>
    %339 = math.tanh %338 : vector<8x128xf32>
    %340 = arith.mulf %335, %339 : vector<8x128xf32>
    %c15_i32 = arith.constant 15 : i32
    %341 = arith.index_cast %c15_i32 : i32 to index
    %c0_101 = arith.constant 0 : index
    %c0_102 = arith.constant 0 : index
    %342 = vector.load %arg7[%341, %c0_101, %c0_102] : memref<20x8x512xf32, #tpu.memory_space<vmem>>, vector<1x8x512xf32>
    %343 = vector.shape_cast %342 : vector<1x8x512xf32> to vector<8x512xf32>
    %c0_103 = arith.constant 0 : index
    %c0_104 = arith.constant 0 : index
    %344 = vector.load %arg2[%c0_103, %c0_104] : memref<128x512xf32, #tpu.memory_space<vmem>>, vector<128x512xf32>
    %cst_105 = arith.constant dense<0.000000e+00> : vector<8x512xf32>
    %345 = tpu.matmul %340, %344, %cst_105 {dimension_numbers = #tpu.dot_dimension_numbers<[1], [0], [0], [1], [0, 0, 1, 1], [], []>} : vector<8x128xf32>, vector<128x512xf32>, vector<8x512xf32> -> vector<8x512xf32>
    %346 = arith.addf %343, %345 : vector<8x512xf32>
    %347 = vector.extract_strided_slice %346 {offsets = [0, 0], sizes = [8, 384], strides = [1, 1]} : vector<8x512xf32> to vector<8x384xf32>
    %348 = arith.negf %347 : vector<8x384xf32>
    %349 = math.exp %348 : vector<8x384xf32>
    %cst_106 = arith.constant 1.000000e+00 : f32
    %350 = vector.broadcast %cst_106 : f32 to vector<8x384xf32>
    %351 = arith.addf %350, %349 : vector<8x384xf32>
    %352 = arith.divf %350, %351 : vector<8x384xf32>
    %353 = vector.extract_strided_slice %346 {offsets = [0, 384], sizes = [8, 128], strides = [1, 1]} : vector<8x512xf32> to vector<8x128xf32>
    %354 = math.tanh %353 : vector<8x128xf32>
    %355 = vector.extract_strided_slice %352 {offsets = [0, 0], sizes = [8, 128], strides = [1, 1]} : vector<8x384xf32> to vector<8x128xf32>
    %356 = vector.extract_strided_slice %352 {offsets = [0, 128], sizes = [8, 128], strides = [1, 1]} : vector<8x384xf32> to vector<8x128xf32>
    %357 = vector.extract_strided_slice %352 {offsets = [0, 256], sizes = [8, 128], strides = [1, 1]} : vector<8x384xf32> to vector<8x128xf32>
    %358 = arith.mulf %356, %338 : vector<8x128xf32>
    %359 = arith.mulf %355, %354 : vector<8x128xf32>
    %360 = arith.addf %358, %359 : vector<8x128xf32>
    %361 = math.tanh %360 : vector<8x128xf32>
    %362 = arith.mulf %357, %361 : vector<8x128xf32>
    %c16_i32 = arith.constant 16 : i32
    %363 = arith.index_cast %c16_i32 : i32 to index
    %c0_107 = arith.constant 0 : index
    %c0_108 = arith.constant 0 : index
    %364 = vector.load %arg7[%363, %c0_107, %c0_108] : memref<20x8x512xf32, #tpu.memory_space<vmem>>, vector<1x8x512xf32>
    %365 = vector.shape_cast %364 : vector<1x8x512xf32> to vector<8x512xf32>
    %c0_109 = arith.constant 0 : index
    %c0_110 = arith.constant 0 : index
    %366 = vector.load %arg2[%c0_109, %c0_110] : memref<128x512xf32, #tpu.memory_space<vmem>>, vector<128x512xf32>
    %cst_111 = arith.constant dense<0.000000e+00> : vector<8x512xf32>
    %367 = tpu.matmul %362, %366, %cst_111 {dimension_numbers = #tpu.dot_dimension_numbers<[1], [0], [0], [1], [0, 0, 1, 1], [], []>} : vector<8x128xf32>, vector<128x512xf32>, vector<8x512xf32> -> vector<8x512xf32>
    %368 = arith.addf %365, %367 : vector<8x512xf32>
    %369 = vector.extract_strided_slice %368 {offsets = [0, 0], sizes = [8, 384], strides = [1, 1]} : vector<8x512xf32> to vector<8x384xf32>
    %370 = arith.negf %369 : vector<8x384xf32>
    %371 = math.exp %370 : vector<8x384xf32>
    %cst_112 = arith.constant 1.000000e+00 : f32
    %372 = vector.broadcast %cst_112 : f32 to vector<8x384xf32>
    %373 = arith.addf %372, %371 : vector<8x384xf32>
    %374 = arith.divf %372, %373 : vector<8x384xf32>
    %375 = vector.extract_strided_slice %368 {offsets = [0, 384], sizes = [8, 128], strides = [1, 1]} : vector<8x512xf32> to vector<8x128xf32>
    %376 = math.tanh %375 : vector<8x128xf32>
    %377 = vector.extract_strided_slice %374 {offsets = [0, 0], sizes = [8, 128], strides = [1, 1]} : vector<8x384xf32> to vector<8x128xf32>
    %378 = vector.extract_strided_slice %374 {offsets = [0, 128], sizes = [8, 128], strides = [1, 1]} : vector<8x384xf32> to vector<8x128xf32>
    %379 = vector.extract_strided_slice %374 {offsets = [0, 256], sizes = [8, 128], strides = [1, 1]} : vector<8x384xf32> to vector<8x128xf32>
    %380 = arith.mulf %378, %360 : vector<8x128xf32>
    %381 = arith.mulf %377, %376 : vector<8x128xf32>
    %382 = arith.addf %380, %381 : vector<8x128xf32>
    %383 = math.tanh %382 : vector<8x128xf32>
    %384 = arith.mulf %379, %383 : vector<8x128xf32>
    %c17_i32 = arith.constant 17 : i32
    %385 = arith.index_cast %c17_i32 : i32 to index
    %c0_113 = arith.constant 0 : index
    %c0_114 = arith.constant 0 : index
    %386 = vector.load %arg7[%385, %c0_113, %c0_114] : memref<20x8x512xf32, #tpu.memory_space<vmem>>, vector<1x8x512xf32>
    %387 = vector.shape_cast %386 : vector<1x8x512xf32> to vector<8x512xf32>
    %c0_115 = arith.constant 0 : index
    %c0_116 = arith.constant 0 : index
    %388 = vector.load %arg2[%c0_115, %c0_116] : memref<128x512xf32, #tpu.memory_space<vmem>>, vector<128x512xf32>
    %cst_117 = arith.constant dense<0.000000e+00> : vector<8x512xf32>
    %389 = tpu.matmul %384, %388, %cst_117 {dimension_numbers = #tpu.dot_dimension_numbers<[1], [0], [0], [1], [0, 0, 1, 1], [], []>} : vector<8x128xf32>, vector<128x512xf32>, vector<8x512xf32> -> vector<8x512xf32>
    %390 = arith.addf %387, %389 : vector<8x512xf32>
    %391 = vector.extract_strided_slice %390 {offsets = [0, 0], sizes = [8, 384], strides = [1, 1]} : vector<8x512xf32> to vector<8x384xf32>
    %392 = arith.negf %391 : vector<8x384xf32>
    %393 = math.exp %392 : vector<8x384xf32>
    %cst_118 = arith.constant 1.000000e+00 : f32
    %394 = vector.broadcast %cst_118 : f32 to vector<8x384xf32>
    %395 = arith.addf %394, %393 : vector<8x384xf32>
    %396 = arith.divf %394, %395 : vector<8x384xf32>
    %397 = vector.extract_strided_slice %390 {offsets = [0, 384], sizes = [8, 128], strides = [1, 1]} : vector<8x512xf32> to vector<8x128xf32>
    %398 = math.tanh %397 : vector<8x128xf32>
    %399 = vector.extract_strided_slice %396 {offsets = [0, 0], sizes = [8, 128], strides = [1, 1]} : vector<8x384xf32> to vector<8x128xf32>
    %400 = vector.extract_strided_slice %396 {offsets = [0, 128], sizes = [8, 128], strides = [1, 1]} : vector<8x384xf32> to vector<8x128xf32>
    %401 = vector.extract_strided_slice %396 {offsets = [0, 256], sizes = [8, 128], strides = [1, 1]} : vector<8x384xf32> to vector<8x128xf32>
    %402 = arith.mulf %400, %382 : vector<8x128xf32>
    %403 = arith.mulf %399, %398 : vector<8x128xf32>
    %404 = arith.addf %402, %403 : vector<8x128xf32>
    %405 = math.tanh %404 : vector<8x128xf32>
    %406 = arith.mulf %401, %405 : vector<8x128xf32>
    %c18_i32 = arith.constant 18 : i32
    %407 = arith.index_cast %c18_i32 : i32 to index
    %c0_119 = arith.constant 0 : index
    %c0_120 = arith.constant 0 : index
    %408 = vector.load %arg7[%407, %c0_119, %c0_120] : memref<20x8x512xf32, #tpu.memory_space<vmem>>, vector<1x8x512xf32>
    %409 = vector.shape_cast %408 : vector<1x8x512xf32> to vector<8x512xf32>
    %c0_121 = arith.constant 0 : index
    %c0_122 = arith.constant 0 : index
    %410 = vector.load %arg2[%c0_121, %c0_122] : memref<128x512xf32, #tpu.memory_space<vmem>>, vector<128x512xf32>
    %cst_123 = arith.constant dense<0.000000e+00> : vector<8x512xf32>
    %411 = tpu.matmul %406, %410, %cst_123 {dimension_numbers = #tpu.dot_dimension_numbers<[1], [0], [0], [1], [0, 0, 1, 1], [], []>} : vector<8x128xf32>, vector<128x512xf32>, vector<8x512xf32> -> vector<8x512xf32>
    %412 = arith.addf %409, %411 : vector<8x512xf32>
    %413 = vector.extract_strided_slice %412 {offsets = [0, 0], sizes = [8, 384], strides = [1, 1]} : vector<8x512xf32> to vector<8x384xf32>
    %414 = arith.negf %413 : vector<8x384xf32>
    %415 = math.exp %414 : vector<8x384xf32>
    %cst_124 = arith.constant 1.000000e+00 : f32
    %416 = vector.broadcast %cst_124 : f32 to vector<8x384xf32>
    %417 = arith.addf %416, %415 : vector<8x384xf32>
    %418 = arith.divf %416, %417 : vector<8x384xf32>
    %419 = vector.extract_strided_slice %412 {offsets = [0, 384], sizes = [8, 128], strides = [1, 1]} : vector<8x512xf32> to vector<8x128xf32>
    %420 = math.tanh %419 : vector<8x128xf32>
    %421 = vector.extract_strided_slice %418 {offsets = [0, 0], sizes = [8, 128], strides = [1, 1]} : vector<8x384xf32> to vector<8x128xf32>
    %422 = vector.extract_strided_slice %418 {offsets = [0, 128], sizes = [8, 128], strides = [1, 1]} : vector<8x384xf32> to vector<8x128xf32>
    %423 = vector.extract_strided_slice %418 {offsets = [0, 256], sizes = [8, 128], strides = [1, 1]} : vector<8x384xf32> to vector<8x128xf32>
    %424 = arith.mulf %422, %404 : vector<8x128xf32>
    %425 = arith.mulf %421, %420 : vector<8x128xf32>
    %426 = arith.addf %424, %425 : vector<8x128xf32>
    %427 = math.tanh %426 : vector<8x128xf32>
    %428 = arith.mulf %423, %427 : vector<8x128xf32>
    %c19_i32 = arith.constant 19 : i32
    %429 = arith.index_cast %c19_i32 : i32 to index
    %c0_125 = arith.constant 0 : index
    %c0_126 = arith.constant 0 : index
    %430 = vector.load %arg7[%429, %c0_125, %c0_126] : memref<20x8x512xf32, #tpu.memory_space<vmem>>, vector<1x8x512xf32>
    %431 = vector.shape_cast %430 : vector<1x8x512xf32> to vector<8x512xf32>
    %c0_127 = arith.constant 0 : index
    %c0_128 = arith.constant 0 : index
    %432 = vector.load %arg2[%c0_127, %c0_128] : memref<128x512xf32, #tpu.memory_space<vmem>>, vector<128x512xf32>
    %cst_129 = arith.constant dense<0.000000e+00> : vector<8x512xf32>
    %433 = tpu.matmul %428, %432, %cst_129 {dimension_numbers = #tpu.dot_dimension_numbers<[1], [0], [0], [1], [0, 0, 1, 1], [], []>} : vector<8x128xf32>, vector<128x512xf32>, vector<8x512xf32> -> vector<8x512xf32>
    %434 = arith.addf %431, %433 : vector<8x512xf32>
    %435 = vector.extract_strided_slice %434 {offsets = [0, 0], sizes = [8, 384], strides = [1, 1]} : vector<8x512xf32> to vector<8x384xf32>
    %436 = arith.negf %435 : vector<8x384xf32>
    %437 = math.exp %436 : vector<8x384xf32>
    %cst_130 = arith.constant 1.000000e+00 : f32
    %438 = vector.broadcast %cst_130 : f32 to vector<8x384xf32>
    %439 = arith.addf %438, %437 : vector<8x384xf32>
    %440 = arith.divf %438, %439 : vector<8x384xf32>
    %441 = vector.extract_strided_slice %434 {offsets = [0, 384], sizes = [8, 128], strides = [1, 1]} : vector<8x512xf32> to vector<8x128xf32>
    %442 = math.tanh %441 : vector<8x128xf32>
    %443 = vector.extract_strided_slice %440 {offsets = [0, 0], sizes = [8, 128], strides = [1, 1]} : vector<8x384xf32> to vector<8x128xf32>
    %444 = vector.extract_strided_slice %440 {offsets = [0, 128], sizes = [8, 128], strides = [1, 1]} : vector<8x384xf32> to vector<8x128xf32>
    %445 = vector.extract_strided_slice %440 {offsets = [0, 256], sizes = [8, 128], strides = [1, 1]} : vector<8x384xf32> to vector<8x128xf32>
    %446 = arith.mulf %444, %426 : vector<8x128xf32>
    %447 = arith.mulf %443, %442 : vector<8x128xf32>
    %448 = arith.addf %446, %447 : vector<8x128xf32>
    %449 = math.tanh %448 : vector<8x128xf32>
    %450 = arith.mulf %445, %449 : vector<8x128xf32>
    %c20_i32 = arith.constant 20 : i32
    %c0_131 = arith.constant 0 : index
    %c0_132 = arith.constant 0 : index
    %451 = vector.load %arg4[%c0_131, %c0_132] : memref<128x128xf32, #tpu.memory_space<vmem>>, vector<128x128xf32>
    %cst_133 = arith.constant dense<0.000000e+00> : vector<8x128xf32>
    %452 = tpu.matmul %450, %451, %cst_133 {dimension_numbers = #tpu.dot_dimension_numbers<[1], [0], [0], [1], [0, 0, 1, 1], [], []>} : vector<8x128xf32>, vector<128x128xf32>, vector<8x128xf32> -> vector<8x128xf32>
    %c0_134 = arith.constant 0 : index
    %c0_135 = arith.constant 0 : index
    %453 = vector.load %arg5[%c0_134, %c0_135] : memref<1x128xf32, #tpu.memory_space<vmem>>, vector<1x128xf32>
    %454 = vector.broadcast %453 : vector<1x128xf32> to vector<8x128xf32>
    %455 = arith.addf %452, %454 : vector<8x128xf32>
    %456 = arith.negf %455 : vector<8x128xf32>
    %457 = math.exp %456 : vector<8x128xf32>
    %cst_136 = arith.constant 1.000000e+00 : f32
    %458 = vector.broadcast %cst_136 : f32 to vector<8x128xf32>
    %459 = arith.addf %458, %457 : vector<8x128xf32>
    %460 = arith.divf %458, %459 : vector<8x128xf32>
    %c0_137 = arith.constant 0 : index
    %c0_138 = arith.constant 0 : index
    %461 = vector.load %arg6[%c0_137, %c0_138] : memref<8x128xf32, #tpu.memory_space<vmem>>, vector<8x128xf32>
    tpu.vector_store %arg6[%c0_137, %c0_138], %460 {strides = array<i32>} : memref<8x128xf32, #tpu.memory_space<vmem>>, vector<8x128xf32>,
    return
  }
}

</mosaic_0001>

<llo_original>
// kernel: tpu_custom_call.1
$region0: #{tpu_custom_call.1}
  #allocation0 [shape = 'u32[]', space=smem, size = 0x4, offset = 0x4, fixed_abs, tag = 'smem constant byte address 0x4 - core index']
  #allocation1 [shape = 'u32[144,128]{1,0:T(1,128)}', space=vmem, size = 0x12000, scoped, tag = 'internal scratch']
  #allocation2 [shape = 'f32[20,8,512]{2,1,0:T(8,128)}', space=vmem, size = 0x50000, scoped, tag = 'scratch operand']
  %s0 = inlined_call_operand.hbm [shape: f32[20,8,128], index: 0, kind: input, shape index: {}]
  %s1 = inlined_call_operand.hbm [shape: f32[128,512], index: 1, kind: input, shape index: {}]
  %s2 = inlined_call_operand.hbm [shape: f32[128,512], index: 2, kind: input, shape index: {}]
  %s3 = inlined_call_operand.vmem [shape: f32[1,512], index: 3, kind: input, shape index: {}]
  %s4 = inlined_call_operand.hbm [shape: f32[128,128], index: 4, kind: input, shape index: {}]
  %s5 = inlined_call_operand.vmem [shape: f32[1,128], index: 5, kind: input, shape index: {}]
  %s6 = inlined_call_operand.hbm [shape: f32[8,128], index: 6, kind: output, shape index: {}]
  %s7 = sld [smem:[#allocation0]]
  $region50: #{tpu_custom_call.1} parent=0
    _
  %s9 = ssub.s32 1, %s7
  %s10 = scalar_select 0, %s9, %s7
  $region1: #{tpu_custom_call.1} parent=0
    #allocation3 [shape = 'u8[81920]{0}', space=vmem, size = 0x14000, scoped, tag = 'input window, operand 0, single buffered']
    #allocation4 [shape = 's32[1]{0}', space=sflag, size = 0x4, scoped, tag = 'scoped memory for tpu_custom_call.1']
    #allocation5 [shape = 's32[1]{0}', space=sflag, size = 0x4, scoped, tag = 'scoped memory for tpu_custom_call.1']
    #allocation6 [shape = 'u8[262144]{0}', space=vmem, size = 0x40000, scoped, tag = 'input window, operand 1, single buffered']
    #allocation7 [shape = 's32[1]{0}', space=sflag, size = 0x4, scoped, tag = 'scoped memory for tpu_custom_call.1']
    #allocation8 [shape = 'u8[262144]{0}', space=vmem, size = 0x40000, scoped, tag = 'input window, operand 2, single buffered']
    #allocation9 [shape = 'u8[65536]{0}', space=vmem, size = 0x10000, scoped, tag = 'input window, operand 4, single buffered']
    #allocation10 [shape = 's32[1]{0}', space=sflag, size = 0x4, scoped, tag = 'scoped memory for tpu_custom_call.1']
    #allocation11 [shape = 'u8[4096]{0}', space=vmem, size = 0x1000, scoped, tag = 'output window, operand 0, single buffered']
    %11 = vsyncpa [#allocation4], 0
    %12 = vsyncpa [#allocation7], 0
    %13 = vsyncpa [#allocation10], 0
    %14 = vsyncpa [#allocation5], 0
    // Predicated region
    $region2: #{tpu_custom_call.1} parent=1 // pred_check
      _
    $region3: #{tpu_custom_call.1} parent=1 // pred_check_branch
      %16 = sbr.rel (0) target = $region5
    $region4: #{tpu_custom_call.1} parent=1 // pred_region
      %s18 = ssub.s32 2560, 2560
      %19 = vsyncadd [#allocation4], %s18
      %s20 = sshll.u32 [#allocation3], 4
      %s21 = int_to_ptr.vmem [resolvable:$true] %s20
      %26 = dma.hbm_to_vmem [thread:$0]  %s0, 2560, %s21, [#allocation4], 128, 128, 8
    $region5: #{tpu_custom_call.1} parent=1 // pred_fallthru
      _
    // Predicated region
    $region6: #{tpu_custom_call.1} parent=1 // pred_check
      _
    $region7: #{tpu_custom_call.1} parent=1 // pred_check_branch
      %28 = sbr.rel (0) target = $region9
    $region8: #{tpu_custom_call.1} parent=1 // pred_region
      %s30 = ssub.s32 8192, 8192
      %31 = vsyncadd [#allocation7], %s30
      %s32 = sshll.u32 [#allocation6], 4
      %s33 = int_to_ptr.vmem [resolvable:$true] %s32
      %38 = dma.hbm_to_vmem [thread:$0]  %s1, 8192, %s33, [#allocation7], 512, 512, 32
    $region9: #{tpu_custom_call.1} parent=1 // pred_fallthru
      _
    // Predicated region
    $region10: #{tpu_custom_call.1} parent=1 // pred_check
      _
    $region11: #{tpu_custom_call.1} parent=1 // pred_check_branch
      %40 = sbr.rel (0) target = $region13
    $region12: #{tpu_custom_call.1} parent=1 // pred_region
      %s42 = ssub.s32 8192, 8192
      %43 = vsyncadd [#allocation7], %s42
      %s44 = sshll.u32 [#allocation8], 4
      %s45 = int_to_ptr.vmem [resolvable:$true] %s44
      %50 = dma.hbm_to_vmem [thread:$0]  %s2, 8192, %s45, [#allocation7], 512, 512, 32
    $region13: #{tpu_custom_call.1} parent=1 // pred_fallthru
      _
    // Predicated region
    $region14: #{tpu_custom_call.1} parent=1 // pred_check
      _
    $region15: #{tpu_custom_call.1} parent=1 // pred_check_branch
      %52 = sbr.rel (0) target = $region17
    $region16: #{tpu_custom_call.1} parent=1 // pred_region
      _
    $region17: #{tpu_custom_call.1} parent=1 // pred_fallthru
      _
    // Predicated region
    $region18: #{tpu_custom_call.1} parent=1 // pred_check
      _
    $region19: #{tpu_custom_call.1} parent=1 // pred_check_branch
      %54 = sbr.rel (0) target = $region21
    $region20: #{tpu_custom_call.1} parent=1 // pred_region
      %s56 = ssub.s32 2048, 2048
      %57 = vsyncadd [#allocation10], %s56
      %s58 = sshll.u32 [#allocation9], 4
      %s59 = int_to_ptr.vmem [resolvable:$true] %s58
      %64 = dma.hbm_to_vmem [thread:$0]  %s4, 2048, %s59, [#allocation10], 128, 128, 8
    $region21: #{tpu_custom_call.1} parent=1 // pred_fallthru
      _
    // Predicated region
    $region22: #{tpu_custom_call.1} parent=1 // pred_check
      _
    $region23: #{tpu_custom_call.1} parent=1 // pred_check_branch
      %66 = sbr.rel (0) target = $region25
    $region24: #{tpu_custom_call.1} parent=1 // pred_region
      _
    $region25: #{tpu_custom_call.1} parent=1 // pred_fallthru
      _
    // Predicated region
    $region26: #{tpu_custom_call.1} parent=1 // pred_check
      _
    $region27: #{tpu_custom_call.1} parent=1 // pred_check_branch
      %68 = sbr.rel (0) target = $region29
    $region28: #{tpu_custom_call.1} parent=1 // pred_region
      %69 = dma.done [#allocation4], 2560
    $region29: #{tpu_custom_call.1} parent=1 // pred_fallthru
      _
    // Predicated region
    $region30: #{tpu_custom_call.1} parent=1 // pred_check
      _
    $region31: #{tpu_custom_call.1} parent=1 // pred_check_branch
      %71 = sbr.rel (0) target = $region33
    $region32: #{tpu_custom_call.1} parent=1 // pred_region
      %72 = dma.done [#allocation7], 8192
    $region33: #{tpu_custom_call.1} parent=1 // pred_fallthru
      _
    // Predicated region
    $region34: #{tpu_custom_call.1} parent=1 // pred_check
      _
    $region35: #{tpu_custom_call.1} parent=1 // pred_check_branch
      %74 = sbr.rel (0) target = $region37
    $region36: #{tpu_custom_call.1} parent=1 // pred_region
      %75 = dma.done [#allocation7], 8192
    $region37: #{tpu_custom_call.1} parent=1 // pred_fallthru
      _
    // Predicated region
    $region38: #{tpu_custom_call.1} parent=1 // pred_check
      _
    $region39: #{tpu_custom_call.1} parent=1 // pred_check_branch
      %77 = sbr.rel (0) target = $region41
    $region40: #{tpu_custom_call.1} parent=1 // pred_region
      %78 = dma.done [#allocation10], 2048
    $region41: #{tpu_custom_call.1} parent=1 // pred_fallthru
      _
    %v79 = vld [vmem:[#allocation3] sm:$0xff]
    %v80 = vld [vmem:[#allocation3 + $0x8] sm:$0xff]
    %v81 = vld [vmem:[#allocation3 + $0x10] sm:$0xff]
    %v82 = vld [vmem:[#allocation3 + $0x18] sm:$0xff]
    %v83 = vld [vmem:[#allocation3 + $0x20] sm:$0xff]
    %v84 = vld [vmem:[#allocation3 + $0x28] sm:$0xff]
    %v85 = vld [vmem:[#allocation3 + $0x30] sm:$0xff]
    %v86 = vld [vmem:[#allocation3 + $0x38] sm:$0xff]
    %v87 = vld [vmem:[#allocation3 + $0x40] sm:$0xff]
    %v88 = vld [vmem:[#allocation3 + $0x48] sm:$0xff]
    %v89 = vld [vmem:[#allocation3 + $0x50] sm:$0xff]
    %v90 = vld [vmem:[#allocation3 + $0x58] sm:$0xff]
    %v91 = vld [vmem:[#allocation3 + $0x60] sm:$0xff]
    %v92 = vld [vmem:[#allocation3 + $0x68] sm:$0xff]
    %v93 = vld [vmem:[#allocation3 + $0x70] sm:$0xff]
    %v94 = vld [vmem:[#allocation3 + $0x78] sm:$0xff]
    %v95 = vld [vmem:[#allocation3 + $0x80] sm:$0xff]
    %v96 = vld [vmem:[#allocation3 + $0x88] sm:$0xff]
    %v97 = vld [vmem:[#allocation3 + $0x90] sm:$0xff]
    %v98 = vld [vmem:[#allocation3 + $0x98] sm:$0xff]
    %v99 = vld [vmem:[#allocation6] sm:$0xff]
    %v100 = vld [vmem:[#allocation6 + $0x8] sm:$0xff]
    %v101 = vld [vmem:[#allocation6 + $0x10] sm:$0xff]
    %v102 = vld [vmem:[#allocation6 + $0x18] sm:$0xff]
    %v103 = vld [vmem:[#allocation6 + $0x20] sm:$0xff]
    %v104 = vld [vmem:[#allocation6 + $0x28] sm:$0xff]
    %v105 = vld [vmem:[#allocation6 + $0x30] sm:$0xff]
    %v106 = vld [vmem:[#allocation6 + $0x38] sm:$0xff]
    %v107 = vld [vmem:[#allocation6 + $0x40] sm:$0xff]
    %v108 = vld [vmem:[#allocation6 + $0x48] sm:$0xff]
    %v109 = vld [vmem:[#allocation6 + $0x50] sm:$0xff]
    %v110 = vld [vmem:[#allocation6 + $0x58] sm:$0xff]
    %v111 = vld [vmem:[#allocation6 + $0x60] sm:$0xff]
    %v112 = vld [vmem:[#allocation6 + $0x68] sm:$0xff]
    %v113 = vld [vmem:[#allocation6 + $0x70] sm:$0xff]
    %v114 = vld [vmem:[#allocation6 + $0x78] sm:$0xff]
    %v115 = vld [vmem:[#allocation6 + $0x80] sm:$0xff]
    %v116 = vld [vmem:[#allocation6 + $0x88] sm:$0xff]
    %v117 = vld [vmem:[#allocation6 + $0x90] sm:$0xff]
    %v118 = vld [vmem:[#allocation6 + $0x98] sm:$0xff]
    %v119 = vld [vmem:[#allocation6 + $0xa0] sm:$0xff]
    %v120 = vld [vmem:[#allocation6 + $0xa8] sm:$0xff]
    %v121 = vld [vmem:[#allocation6 + $0xb0] sm:$0xff]
    %v122 = vld [vmem:[#allocation6 + $0xb8] sm:$0xff]
    %v123 = vld [vmem:[#allocation6 + $0xc0] sm:$0xff]
    %v124 = vld [vmem:[#allocation6 + $0xc8] sm:$0xff]
    %v125 = vld [vmem:[#allocation6 + $0xd0] sm:$0xff]
    %v126 = vld [vmem:[#allocation6 + $0xd8] sm:$0xff]
    %v127 = vld [vmem:[#allocation6 + $0xe0] sm:$0xff]
    %v128 = vld [vmem:[#allocation6 + $0xe8] sm:$0xff]
    %v129 = vld [vmem:[#allocation6 + $0xf0] sm:$0xff]
    %v130 = vld [vmem:[#allocation6 + $0xf8] sm:$0xff]
    %v131 = vld [vmem:[#allocation6 + $0x100] sm:$0xff]
    %v132 = vld [vmem:[#allocation6 + $0x108] sm:$0xff]
    %v133 = vld [vmem:[#allocation6 + $0x110] sm:$0xff]
    %v134 = vld [vmem:[#allocation6 + $0x118] sm:$0xff]
    %v135 = vld [vmem:[#allocation6 + $0x120] sm:$0xff]
    %v136 = vld [vmem:[#allocation6 + $0x128] sm:$0xff]
    %v137 = vld [vmem:[#allocation6 + $0x130] sm:$0xff]
    %v138 = vld [vmem:[#allocation6 + $0x138] sm:$0xff]
    %v139 = vld [vmem:[#allocation6 + $0x140] sm:$0xff]
    %v140 = vld [vmem:[#allocation6 + $0x148] sm:$0xff]
    %v141 = vld [vmem:[#allocation6 + $0x150] sm:$0xff]
    %v142 = vld [vmem:[#allocation6 + $0x158] sm:$0xff]
    %v143 = vld [vmem:[#allocation6 + $0x160] sm:$0xff]
    %v144 = vld [vmem:[#allocation6 + $0x168] sm:$0xff]
    %v145 = vld [vmem:[#allocation6 + $0x170] sm:$0xff]
    %v146 = vld [vmem:[#allocation6 + $0x178] sm:$0xff]
    %v147 = vld [vmem:[#allocation6 + $0x180] sm:$0xff]
    %v148 = vld [vmem:[#allocation6 + $0x188] sm:$0xff]
    %v149 = vld [vmem:[#allocation6 + $0x190] sm:$0xff]
    %v150 = vld [vmem:[#allocation6 + $0x198] sm:$0xff]
    %v151 = vld [vmem:[#allocation6 + $0x1a0] sm:$0xff]
    %v152 = vld [vmem:[#allocation6 + $0x1a8] sm:$0xff]
    %v153 = vld [vmem:[#allocation6 + $0x1b0] sm:$0xff]
    %v154 = vld [vmem:[#allocation6 + $0x1b8] sm:$0xff]
    %v155 = vld [vmem:[#allocation6 + $0x1c0] sm:$0xff]
    %v156 = vld [vmem:[#allocation6 + $0x1c8] sm:$0xff]
    %v157 = vld [vmem:[#allocation6 + $0x1d0] sm:$0xff]
    %v158 = vld [vmem:[#allocation6 + $0x1d8] sm:$0xff]
    %v159 = vld [vmem:[#allocation6 + $0x1e0] sm:$0xff]
    %v160 = vld [vmem:[#allocation6 + $0x1e8] sm:$0xff]
    %v161 = vld [vmem:[#allocation6 + $0x1f0] sm:$0xff]
    %v162 = vld [vmem:[#allocation6 + $0x1f8] sm:$0xff]
    %v163 = vld [vmem:[%s3] sm:$0xf]
    %v165 = vlaneseq
    %v166 = vshrl.u32 %v165, 7
    %v167 = vsub.s32 0, %v166
    %v168 = vrot.slane %v163, %v167
    %v169 = vlaneseq
    %v170 = vshrl.u32 %v169, 7
    %v171 = vsub.s32 1, %v170
    %v172 = vrot.slane %v163, %v171
    %v173 = vlaneseq
    %v174 = vshrl.u32 %v173, 7
    %v175 = vsub.s32 2, %v174
    %v176 = vrot.slane %v163, %v175
    %v177 = vlaneseq
    %v178 = vshrl.u32 %v177, 7
    %v179 = vsub.s32 3, %v178
    %v180 = vrot.slane %v163, %v179
    %185 = vmatprep.subr.mxu0 %v100
    %186 = vmatpush1.msra.mxu0 %v99
    %187 = vmatprep.subr.mxu0 %v104
    %188 = vmatpush1.msra.mxu0 %v103
    %189 = vmatprep.subr.mxu0 %v108
    %190 = vmatpush1.msra.mxu0 %v107
    %191 = vmatprep.subr.mxu0 %v112
    %192 = vmatpush1.msra.mxu0 %v111
    %193 = vmatprep.subr.mxu0 %v116
    %194 = vmatpush1.msra.mxu0 %v115
    %195 = vmatprep.subr.mxu0 %v120
    %196 = vmatpush1.msra.mxu0 %v119
    %197 = vmatprep.subr.mxu0 %v124
    %198 = vmatpush1.msra.mxu0 %v123
    %199 = vmatprep.subr.mxu0 %v128
    %200 = vmatpush1.msra.mxu0 %v127
    %201 = vmatprep.subr.mxu0 %v132
    %202 = vmatpush1.msra.mxu0 %v131
    %203 = vmatprep.subr.mxu0 %v136
    %204 = vmatpush1.msra.mxu0 %v135
    %205 = vmatprep.subr.mxu0 %v140
    %206 = vmatpush1.msra.mxu0 %v139
    %207 = vmatprep.subr.mxu0 %v144
    %208 = vmatpush1.msra.mxu0 %v143
    %209 = vmatprep.subr.mxu0 %v148
    %210 = vmatpush1.msra.mxu0 %v147
    %211 = vmatprep.subr.mxu0 %v152
    %212 = vmatpush1.msra.mxu0 %v151
    %213 = vmatprep.subr.mxu0 %v156
    %214 = vmatpush1.msra.mxu0 %v155
    %215 = vmatprep.subr.mxu0 %v160
    %216 = vmatpush1.msra.mxu0 %v159
    %217 = vmatprep.subr.mxu0 0.0
    %218 = vmatpush1.msra.mxu0 0.0
    %219 = vmatprep.subr.mxu0 0.0
    %220 = vmatpush1.msra.mxu0 0.0
    %221 = vmatprep.subr.mxu0 0.0
    %222 = vmatpush1.msra.mxu0 0.0
    %223 = vmatprep.subr.mxu0 0.0
    %224 = vmatpush1.msra.mxu0 0.0
    %225 = vmatprep.subr.mxu0 0.0
    %226 = vmatpush1.msra.mxu0 0.0
    %227 = vmatprep.subr.mxu0 0.0
    %228 = vmatpush1.msra.mxu0 0.0
    %229 = vmatprep.subr.mxu0 0.0
    %230 = vmatpush1.msra.mxu0 0.0
    %231 = vmatprep.subr.mxu0 0.0
    %232 = vmatpush1.msra.mxu0 0.0
    %233 = vmatprep.subr.mxu0 0.0
    %234 = vmatpush1.msra.mxu0 0.0
    %235 = vmatprep.subr.mxu0 0.0
    %236 = vmatpush1.msra.mxu0 0.0
    %237 = vmatprep.subr.mxu0 0.0
    %238 = vmatpush1.msra.mxu0 0.0
    %239 = vmatprep.subr.mxu0 0.0
    %240 = vmatpush1.msra.mxu0 0.0
    %241 = vmatprep.subr.mxu0 0.0
    %242 = vmatpush1.msra.mxu0 0.0
    %243 = vmatprep.subr.mxu0 0.0
    %244 = vmatpush1.msra.mxu0 0.0
    %245 = vmatprep.subr.mxu0 0.0
    %246 = vmatpush1.msra.mxu0 0.0
    %247 = vmatprep.subr.mxu0 0.0
    %248 = vmatpush1.msra.mxu0 0.0
    %249 = vmatprep.mubr.f32.mxu0 0.0
    %250 = vmatmul.mubr.f32.gmra.mrb[0].mxu0 %v79
    %v251 = vpop.f32.mrb[0].mxu0
    %v252 = vadd.f32 %v168, %v251
    %v253 = vpop.f32.mrb[0].mxu0
    %v254 = vadd.f32 %v172, %v253
    %255 = vmatprep.mubr.f32.mxu0 0.0
    %256 = vmatmul.mubr.f32.gmra.mrb[0].mxu0 %v80
    %v257 = vpop.f32.mrb[0].mxu0
    %v258 = vadd.f32 %v168, %v257
    %v259 = vpop.f32.mrb[0].mxu0
    %v260 = vadd.f32 %v172, %v259
    %261 = vmatprep.mubr.f32.mxu0 0.0
    %262 = vmatmul.mubr.f32.gmra.mrb[0].mxu0 %v81
    %v263 = vpop.f32.mrb[0].mxu0
    %v264 = vadd.f32 %v168, %v263
    %v265 = vpop.f32.mrb[0].mxu0
    %v266 = vadd.f32 %v172, %v265
    %267 = vmatprep.mubr.f32.mxu0 0.0
    %268 = vmatmul.mubr.f32.gmra.mrb[0].mxu0 %v82
    %v269 = vpop.f32.mrb[0].mxu0
    %v270 = vadd.f32 %v168, %v269
    %v271 = vpop.f32.mrb[0].mxu0
    %v272 = vadd.f32 %v172, %v271
    %273 = vmatprep.mubr.f32.mxu0 0.0
    %274 = vmatmul.mubr.f32.gmra.mrb[0].mxu0 %v83
    %v275 = vpop.f32.mrb[0].mxu0
    %v276 = vadd.f32 %v168, %v275
    %v277 = vpop.f32.mrb[0].mxu0
    %v278 = vadd.f32 %v172, %v277
    %279 = vmatprep.mubr.f32.mxu0 0.0
    %280 = vmatmul.mubr.f32.gmra.mrb[0].mxu0 %v84
    %v281 = vpop.f32.mrb[0].mxu0
    %v282 = vadd.f32 %v168, %v281
    %v283 = vpop.f32.mrb[0].mxu0
    %v284 = vadd.f32 %v172, %v283
    %285 = vmatprep.mubr.f32.mxu0 0.0
    %286 = vmatmul.mubr.f32.gmra.mrb[0].mxu0 %v85
    %v287 = vpop.f32.mrb[0].mxu0
    %v288 = vadd.f32 %v168, %v287
    %v289 = vpop.f32.mrb[0].mxu0
    %v290 = vadd.f32 %v172, %v289
    %291 = vmatprep.mubr.f32.mxu0 0.0
    %292 = vmatmul.mubr.f32.gmra.mrb[0].mxu0 %v86
    %v293 = vpop.f32.mrb[0].mxu0
    %v294 = vadd.f32 %v168, %v293
    %v295 = vpop.f32.mrb[0].mxu0
    %v296 = vadd.f32 %v172, %v295
    %297 = vmatprep.mubr.f32.mxu0 0.0
    %298 = vmatmul.mubr.f32.gmra.mrb[0].mxu0 %v87
    %v299 = vpop.f32.mrb[0].mxu0
    %v300 = vadd.f32 %v168, %v299
    %v301 = vpop.f32.mrb[0].mxu0
    %v302 = vadd.f32 %v172, %v301
    %303 = vmatprep.mubr.f32.mxu0 0.0
    %304 = vmatmul.mubr.f32.gmra.mrb[0].mxu0 %v88
    %v305 = vpop.f32.mrb[0].mxu0
    %v306 = vadd.f32 %v168, %v305
    %v307 = vpop.f32.mrb[0].mxu0
    %v308 = vadd.f32 %v172, %v307
    %309 = vmatprep.mubr.f32.mxu0 0.0
    %310 = vmatmul.mubr.f32.gmra.mrb[0].mxu0 %v89
    %v311 = vpop.f32.mrb[0].mxu0
    %v312 = vadd.f32 %v168, %v311
    %v313 = vpop.f32.mrb[0].mxu0
    %v314 = vadd.f32 %v172, %v313
    %315 = vmatprep.mubr.f32.mxu0 0.0
    %316 = vmatmul.mubr.f32.gmra.mrb[0].mxu0 %v90
    %v317 = vpop.f32.mrb[0].mxu0
    %v318 = vadd.f32 %v168, %v317
    %v319 = vpop.f32.mrb[0].mxu0
    %v320 = vadd.f32 %v172, %v319
    %321 = vmatprep.mubr.f32.mxu0 0.0
    %322 = vmatmul.mubr.f32.gmra.mrb[0].mxu0 %v91
    %v323 = vpop.f32.mrb[0].mxu0
    %v324 = vadd.f32 %v168, %v323
    %v325 = vpop.f32.mrb[0].mxu0
    %v326 = vadd.f32 %v172, %v325
    %327 = vmatprep.mubr.f32.mxu0 0.0
    %328 = vmatmul.mubr.f32.gmra.mrb[0].mxu0 %v92
    %v329 = vpop.f32.mrb[0].mxu0
    %v330 = vadd.f32 %v168, %v329
    %v331 = vpop.f32.mrb[0].mxu0
    %v332 = vadd.f32 %v172, %v331
    %333 = vmatprep.mubr.f32.mxu0 0.0
    %334 = vmatmul.mubr.f32.gmra.mrb[0].mxu0 %v93
    %v335 = vpop.f32.mrb[0].mxu0
    %v336 = vadd.f32 %v168, %v335
    %v337 = vpop.f32.mrb[0].mxu0
    %v338 = vadd.f32 %v172, %v337
    %339 = vmatprep.mubr.f32.mxu0 0.0
    %340 = vmatmul.mubr.f32.gmra.mrb[0].mxu0 %v94
    %v341 = vpop.f32.mrb[0].mxu0
    %v342 = vadd.f32 %v168, %v341
    %v343 = vpop.f32.mrb[0].mxu0
    %v344 = vadd.f32 %v172, %v343
    %345 = vmatprep.mubr.f32.mxu0 0.0
    %346 = vmatmul.mubr.f32.gmra.mrb[0].mxu0 %v95
    %v347 = vpop.f32.mrb[0].mxu0
    %v348 = vadd.f32 %v168, %v347
    %v349 = vpop.f32.mrb[0].mxu0
    %v350 = vadd.f32 %v172, %v349
    %351 = vmatprep.mubr.f32.mxu0 0.0
    %352 = vmatmul.mubr.f32.gmra.mrb[0].mxu0 %v96
    %v353 = vpop.f32.mrb[0].mxu0
    %v354 = vadd.f32 %v168, %v353
    %v355 = vpop.f32.mrb[0].mxu0
    %v356 = vadd.f32 %v172, %v355
    %357 = vmatprep.mubr.f32.mxu0 0.0
    %358 = vmatmul.mubr.f32.gmra.mrb[0].mxu0 %v97
    %v359 = vpop.f32.mrb[0].mxu0
    %v360 = vadd.f32 %v168, %v359
    %v361 = vpop.f32.mrb[0].mxu0
    %v362 = vadd.f32 %v172, %v361
    %363 = vmatprep.mubr.f32.mxu0 0.0
    %364 = vmatmul.mubr.f32.gmra.mrb[0].mxu0 %v98
    %v365 = vpop.f32.mrb[0].mxu0
    %v366 = vadd.f32 %v168, %v365
    %v367 = vpop.f32.mrb[0].mxu0
    %v368 = vadd.f32 %v172, %v367
    %369 = vdwg.mxu0
    %370 = vmatprep.subr.mxu0 %v102
    %371 = vmatpush1.msra.mxu0 %v101
    %372 = vmatprep.subr.mxu0 %v106
    %373 = vmatpush1.msra.mxu0 %v105
    %374 = vmatprep.subr.mxu0 %v110
    %375 = vmatpush1.msra.mxu0 %v109
    %376 = vmatprep.subr.mxu0 %v114
    %377 = vmatpush1.msra.mxu0 %v113
    %378 = vmatprep.subr.mxu0 %v118
    %379 = vmatpush1.msra.mxu0 %v117
    %380 = vmatprep.subr.mxu0 %v122
    %381 = vmatpush1.msra.mxu0 %v121
    %382 = vmatprep.subr.mxu0 %v126
    %383 = vmatpush1.msra.mxu0 %v125
    %384 = vmatprep.subr.mxu0 %v130
    %385 = vmatpush1.msra.mxu0 %v129
    %386 = vmatprep.subr.mxu0 %v134
    %387 = vmatpush1.msra.mxu0 %v133
    %388 = vmatprep.subr.mxu0 %v138
    %389 = vmatpush1.msra.mxu0 %v137
    %390 = vmatprep.subr.mxu0 %v142
    %391 = vmatpush1.msra.mxu0 %v141
    %392 = vmatprep.subr.mxu0 %v146
    %393 = vmatpush1.msra.mxu0 %v145
    %394 = vmatprep.subr.mxu0 %v150
    %395 = vmatpush1.msra.mxu0 %v149
    %396 = vmatprep.subr.mxu0 %v154
    %397 = vmatpush1.msra.mxu0 %v153
    %398 = vmatprep.subr.mxu0 %v158
    %399 = vmatpush1.msra.mxu0 %v157
    %400 = vmatprep.subr.mxu0 %v162
    %401 = vmatpush1.msra.mxu0 %v161
    %402 = vmatprep.subr.mxu0 0.0
    %403 = vmatpush1.msra.mxu0 0.0
    %404 = vmatprep.subr.mxu0 0.0
    %405 = vmatpush1.msra.mxu0 0.0
    %406 = vmatprep.subr.mxu0 0.0
    %407 = vmatpush1.msra.mxu0 0.0
    %408 = vmatprep.subr.mxu0 0.0
    %409 = vmatpush1.msra.mxu0 0.0
    %410 = vmatprep.subr.mxu0 0.0
    %411 = vmatpush1.msra.mxu0 0.0
    %412 = vmatprep.subr.mxu0 0.0
    %413 = vmatpush1.msra.mxu0 0.0
    %414 = vmatprep.subr.mxu0 0.0
    %415 = vmatpush1.msra.mxu0 0.0
    %416 = vmatprep.subr.mxu0 0.0
    %417 = vmatpush1.msra.mxu0 0.0
    %418 = vmatprep.subr.mxu0 0.0
    %419 = vmatpush1.msra.mxu0 0.0
    %420 = vmatprep.subr.mxu0 0.0
    %421 = vmatpush1.msra.mxu0 0.0
    %422 = vmatprep.subr.mxu0 0.0
    %423 = vmatpush1.msra.mxu0 0.0
    %424 = vmatprep.subr.mxu0 0.0
    %425 = vmatpush1.msra.mxu0 0.0
    %426 = vmatprep.subr.mxu0 0.0
    %427 = vmatpush1.msra.mxu0 0.0
    %428 = vmatprep.subr.mxu0 0.0
    %429 = vmatpush1.msra.mxu0 0.0
    %430 = vmatprep.subr.mxu0 0.0
    %431 = vmatpush1.msra.mxu0 0.0
    %432 = vmatprep.subr.mxu0 0.0
    %433 = vmatpush1.msra.mxu0 0.0
    %434 = vmatprep.mubr.f32.mxu0 0.0
    %435 = vmatmul.mubr.f32.gmra.mrb[0].mxu0 %v79
    %v436 = vpop.f32.mrb[0].mxu0
    %v437 = vadd.f32 %v176, %v436
    %v438 = vpop.f32.mrb[0].mxu0
    %v439 = vadd.f32 %v180, %v438
    %440 = vmatprep.mubr.f32.mxu0 0.0
    %441 = vmatmul.mubr.f32.gmra.mrb[0].mxu0 %v80
    %v442 = vpop.f32.mrb[0].mxu0
    %v443 = vadd.f32 %v176, %v442
    %v444 = vpop.f32.mrb[0].mxu0
    %v445 = vadd.f32 %v180, %v444
    %446 = vmatprep.mubr.f32.mxu0 0.0
    %447 = vmatmul.mubr.f32.gmra.mrb[0].mxu0 %v81
    %v448 = vpop.f32.mrb[0].mxu0
    %v449 = vadd.f32 %v176, %v448
    %v450 = vpop.f32.mrb[0].mxu0
    %v451 = vadd.f32 %v180, %v450
    %452 = vmatprep.mubr.f32.mxu0 0.0
    %453 = vmatmul.mubr.f32.gmra.mrb[0].mxu0 %v82
    %v454 = vpop.f32.mrb[0].mxu0
    %v455 = vadd.f32 %v176, %v454
    %v456 = vpop.f32.mrb[0].mxu0
    %v457 = vadd.f32 %v180, %v456
    %458 = vmatprep.mubr.f32.mxu0 0.0
    %459 = vmatmul.mubr.f32.gmra.mrb[0].mxu0 %v83
    %v460 = vpop.f32.mrb[0].mxu0
    %v461 = vadd.f32 %v176, %v460
    %v462 = vpop.f32.mrb[0].mxu0
    %v463 = vadd.f32 %v180, %v462
    %464 = vmatprep.mubr.f32.mxu0 0.0
    %465 = vmatmul.mubr.f32.gmra.mrb[0].mxu0 %v84
    %v466 = vpop.f32.mrb[0].mxu0
    %v467 = vadd.f32 %v176, %v466
    %v468 = vpop.f32.mrb[0].mxu0
    %v469 = vadd.f32 %v180, %v468
    %470 = vmatprep.mubr.f32.mxu0 0.0
    %471 = vmatmul.mubr.f32.gmra.mrb[0].mxu0 %v85
    %v472 = vpop.f32.mrb[0].mxu0
    %v473 = vadd.f32 %v176, %v472
    %v474 = vpop.f32.mrb[0].mxu0
    %v475 = vadd.f32 %v180, %v474
    %476 = vmatprep.mubr.f32.mxu0 0.0
    %477 = vmatmul.mubr.f32.gmra.mrb[0].mxu0 %v86
    %v478 = vpop.f32.mrb[0].mxu0
    %v479 = vadd.f32 %v176, %v478
    %v480 = vpop.f32.mrb[0].mxu0
    %v481 = vadd.f32 %v180, %v480
    %482 = vmatprep.mubr.f32.mxu0 0.0
    %483 = vmatmul.mubr.f32.gmra.mrb[0].mxu0 %v87
    %v484 = vpop.f32.mrb[0].mxu0
    %v485 = vadd.f32 %v176, %v484
    %v486 = vpop.f32.mrb[0].mxu0
    %v487 = vadd.f32 %v180, %v486
    %488 = vmatprep.mubr.f32.mxu0 0.0
    %489 = vmatmul.mubr.f32.gmra.mrb[0].mxu0 %v88
    %v490 = vpop.f32.mrb[0].mxu0
    %v491 = vadd.f32 %v176, %v490
    %v492 = vpop.f32.mrb[0].mxu0
    %v493 = vadd.f32 %v180, %v492
    %494 = vmatprep.mubr.f32.mxu0 0.0
    %495 = vmatmul.mubr.f32.gmra.mrb[0].mxu0 %v89
    %v496 = vpop.f32.mrb[0].mxu0
    %v497 = vadd.f32 %v176, %v496
    %v498 = vpop.f32.mrb[0].mxu0
    %v499 = vadd.f32 %v180, %v498
    %500 = vmatprep.mubr.f32.mxu0 0.0
    %501 = vmatmul.mubr.f32.gmra.mrb[0].mxu0 %v90
    %v502 = vpop.f32.mrb[0].mxu0
    %v503 = vadd.f32 %v176, %v502
    %v504 = vpop.f32.mrb[0].mxu0
    %v505 = vadd.f32 %v180, %v504
    %506 = vmatprep.mubr.f32.mxu0 0.0
    %507 = vmatmul.mubr.f32.gmra.mrb[0].mxu0 %v91
    %v508 = vpop.f32.mrb[0].mxu0
    %v509 = vadd.f32 %v176, %v508
    %v510 = vpop.f32.mrb[0].mxu0
    %v511 = vadd.f32 %v180, %v510
    %512 = vmatprep.mubr.f32.mxu0 0.0
    %513 = vmatmul.mubr.f32.gmra.mrb[0].mxu0 %v92
    %v514 = vpop.f32.mrb[0].mxu0
    %v515 = vadd.f32 %v176, %v514
    %v516 = vpop.f32.mrb[0].mxu0
    %v517 = vadd.f32 %v180, %v516
    %518 = vmatprep.mubr.f32.mxu0 0.0
    %519 = vmatmul.mubr.f32.gmra.mrb[0].mxu0 %v93
    %v520 = vpop.f32.mrb[0].mxu0
    %v521 = vadd.f32 %v176, %v520
    %v522 = vpop.f32.mrb[0].mxu0
    %v523 = vadd.f32 %v180, %v522
    %524 = vmatprep.mubr.f32.mxu0 0.0
    %525 = vmatmul.mubr.f32.gmra.mrb[0].mxu0 %v94
    %v526 = vpop.f32.mrb[0].mxu0
    %v527 = vadd.f32 %v176, %v526
    %v528 = vpop.f32.mrb[0].mxu0
    %v529 = vadd.f32 %v180, %v528
    %530 = vmatprep.mubr.f32.mxu0 0.0
    %531 = vmatmul.mubr.f32.gmra.mrb[0].mxu0 %v95
    %v532 = vpop.f32.mrb[0].mxu0
    %v533 = vadd.f32 %v176, %v532
    %v534 = vpop.f32.mrb[0].mxu0
    %v535 = vadd.f32 %v180, %v534
    %536 = vmatprep.mubr.f32.mxu0 0.0
    %537 = vmatmul.mubr.f32.gmra.mrb[0].mxu0 %v96
    %v538 = vpop.f32.mrb[0].mxu0
    %v539 = vadd.f32 %v176, %v538
    %v540 = vpop.f32.mrb[0].mxu0
    %v541 = vadd.f32 %v180, %v540
    %542 = vmatprep.mubr.f32.mxu0 0.0
    %543 = vmatmul.mubr.f32.gmra.mrb[0].mxu0 %v97
    %v544 = vpop.f32.mrb[0].mxu0
    %v545 = vadd.f32 %v176, %v544
    %v546 = vpop.f32.mrb[0].mxu0
    %v547 = vadd.f32 %v180, %v546
    %548 = vmatprep.mubr.f32.mxu0 0.0
    %549 = vmatmul.mubr.f32.gmra.mrb[0].mxu0 %v98
    %v550 = vpop.f32.mrb[0].mxu0
    %v551 = vadd.f32 %v176, %v550
    %v552 = vpop.f32.mrb[0].mxu0
    %v553 = vadd.f32 %v180, %v552
    %554 = vdwg.mxu0
    %555 = vst [vmem:[#allocation2] sm:$0xff] %v252
    %556 = vst [vmem:[#allocation2 + $0x8] sm:$0xff] %v254
    %557 = vst [vmem:[#allocation2 + $0x10] sm:$0xff] %v437
    %558 = vst [vmem:[#allocation2 + $0x18] sm:$0xff] %v439
    %559 = vst [vmem:[#allocation2 + $0x20] sm:$0xff] %v258
    %560 = vst [vmem:[#allocation2 + $0x28] sm:$0xff] %v260
    %561 = vst [vmem:[#allocation2 + $0x30] sm:$0xff] %v443
    %562 = vst [vmem:[#allocation2 + $0x38] sm:$0xff] %v445
    %563 = vst [vmem:[#allocation2 + $0x40] sm:$0xff] %v264
    %564 = vst [vmem:[#allocation2 + $0x48] sm:$0xff] %v266
    %565 = vst [vmem:[#allocation2 + $0x50] sm:$0xff] %v449
    %566 = vst [vmem:[#allocation2 + $0x58] sm:$0xff] %v451
    %567 = vst [vmem:[#allocation2 + $0x60] sm:$0xff] %v270
    %568 = vst [vmem:[#allocation2 + $0x68] sm:$0xff] %v272
    %569 = vst [vmem:[#allocation2 + $0x70] sm:$0xff] %v455
    %570 = vst [vmem:[#allocation2 + $0x78] sm:$0xff] %v457
    %571 = vst [vmem:[#allocation2 + $0x80] sm:$0xff] %v276
    %572 = vst [vmem:[#allocation2 + $0x88] sm:$0xff] %v278
    %573 = vst [vmem:[#allocation2 + $0x90] sm:$0xff] %v461
    %574 = vst [vmem:[#allocation2 + $0x98] sm:$0xff] %v463
    %575 = vst [vmem:[#allocation2 + $0xa0] sm:$0xff] %v282
    %576 = vst [vmem:[#allocation2 + $0xa8] sm:$0xff] %v284
    %577 = vst [vmem:[#allocation2 + $0xb0] sm:$0xff] %v467
    %578 = vst [vmem:[#allocation2 + $0xb8] sm:$0xff] %v469
    %579 = vst [vmem:[#allocation2 + $0xc0] sm:$0xff] %v288
    %580 = vst [vmem:[#allocation2 + $0xc8] sm:$0xff] %v290
    %581 = vst [vmem:[#allocation2 + $0xd0] sm:$0xff] %v473
    %582 = vst [vmem:[#allocation2 + $0xd8] sm:$0xff] %v475
    %583 = vst [vmem:[#allocation2 + $0xe0] sm:$0xff] %v294
    %584 = vst [vmem:[#allocation2 + $0xe8] sm:$0xff] %v296
    %585 = vst [vmem:[#allocation2 + $0xf0] sm:$0xff] %v479
    %586 = vst [vmem:[#allocation2 + $0xf8] sm:$0xff] %v481
    %587 = vst [vmem:[#allocation2 + $0x100] sm:$0xff] %v300
    %588 = vst [vmem:[#allocation2 + $0x108] sm:$0xff] %v302
    %589 = vst [vmem:[#allocation2 + $0x110] sm:$0xff] %v485
    %590 = vst [vmem:[#allocation2 + $0x118] sm:$0xff] %v487
    %591 = vst [vmem:[#allocation2 + $0x120] sm:$0xff] %v306
    %592 = vst [vmem:[#allocation2 + $0x128] sm:$0xff] %v308
    %593 = vst [vmem:[#allocation2 + $0x130] sm:$0xff] %v491
    %594 = vst [vmem:[#allocation2 + $0x138] sm:$0xff] %v493
    %595 = vst [vmem:[#allocation2 + $0x140] sm:$0xff] %v312
    %596 = vst [vmem:[#allocation2 + $0x148] sm:$0xff] %v314
    %597 = vst [vmem:[#allocation2 + $0x150] sm:$0xff] %v497
    %598 = vst [vmem:[#allocation2 + $0x158] sm:$0xff] %v499
    %599 = vst [vmem:[#allocation2 + $0x160] sm:$0xff] %v318
    %600 = vst [vmem:[#allocation2 + $0x168] sm:$0xff] %v320
    %601 = vst [vmem:[#allocation2 + $0x170] sm:$0xff] %v503
    %602 = vst [vmem:[#allocation2 + $0x178] sm:$0xff] %v505
    %603 = vst [vmem:[#allocation2 + $0x180] sm:$0xff] %v324
    %604 = vst [vmem:[#allocation2 + $0x188] sm:$0xff] %v326
    %605 = vst [vmem:[#allocation2 + $0x190] sm:$0xff] %v509
    %606 = vst [vmem:[#allocation2 + $0x198] sm:$0xff] %v511
    %607 = vst [vmem:[#allocation2 + $0x1a0] sm:$0xff] %v330
    %608 = vst [vmem:[#allocation2 + $0x1a8] sm:$0xff] %v332
    %609 = vst [vmem:[#allocation2 + $0x1b0] sm:$0xff] %v515
    %610 = vst [vmem:[#allocation2 + $0x1b8] sm:$0xff] %v517
    %611 = vst [vmem:[#allocation2 + $0x1c0] sm:$0xff] %v336
    %612 = vst [vmem:[#allocation2 + $0x1c8] sm:$0xff] %v338
    %613 = vst [vmem:[#allocation2 + $0x1d0] sm:$0xff] %v521
    %614 = vst [vmem:[#allocation2 + $0x1d8] sm:$0xff] %v523
    %615 = vst [vmem:[#allocation2 + $0x1e0] sm:$0xff] %v342
    %616 = vst [vmem:[#allocation2 + $0x1e8] sm:$0xff] %v344
    %617 = vst [vmem:[#allocation2 + $0x1f0] sm:$0xff] %v527
    %618 = vst [vmem:[#allocation2 + $0x1f8] sm:$0xff] %v529
    %619 = vst [vmem:[#allocation2 + $0x200] sm:$0xff] %v348
    %620 = vst [vmem:[#allocation2 + $0x208] sm:$0xff] %v350
    %621 = vst [vmem:[#allocation2 + $0x210] sm:$0xff] %v533
    %622 = vst [vmem:[#allocation2 + $0x218] sm:$0xff] %v535
    %623 = vst [vmem:[#allocation2 + $0x220] sm:$0xff] %v354
    %624 = vst [vmem:[#allocation2 + $0x228] sm:$0xff] %v356
    %625 = vst [vmem:[#allocation2 + $0x230] sm:$0xff] %v539
    %626 = vst [vmem:[#allocation2 + $0x238] sm:$0xff] %v541
    %627 = vst [vmem:[#allocation2 + $0x240] sm:$0xff] %v360
    %628 = vst [vmem:[#allocation2 + $0x248] sm:$0xff] %v362
    %629 = vst [vmem:[#allocation2 + $0x250] sm:$0xff] %v545
    %630 = vst [vmem:[#allocation2 + $0x258] sm:$0xff] %v547
    %631 = vst [vmem:[#allocation2 + $0x260] sm:$0xff] %v366
    %632 = vst [vmem:[#allocation2 + $0x268] sm:$0xff] %v368
    %633 = vst [vmem:[#allocation2 + $0x270] sm:$0xff] %v551
    %634 = vst [vmem:[#allocation2 + $0x278] sm:$0xff] %v553
    %v635 = vld [vmem:[#allocation2] sm:$0xff]
    %v636 = vld [vmem:[#allocation2 + $0x8] sm:$0xff]
    %v637 = vld [vmem:[#allocation2 + $0x10] sm:$0xff]
    %v638 = vld [vmem:[#allocation2 + $0x18] sm:$0xff]
    %v639 = vld [vmem:[#allocation8] sm:$0xff]
    %v640 = vld [vmem:[#allocation8 + $0x8] sm:$0xff]
    %v641 = vld [vmem:[#allocation8 + $0x10] sm:$0xff]
    %v642 = vld [vmem:[#allocation8 + $0x18] sm:$0xff]
    %v643 = vld [vmem:[#allocation8 + $0x20] sm:$0xff]
    %v644 = vld [vmem:[#allocation8 + $0x28] sm:$0xff]
    %v645 = vld [vmem:[#allocation8 + $0x30] sm:$0xff]
    %v646 = vld [vmem:[#allocation8 + $0x38] sm:$0xff]
    %v647 = vld [vmem:[#allocation8 + $0x40] sm:$0xff]
    %v648 = vld [vmem:[#allocation8 + $0x48] sm:$0xff]
    %v649 = vld [vmem:[#allocation8 + $0x50] sm:$0xff]
    %v650 = vld [vmem:[#allocation8 + $0x58] sm:$0xff]
    %v651 = vld [vmem:[#allocation8 + $0x60] sm:$0xff]
    %v652 = vld [vmem:[#allocation8 + $0x68] sm:$0xff]
    %v653 = vld [vmem:[#allocation8 + $0x70] sm:$0xff]
    %v654 = vld [vmem:[#allocation8 + $0x78] sm:$0xff]
    %v655 = vld [vmem:[#allocation8 + $0x80] sm:$0xff]
    %v656 = vld [vmem:[#allocation8 + $0x88] sm:$0xff]
    %v657 = vld [vmem:[#allocation8 + $0x90] sm:$0xff]
    %v658 = vld [vmem:[#allocation8 + $0x98] sm:$0xff]
    %v659 = vld [vmem:[#allocation8 + $0xa0] sm:$0xff]
    %v660 = vld [vmem:[#allocation8 + $0xa8] sm:$0xff]
    %v661 = vld [vmem:[#allocation8 + $0xb0] sm:$0xff]
    %v662 = vld [vmem:[#allocation8 + $0xb8] sm:$0xff]
    %v663 = vld [vmem:[#allocation8 + $0xc0] sm:$0xff]
    %v664 = vld [vmem:[#allocation8 + $0xc8] sm:$0xff]
    %v665 = vld [vmem:[#allocation8 + $0xd0] sm:$0xff]
    %v666 = vld [vmem:[#allocation8 + $0xd8] sm:$0xff]
    %v667 = vld [vmem:[#allocation8 + $0xe0] sm:$0xff]
    %v668 = vld [vmem:[#allocation8 + $0xe8] sm:$0xff]
    %v669 = vld [vmem:[#allocation8 + $0xf0] sm:$0xff]
    %v670 = vld [vmem:[#allocation8 + $0xf8] sm:$0xff]
    %v671 = vld [vmem:[#allocation8 + $0x100] sm:$0xff]
    %v672 = vld [vmem:[#allocation8 + $0x108] sm:$0xff]
    %v673 = vld [vmem:[#allocation8 + $0x110] sm:$0xff]
    %v674 = vld [vmem:[#allocation8 + $0x118] sm:$0xff]
    %v675 = vld [vmem:[#allocation8 + $0x120] sm:$0xff]
    %v676 = vld [vmem:[#allocation8 + $0x128] sm:$0xff]
    %v677 = vld [vmem:[#allocation8 + $0x130] sm:$0xff]
    %v678 = vld [vmem:[#allocation8 + $0x138] sm:$0xff]
    %v679 = vld [vmem:[#allocation8 + $0x140] sm:$0xff]
    %v680 = vld [vmem:[#allocation8 + $0x148] sm:$0xff]
    %v681 = vld [vmem:[#allocation8 + $0x150] sm:$0xff]
    %v682 = vld [vmem:[#allocation8 + $0x158] sm:$0xff]
    %v683 = vld [vmem:[#allocation8 + $0x160] sm:$0xff]
    %v684 = vld [vmem:[#allocation8 + $0x168] sm:$0xff]
    %v685 = vld [vmem:[#allocation8 + $0x170] sm:$0xff]
    %v686 = vld [vmem:[#allocation8 + $0x178] sm:$0xff]
    %v687 = vld [vmem:[#allocation8 + $0x180] sm:$0xff]
    %v688 = vld [vmem:[#allocation8 + $0x188] sm:$0xff]
    %v689 = vld [vmem:[#allocation8 + $0x190] sm:$0xff]
    %v690 = vld [vmem:[#allocation8 + $0x198] sm:$0xff]
    %v691 = vld [vmem:[#allocation8 + $0x1a0] sm:$0xff]
    %v692 = vld [vmem:[#allocation8 + $0x1a8] sm:$0xff]
    %v693 = vld [vmem:[#allocation8 + $0x1b0] sm:$0xff]
    %v694 = vld [vmem:[#allocation8 + $0x1b8] sm:$0xff]
    %v695 = vld [vmem:[#allocation8 + $0x1c0] sm:$0xff]
    %v696 = vld [vmem:[#allocation8 + $0x1c8] sm:$0xff]
    %v697 = vld [vmem:[#allocation8 + $0x1d0] sm:$0xff]
    %v698 = vld [vmem:[#allocation8 + $0x1d8] sm:$0xff]
    %v699 = vld [vmem:[#allocation8 + $0x1e0] sm:$0xff]
    %v700 = vld [vmem:[#allocation8 + $0x1e8] sm:$0xff]
    %v701 = vld [vmem:[#allocation8 + $0x1f0] sm:$0xff]
    %v702 = vld [vmem:[#allocation8 + $0x1f8] sm:$0xff]
    %703 = vmatprep.subr.mxu0 %v640
    %704 = vmatpush1.msra.mxu0 %v639
    %705 = vmatprep.subr.mxu0 %v644
    %706 = vmatpush1.msra.mxu0 %v643
    %707 = vmatprep.subr.mxu0 %v648
    %708 = vmatpush1.msra.mxu0 %v647
    %709 = vmatprep.subr.mxu0 %v652
    %710 = vmatpush1.msra.mxu0 %v651
    %711 = vmatprep.subr.mxu0 %v656
    %712 = vmatpush1.msra.mxu0 %v655
    %713 = vmatprep.subr.mxu0 %v660
    %714 = vmatpush1.msra.mxu0 %v659
    %715 = vmatprep.subr.mxu0 %v664
    %716 = vmatpush1.msra.mxu0 %v663
    %717 = vmatprep.subr.mxu0 %v668
    %718 = vmatpush1.msra.mxu0 %v667
    %719 = vmatprep.subr.mxu0 %v672
    %720 = vmatpush1.msra.mxu0 %v671
    %721 = vmatprep.subr.mxu0 %v676
    %722 = vmatpush1.msra.mxu0 %v675
    %723 = vmatprep.subr.mxu0 %v680
    %724 = vmatpush1.msra.mxu0 %v679
    %725 = vmatprep.subr.mxu0 %v684
    %726 = vmatpush1.msra.mxu0 %v683
    %727 = vmatprep.subr.mxu0 %v688
    %728 = vmatpush1.msra.mxu0 %v687
    %729 = vmatprep.subr.mxu0 %v692
    %730 = vmatpush1.msra.mxu0 %v691
    %731 = vmatprep.subr.mxu0 %v696
    %732 = vmatpush1.msra.mxu0 %v695
    %733 = vmatprep.subr.mxu0 %v700
    %734 = vmatpush1.msra.mxu0 %v699
    %735 = vmatprep.subr.mxu0 0.0
    %736 = vmatpush1.msra.mxu0 0.0
    %737 = vmatprep.subr.mxu0 0.0
    %738 = vmatpush1.msra.mxu0 0.0
    %739 = vmatprep.subr.mxu0 0.0
    %740 = vmatpush1.msra.mxu0 0.0
    %741 = vmatprep.subr.mxu0 0.0
    %742 = vmatpush1.msra.mxu0 0.0
    %743 = vmatprep.subr.mxu0 0.0
    %744 = vmatpush1.msra.mxu0 0.0
    %745 = vmatprep.subr.mxu0 0.0
    %746 = vmatpush1.msra.mxu0 0.0
    %747 = vmatprep.subr.mxu0 0.0
    %748 = vmatpush1.msra.mxu0 0.0
    %749 = vmatprep.subr.mxu0 0.0
    %750 = vmatpush1.msra.mxu0 0.0
    %751 = vmatprep.subr.mxu0 0.0
    %752 = vmatpush1.msra.mxu0 0.0
    %753 = vmatprep.subr.mxu0 0.0
    %754 = vmatpush1.msra.mxu0 0.0
    %755 = vmatprep.subr.mxu0 0.0
    %756 = vmatpush1.msra.mxu0 0.0
    %757 = vmatprep.subr.mxu0 0.0
    %758 = vmatpush1.msra.mxu0 0.0
    %759 = vmatprep.subr.mxu0 0.0
    %760 = vmatpush1.msra.mxu0 0.0
    %761 = vmatprep.subr.mxu0 0.0
    %762 = vmatpush1.msra.mxu0 0.0
    %763 = vmatprep.subr.mxu0 0.0
    %764 = vmatpush1.msra.mxu0 0.0
    %765 = vmatprep.subr.mxu0 0.0
    %766 = vmatpush1.msra.mxu0 0.0
    %767 = vmatprep.mubr.f32.mxu0 0.0
    %768 = vmatmul.mubr.f32.gmra.mrb[0].mxu0 0.0
    %v769 = vpop.f32.mrb[0].mxu0
    %v770 = vadd.f32 0.0, %v769
    %v771 = vpop.f32.mrb[0].mxu0
    %v772 = vadd.f32 0.0, %v771
    %773 = vdwg.mxu0
    %774 = vmatprep.subr.mxu0 %v642
    %775 = vmatpush1.msra.mxu0 %v641
    %776 = vmatprep.subr.mxu0 %v646
    %777 = vmatpush1.msra.mxu0 %v645
    %778 = vmatprep.subr.mxu0 %v650
    %779 = vmatpush1.msra.mxu0 %v649
    %780 = vmatprep.subr.mxu0 %v654
    %781 = vmatpush1.msra.mxu0 %v653
    %782 = vmatprep.subr.mxu0 %v658
    %783 = vmatpush1.msra.mxu0 %v657
    %784 = vmatprep.subr.mxu0 %v662
    %785 = vmatpush1.msra.mxu0 %v661
    %786 = vmatprep.subr.mxu0 %v666
    %787 = vmatpush1.msra.mxu0 %v665
    %788 = vmatprep.subr.mxu0 %v670
    %789 = vmatpush1.msra.mxu0 %v669
    %790 = vmatprep.subr.mxu0 %v674
    %791 = vmatpush1.msra.mxu0 %v673
    %792 = vmatprep.subr.mxu0 %v678
    %793 = vmatpush1.msra.mxu0 %v677
    %794 = vmatprep.subr.mxu0 %v682
    %795 = vmatpush1.msra.mxu0 %v681
    %796 = vmatprep.subr.mxu0 %v686
    %797 = vmatpush1.msra.mxu0 %v685
    %798 = vmatprep.subr.mxu0 %v690
    %799 = vmatpush1.msra.mxu0 %v689
    %800 = vmatprep.subr.mxu0 %v694
    %801 = vmatpush1.msra.mxu0 %v693
    %802 = vmatprep.subr.mxu0 %v698
    %803 = vmatpush1.msra.mxu0 %v697
    %804 = vmatprep.subr.mxu0 %v702
    %805 = vmatpush1.msra.mxu0 %v701
    %806 = vmatprep.subr.mxu0 0.0
    %807 = vmatpush1.msra.mxu0 0.0
    %808 = vmatprep.subr.mxu0 0.0
    %809 = vmatpush1.msra.mxu0 0.0
    %810 = vmatprep.subr.mxu0 0.0
    %811 = vmatpush1.msra.mxu0 0.0
    %812 = vmatprep.subr.mxu0 0.0
    %813 = vmatpush1.msra.mxu0 0.0
    %814 = vmatprep.subr.mxu0 0.0
    %815 = vmatpush1.msra.mxu0 0.0
    %816 = vmatprep.subr.mxu0 0.0
    %817 = vmatpush1.msra.mxu0 0.0
    %818 = vmatprep.subr.mxu0 0.0
    %819 = vmatpush1.msra.mxu0 0.0
    %820 = vmatprep.subr.mxu0 0.0
    %821 = vmatpush1.msra.mxu0 0.0
    %822 = vmatprep.subr.mxu0 0.0
    %823 = vmatpush1.msra.mxu0 0.0
    %824 = vmatprep.subr.mxu0 0.0
    %825 = vmatpush1.msra.mxu0 0.0
    %826 = vmatprep.subr.mxu0 0.0
    %827 = vmatpush1.msra.mxu0 0.0
    %828 = vmatprep.subr.mxu0 0.0
    %829 = vmatpush1.msra.mxu0 0.0
    %830 = vmatprep.subr.mxu0 0.0
    %831 = vmatpush1.msra.mxu0 0.0
    %832 = vmatprep.subr.mxu0 0.0
    %833 = vmatpush1.msra.mxu0 0.0
    %834 = vmatprep.subr.mxu0 0.0
    %835 = vmatpush1.msra.mxu0 0.0
    %836 = vmatprep.subr.mxu0 0.0
    %837 = vmatpush1.msra.mxu0 0.0
    %838 = vmatprep.mubr.f32.mxu0 0.0
    %839 = vmatmul.mubr.f32.gmra.mrb[0].mxu0 0.0
    %v840 = vpop.f32.mrb[0].mxu0
    %v841 = vadd.f32 0.0, %v840
    %v842 = vpop.f32.mrb[0].mxu0
    %v843 = vadd.f32 0.0, %v842
    %844 = vdwg.mxu0
    %v845 = vadd.f32 %v635, %v770
    %v846 = vadd.f32 %v636, %v772
    %v847 = vadd.f32 %v637, %v841
    %v848 = vadd.f32 %v638, %v843
    %v849 = vxor.u32 %v845, 2147483648
    %v850 = vxor.u32 %v846, 2147483648
    %v851 = vxor.u32 %v847, 2147483648
    %v852 = vmul.f32 %v849, 1.442695
    %v853 = vpow.pop %v852
    %v854 = vmul.f32 %v850, 1.442695
    %v855 = vpow.pop %v854
    %v856 = vmul.f32 %v851, 1.442695
    %v857 = vpow.pop %v856
    %v858 = vadd.f32 %v853, 1.0
    %v859 = vadd.f32 %v855, 1.0
    %v860 = vadd.f32 %v857, 1.0
    %v861 = vrcp.pop %v858
    %v862 = vmul.f32 1.0, %v861
    %v863 = vrcp.pop %v859
    %v864 = vmul.f32 1.0, %v863
    %v865 = vrcp.pop %v860
    %v866 = vmul.f32 1.0, %v865
    %v867 = vtanh.pop %v848
    %v868 = vmul.f32 %v864, 0.0
    %v869 = vmul.f32 %v862, %v867
    %v870 = vadd.f32 %v868, %v869
    %v871 = vtanh.pop %v870
    %v872 = vmul.f32 %v866, %v871
    %s873 = scalar_lea.vmem [#allocation2], 32
    %v874 = vld [vmem:[%s873] sm:$0xff]
    %v875 = vld [vmem:[%s873 + $0x8] sm:$0xff]
    %v876 = vld [vmem:[%s873 + $0x10] sm:$0xff]
    %v877 = vld [vmem:[%s873 + $0x18] sm:$0xff]
    %878 = vmatprep.subr.mxu0 %v640
    %879 = vmatpush1.msra.mxu0 %v639
    %880 = vmatprep.subr.mxu0 %v644
    %881 = vmatpush1.msra.mxu0 %v643
    %882 = vmatprep.subr.mxu0 %v648
    %883 = vmatpush1.msra.mxu0 %v647
    %884 = vmatprep.subr.mxu0 %v652
    %885 = vmatpush1.msra.mxu0 %v651
    %886 = vmatprep.subr.mxu0 %v656
    %887 = vmatpush1.msra.mxu0 %v655
    %888 = vmatprep.subr.mxu0 %v660
    %889 = vmatpush1.msra.mxu0 %v659
    %890 = vmatprep.subr.mxu0 %v664
    %891 = vmatpush1.msra.mxu0 %v663
    %892 = vmatprep.subr.mxu0 %v668
    %893 = vmatpush1.msra.mxu0 %v667
    %894 = vmatprep.subr.mxu0 %v672
    %895 = vmatpush1.msra.mxu0 %v671
    %896 = vmatprep.subr.mxu0 %v676
    %897 = vmatpush1.msra.mxu0 %v675
    %898 = vmatprep.subr.mxu0 %v680
    %899 = vmatpush1.msra.mxu0 %v679
    %900 = vmatprep.subr.mxu0 %v684
    %901 = vmatpush1.msra.mxu0 %v683
    %902 = vmatprep.subr.mxu0 %v688
    %903 = vmatpush1.msra.mxu0 %v687
    %904 = vmatprep.subr.mxu0 %v692
    %905 = vmatpush1.msra.mxu0 %v691
    %906 = vmatprep.subr.mxu0 %v696
    %907 = vmatpush1.msra.mxu0 %v695
    %908 = vmatprep.subr.mxu0 %v700
    %909 = vmatpush1.msra.mxu0 %v699
    %910 = vmatprep.subr.mxu0 0.0
    %911 = vmatpush1.msra.mxu0 0.0
    %912 = vmatprep.subr.mxu0 0.0
    %913 = vmatpush1.msra.mxu0 0.0
    %914 = vmatprep.subr.mxu0 0.0
    %915 = vmatpush1.msra.mxu0 0.0
    %916 = vmatprep.subr.mxu0 0.0
    %917 = vmatpush1.msra.mxu0 0.0
    %918 = vmatprep.subr.mxu0 0.0
    %919 = vmatpush1.msra.mxu0 0.0
    %920 = vmatprep.subr.mxu0 0.0
    %921 = vmatpush1.msra.mxu0 0.0
    %922 = vmatprep.subr.mxu0 0.0
    %923 = vmatpush1.msra.mxu0 0.0
    %924 = vmatprep.subr.mxu0 0.0
    %925 = vmatpush1.msra.mxu0 0.0
    %926 = vmatprep.subr.mxu0 0.0
    %927 = vmatpush1.msra.mxu0 0.0
    %928 = vmatprep.subr.mxu0 0.0
    %929 = vmatpush1.msra.mxu0 0.0
    %930 = vmatprep.subr.mxu0 0.0
    %931 = vmatpush1.msra.mxu0 0.0
    %932 = vmatprep.subr.mxu0 0.0
    %933 = vmatpush1.msra.mxu0 0.0
    %934 = vmatprep.subr.mxu0 0.0
    %935 = vmatpush1.msra.mxu0 0.0
    %936 = vmatprep.subr.mxu0 0.0
    %937 = vmatpush1.msra.mxu0 0.0
    %938 = vmatprep.subr.mxu0 0.0
    %939 = vmatpush1.msra.mxu0 0.0
    %940 = vmatprep.subr.mxu0 0.0
    %941 = vmatpush1.msra.mxu0 0.0
    %942 = vmatprep.mubr.f32.mxu0 0.0
    %943 = vmatmul.mubr.f32.gmra.mrb[0].mxu0 %v872
    %v944 = vpop.f32.mrb[0].mxu0
    %v945 = vadd.f32 0.0, %v944
    %v946 = vpop.f32.mrb[0].mxu0
    %v947 = vadd.f32 0.0, %v946
    %948 = vdwg.mxu0
    %949 = vmatprep.subr.mxu0 %v642
    %950 = vmatpush1.msra.mxu0 %v641
    %951 = vmatprep.subr.mxu0 %v646
    %952 = vmatpush1.msra.mxu0 %v645
    %953 = vmatprep.subr.mxu0 %v650
    %954 = vmatpush1.msra.mxu0 %v649
    %955 = vmatprep.subr.mxu0 %v654
    %956 = vmatpush1.msra.mxu0 %v653
    %957 = vmatprep.subr.mxu0 %v658
    %958 = vmatpush1.msra.mxu0 %v657
    %959 = vmatprep.subr.mxu0 %v662
    %960 = vmatpush1.msra.mxu0 %v661
    %961 = vmatprep.subr.mxu0 %v666
    %962 = vmatpush1.msra.mxu0 %v665
    %963 = vmatprep.subr.mxu0 %v670
    %964 = vmatpush1.msra.mxu0 %v669
    %965 = vmatprep.subr.mxu0 %v674
    %966 = vmatpush1.msra.mxu0 %v673
    %967 = vmatprep.subr.mxu0 %v678
    %968 = vmatpush1.msra.mxu0 %v677
    %969 = vmatprep.subr.mxu0 %v682
    %970 = vmatpush1.msra.mxu0 %v681
    %971 = vmatprep.subr.mxu0 %v686
    %972 = vmatpush1.msra.mxu0 %v685
    %973 = vmatprep.subr.mxu0 %v690
    %974 = vmatpush1.msra.mxu0 %v689
    %975 = vmatprep.subr.mxu0 %v694
    %976 = vmatpush1.msra.mxu0 %v693
    %977 = vmatprep.subr.mxu0 %v698
    %978 = vmatpush1.msra.mxu0 %v697
    %979 = vmatprep.subr.mxu0 %v702
    %980 = vmatpush1.msra.mxu0 %v701
    %981 = vmatprep.subr.mxu0 0.0
    %982 = vmatpush1.msra.mxu0 0.0
    %983 = vmatprep.subr.mxu0 0.0
    %984 = vmatpush1.msra.mxu0 0.0
    %985 = vmatprep.subr.mxu0 0.0
    %986 = vmatpush1.msra.mxu0 0.0
    %987 = vmatprep.subr.mxu0 0.0
    %988 = vmatpush1.msra.mxu0 0.0
    %989 = vmatprep.subr.mxu0 0.0
    %990 = vmatpush1.msra.mxu0 0.0
    %991 = vmatprep.subr.mxu0 0.0
    %992 = vmatpush1.msra.mxu0 0.0
    %993 = vmatprep.subr.mxu0 0.0
    %994 = vmatpush1.msra.mxu0 0.0
    %995 = vmatprep.subr.mxu0 0.0
    %996 = vmatpush1.msra.mxu0 0.0
    %997 = vmatprep.subr.mxu0 0.0
    %998 = vmatpush1.msra.mxu0 0.0
    %999 = vmatprep.subr.mxu0 0.0
    %1000 = vmatpush1.msra.mxu0 0.0
    %1001 = vmatprep.subr.mxu0 0.0
    %1002 = vmatpush1.msra.mxu0 0.0
    %1003 = vmatprep.subr.mxu0 0.0
    %1004 = vmatpush1.msra.mxu0 0.0
    %1005 = vmatprep.subr.mxu0 0.0
    %1006 = vmatpush1.msra.mxu0 0.0
    %1007 = vmatprep.subr.mxu0 0.0
    %1008 = vmatpush1.msra.mxu0 0.0
    %1009 = vmatprep.subr.mxu0 0.0
    %1010 = vmatpush1.msra.mxu0 0.0
    %1011 = vmatprep.subr.mxu0 0.0
    %1012 = vmatpush1.msra.mxu0 0.0
    %1013 = vmatprep.mubr.f32.mxu0 0.0
    %1014 = vmatmul.mubr.f32.gmra.mrb[0].mxu0 %v872
    %v1015 = vpop.f32.mrb[0].mxu0
    %v1016 = vadd.f32 0.0, %v1015
    %v1017 = vpop.f32.mrb[0].mxu0
    %v1018 = vadd.f32 0.0, %v1017
    %1019 = vdwg.mxu0
    %v1020 = vadd.f32 %v874, %v945
    %v1021 = vadd.f32 %v875, %v947
    %v1022 = vadd.f32 %v876, %v1016
    %v1023 = vadd.f32 %v877, %v1018
    %v1024 = vxor.u32 %v1020, 2147483648
    %v1025 = vxor.u32 %v1021, 2147483648
    %v1026 = vxor.u32 %v1022, 2147483648
    %v1027 = vmul.f32 %v1024, 1.442695
    %v1028 = vpow.pop %v1027
    %v1029 = vmul.f32 %v1025, 1.442695
    %v1030 = vpow.pop %v1029
    %v1031 = vmul.f32 %v1026, 1.442695
    %v1032 = vpow.pop %v1031
    %v1033 = vadd.f32 %v1028, 1.0
    %v1034 = vadd.f32 %v1030, 1.0
    %v1035 = vadd.f32 %v1032, 1.0
    %v1036 = vrcp.pop %v1033
    %v1037 = vmul.f32 1.0, %v1036
    %v1038 = vrcp.pop %v1034
    %v1039 = vmul.f32 1.0, %v1038
    %v1040 = vrcp.pop %v1035
    %v1041 = vmul.f32 1.0, %v1040
    %v1042 = vtanh.pop %v1023
    %v1043 = vmul.f32 %v1039, %v870
    %v1044 = vmul.f32 %v1037, %v1042
    %v1045 = vadd.f32 %v1043, %v1044
    %v1046 = vtanh.pop %v1045
    %v1047 = vmul.f32 %v1041, %v1046
    %s1048 = scalar_lea.vmem [#allocation2], 64
    %v1049 = vld [vmem:[%s1048] sm:$0xff]
    %v1050 = vld [vmem:[%s1048 + $0x8] sm:$0xff]
    %v1051 = vld [vmem:[%s1048 + $0x10] sm:$0xff]
    %v1052 = vld [vmem:[%s1048 + $0x18] sm:$0xff]
    %1053 = vmatprep.subr.mxu0 %v640
    %1054 = vmatpush1.msra.mxu0 %v639
    %1055 = vmatprep.subr.mxu0 %v644
    %1056 = vmatpush1.msra.mxu0 %v643
    %1057 = vmatprep.subr.mxu0 %v648
    %1058 = vmatpush1.msra.mxu0 %v647
    %1059 = vmatprep.subr.mxu0 %v652
    %1060 = vmatpush1.msra.mxu0 %v651
    %1061 = vmatprep.subr.mxu0 %v656
    %1062 = vmatpush1.msra.mxu0 %v655
    %1063 = vmatprep.subr.mxu0 %v660
    %1064 = vmatpush1.msra.mxu0 %v659
    %1065 = vmatprep.subr.mxu0 %v664
    %1066 = vmatpush1.msra.mxu0 %v663
    %1067 = vmatprep.subr.mxu0 %v668
    %1068 = vmatpush1.msra.mxu0 %v667
    %1069 = vmatprep.subr.mxu0 %v672
    %1070 = vmatpush1.msra.mxu0 %v671
    %1071 = vmatprep.subr.mxu0 %v676
    %1072 = vmatpush1.msra.mxu0 %v675
    %1073 = vmatprep.subr.mxu0 %v680
    %1074 = vmatpush1.msra.mxu0 %v679
    %1075 = vmatprep.subr.mxu0 %v684
    %1076 = vmatpush1.msra.mxu0 %v683
    %1077 = vmatprep.subr.mxu0 %v688
    %1078 = vmatpush1.msra.mxu0 %v687
    %1079 = vmatprep.subr.mxu0 %v692
    %1080 = vmatpush1.msra.mxu0 %v691
    %1081 = vmatprep.subr.mxu0 %v696
    %1082 = vmatpush1.msra.mxu0 %v695
    %1083 = vmatprep.subr.mxu0 %v700
    %1084 = vmatpush1.msra.mxu0 %v699
    %1085 = vmatprep.subr.mxu0 0.0
    %1086 = vmatpush1.msra.mxu0 0.0
    %1087 = vmatprep.subr.mxu0 0.0
    %1088 = vmatpush1.msra.mxu0 0.0
    %1089 = vmatprep.subr.mxu0 0.0
    %1090 = vmatpush1.msra.mxu0 0.0
    %1091 = vmatprep.subr.mxu0 0.0
    %1092 = vmatpush1.msra.mxu0 0.0
    %1093 = vmatprep.subr.mxu0 0.0
    %1094 = vmatpush1.msra.mxu0 0.0
    %1095 = vmatprep.subr.mxu0 0.0
    %1096 = vmatpush1.msra.mxu0 0.0
    %1097 = vmatprep.subr.mxu0 0.0
    %1098 = vmatpush1.msra.mxu0 0.0
    %1099 = vmatprep.subr.mxu0 0.0
    %1100 = vmatpush1.msra.mxu0 0.0
    %1101 = vmatprep.subr.mxu0 0.0
    %1102 = vmatpush1.msra.mxu0 0.0
    %1103 = vmatprep.subr.mxu0 0.0
    %1104 = vmatpush1.msra.mxu0 0.0
    %1105 = vmatprep.subr.mxu0 0.0
    %1106 = vmatpush1.msra.mxu0 0.0
    %1107 = vmatprep.subr.mxu0 0.0
    %1108 = vmatpush1.msra.mxu0 0.0
    %1109 = vmatprep.subr.mxu0 0.0
    %1110 = vmatpush1.msra.mxu0 0.0
    %1111 = vmatprep.subr.mxu0 0.0
    %1112 = vmatpush1.msra.mxu0 0.0
    %1113 = vmatprep.subr.mxu0 0.0
    %1114 = vmatpush1.msra.mxu0 0.0
    %1115 = vmatprep.subr.mxu0 0.0
    %1116 = vmatpush1.msra.mxu0 0.0
    %1117 = vmatprep.mubr.f32.mxu0 0.0
    %1118 = vmatmul.mubr.f32.gmra.mrb[0].mxu0 %v1047
    %v1119 = vpop.f32.mrb[0].mxu0
    %v1120 = vadd.f32 0.0, %v1119
    %v1121 = vpop.f32.mrb[0].mxu0
    %v1122 = vadd.f32 0.0, %v1121
    %1123 = vdwg.mxu0
    %1124 = vmatprep.subr.mxu0 %v642
    %1125 = vmatpush1.msra.mxu0 %v641
    %1126 = vmatprep.subr.mxu0 %v646
    %1127 = vmatpush1.msra.mxu0 %v645
    %1128 = vmatprep.subr.mxu0 %v650
    %1129 = vmatpush1.msra.mxu0 %v649
    %1130 = vmatprep.subr.mxu0 %v654
    %1131 = vmatpush1.msra.mxu0 %v653
    %1132 = vmatprep.subr.mxu0 %v658
    %1133 = vmatpush1.msra.mxu0 %v657
    %1134 = vmatprep.subr.mxu0 %v662
    %1135 = vmatpush1.msra.mxu0 %v661
    %1136 = vmatprep.subr.mxu0 %v666
    %1137 = vmatpush1.msra.mxu0 %v665
    %1138 = vmatprep.subr.mxu0 %v670
    %1139 = vmatpush1.msra.mxu0 %v669
    %1140 = vmatprep.subr.mxu0 %v674
    %1141 = vmatpush1.msra.mxu0 %v673
    %1142 = vmatprep.subr.mxu0 %v678
    %1143 = vmatpush1.msra.mxu0 %v677
    %1144 = vmatprep.subr.mxu0 %v682
    %1145 = vmatpush1.msra.mxu0 %v681
    %1146 = vmatprep.subr.mxu0 %v686
    %1147 = vmatpush1.msra.mxu0 %v685
    %1148 = vmatprep.subr.mxu0 %v690
    %1149 = vmatpush1.msra.mxu0 %v689
    %1150 = vmatprep.subr.mxu0 %v694
    %1151 = vmatpush1.msra.mxu0 %v693
    %1152 = vmatprep.subr.mxu0 %v698
    %1153 = vmatpush1.msra.mxu0 %v697
    %1154 = vmatprep.subr.mxu0 %v702
    %1155 = vmatpush1.msra.mxu0 %v701
    %1156 = vmatprep.subr.mxu0 0.0
    %1157 = vmatpush1.msra.mxu0 0.0
    %1158 = vmatprep.subr.mxu0 0.0
    %1159 = vmatpush1.msra.mxu0 0.0
    %1160 = vmatprep.subr.mxu0 0.0
    %1161 = vmatpush1.msra.mxu0 0.0
    %1162 = vmatprep.subr.mxu0 0.0
    %1163 = vmatpush1.msra.mxu0 0.0
    %1164 = vmatprep.subr.mxu0 0.0
    %1165 = vmatpush1.msra.mxu0 0.0
    %1166 = vmatprep.subr.mxu0 0.0
    %1167 = vmatpush1.msra.mxu0 0.0
    %1168 = vmatprep.subr.mxu0 0.0
    %1169 = vmatpush1.msra.mxu0 0.0
    %1170 = vmatprep.subr.mxu0 0.0
    %1171 = vmatpush1.msra.mxu0 0.0
    %1172 = vmatprep.subr.mxu0 0.0
    %1173 = vmatpush1.msra.mxu0 0.0
    %1174 = vmatprep.subr.mxu0 0.0
    %1175 = vmatpush1.msra.mxu0 0.0
    %1176 = vmatprep.subr.mxu0 0.0
    %1177 = vmatpush1.msra.mxu0 0.0
    %1178 = vmatprep.subr.mxu0 0.0
    %1179 = vmatpush1.msra.mxu0 0.0
    %1180 = vmatprep.subr.mxu0 0.0
    %1181 = vmatpush1.msra.mxu0 0.0
    %1182 = vmatprep.subr.mxu0 0.0
    %1183 = vmatpush1.msra.mxu0 0.0
    %1184 = vmatprep.subr.mxu0 0.0
    %1185 = vmatpush1.msra.mxu0 0.0
    %1186 = vmatprep.subr.mxu0 0.0
    %1187 = vmatpush1.msra.mxu0 0.0
    %1188 = vmatprep.mubr.f32.mxu0 0.0
    %1189 = vmatmul.mubr.f32.gmra.mrb[0].mxu0 %v1047
    %v1190 = vpop.f32.mrb[0].mxu0
    %v1191 = vadd.f32 0.0, %v1190
    %v1192 = vpop.f32.mrb[0].mxu0
    %v1193 = vadd.f32 0.0, %v1192
    %1194 = vdwg.mxu0
    %v1195 = vadd.f32 %v1049, %v1120
    %v1196 = vadd.f32 %v1050, %v1122
    %v1197 = vadd.f32 %v1051, %v1191
    %v1198 = vadd.f32 %v1052, %v1193
    %v1199 = vxor.u32 %v1195, 2147483648
    %v1200 = vxor.u32 %v1196, 2147483648
    %v1201 = vxor.u32 %v1197, 2147483648
    %v1202 = vmul.f32 %v1199, 1.442695
    %v1203 = vpow.pop %v1202
    %v1204 = vmul.f32 %v1200, 1.442695
    %v1205 = vpow.pop %v1204
    %v1206 = vmul.f32 %v1201, 1.442695
    %v1207 = vpow.pop %v1206
    %v1208 = vadd.f32 %v1203, 1.0
    %v1209 = vadd.f32 %v1205, 1.0
    %v1210 = vadd.f32 %v1207, 1.0
    %v1211 = vrcp.pop %v1208
    %v1212 = vmul.f32 1.0, %v1211
    %v1213 = vrcp.pop %v1209
    %v1214 = vmul.f32 1.0, %v1213
    %v1215 = vrcp.pop %v1210
    %v1216 = vmul.f32 1.0, %v1215
    %v1217 = vtanh.pop %v1198
    %v1218 = vmul.f32 %v1214, %v1045
    %v1219 = vmul.f32 %v1212, %v1217
    %v1220 = vadd.f32 %v1218, %v1219
    %v1221 = vtanh.pop %v1220
    %v1222 = vmul.f32 %v1216, %v1221
    %s1223 = scalar_lea.vmem [#allocation2], 96
    %v1224 = vld [vmem:[%s1223] sm:$0xff]
    %v1225 = vld [vmem:[%s1223 + $0x8] sm:$0xff]
    %v1226 = vld [vmem:[%s1223 + $0x10] sm:$0xff]
    %v1227 = vld [vmem:[%s1223 + $0x18] sm:$0xff]
    %1228 = vmatprep.subr.mxu0 %v640
    %1229 = vmatpush1.msra.mxu0 %v639
    %1230 = vmatprep.subr.mxu0 %v644
    %1231 = vmatpush1.msra.mxu0 %v643
    %1232 = vmatprep.subr.mxu0 %v648
    %1233 = vmatpush1.msra.mxu0 %v647
    %1234 = vmatprep.subr.mxu0 %v652
    %1235 = vmatpush1.msra.mxu0 %v651
    %1236 = vmatprep.subr.mxu0 %v656
    %1237 = vmatpush1.msra.mxu0 %v655
    %1238 = vmatprep.subr.mxu0 %v660
    %1239 = vmatpush1.msra.mxu0 %v659
    %1240 = vmatprep.subr.mxu0 %v664
    %1241 = vmatpush1.msra.mxu0 %v663
    %1242 = vmatprep.subr.mxu0 %v668
    %1243 = vmatpush1.msra.mxu0 %v667
    %1244 = vmatprep.subr.mxu0 %v672
    %1245 = vmatpush1.msra.mxu0 %v671
    %1246 = vmatprep.subr.mxu0 %v676
    %1247 = vmatpush1.msra.mxu0 %v675
    %1248 = vmatprep.subr.mxu0 %v680
    %1249 = vmatpush1.msra.mxu0 %v679
    %1250 = vmatprep.subr.mxu0 %v684
    %1251 = vmatpush1.msra.mxu0 %v683
    %1252 = vmatprep.subr.mxu0 %v688
    %1253 = vmatpush1.msra.mxu0 %v687
    %1254 = vmatprep.subr.mxu0 %v692
    %1255 = vmatpush1.msra.mxu0 %v691
    %1256 = vmatprep.subr.mxu0 %v696
    %1257 = vmatpush1.msra.mxu0 %v695
    %1258 = vmatprep.subr.mxu0 %v700
    %1259 = vmatpush1.msra.mxu0 %v699
    %1260 = vmatprep.subr.mxu0 0.0
    %1261 = vmatpush1.msra.mxu0 0.0
    %1262 = vmatprep.subr.mxu0 0.0
    %1263 = vmatpush1.msra.mxu0 0.0
    %1264 = vmatprep.subr.mxu0 0.0
    %1265 = vmatpush1.msra.mxu0 0.0
    %1266 = vmatprep.subr.mxu0 0.0
    %1267 = vmatpush1.msra.mxu0 0.0
    %1268 = vmatprep.subr.mxu0 0.0
    %1269 = vmatpush1.msra.mxu0 0.0
    %1270 = vmatprep.subr.mxu0 0.0
    %1271 = vmatpush1.msra.mxu0 0.0
    %1272 = vmatprep.subr.mxu0 0.0
    %1273 = vmatpush1.msra.mxu0 0.0
    %1274 = vmatprep.subr.mxu0 0.0
    %1275 = vmatpush1.msra.mxu0 0.0
    %1276 = vmatprep.subr.mxu0 0.0
    %1277 = vmatpush1.msra.mxu0 0.0
    %1278 = vmatprep.subr.mxu0 0.0
    %1279 = vmatpush1.msra.mxu0 0.0
    %1280 = vmatprep.subr.mxu0 0.0
    %1281 = vmatpush1.msra.mxu0 0.0
    %1282 = vmatprep.subr.mxu0 0.0
    %1283 = vmatpush1.msra.mxu0 0.0
    %1284 = vmatprep.subr.mxu0 0.0
    %1285 = vmatpush1.msra.mxu0 0.0
    %1286 = vmatprep.subr.mxu0 0.0
    %1287 = vmatpush1.msra.mxu0 0.0
    %1288 = vmatprep.subr.mxu0 0.0
    %1289 = vmatpush1.msra.mxu0 0.0
    %1290 = vmatprep.subr.mxu0 0.0
    %1291 = vmatpush1.msra.mxu0 0.0
    %1292 = vmatprep.mubr.f32.mxu0 0.0
    %1293 = vmatmul.mubr.f32.gmra.mrb[0].mxu0 %v1222
    %v1294 = vpop.f32.mrb[0].mxu0
    %v1295 = vadd.f32 0.0, %v1294
    %v1296 = vpop.f32.mrb[0].mxu0
    %v1297 = vadd.f32 0.0, %v1296
    %1298 = vdwg.mxu0
    %1299 = vmatprep.subr.mxu0 %v642
    %1300 = vmatpush1.msra.mxu0 %v641
    %1301 = vmatprep.subr.mxu0 %v646
    %1302 = vmatpush1.msra.mxu0 %v645
    %1303 = vmatprep.subr.mxu0 %v650
    %1304 = vmatpush1.msra.mxu0 %v649
    %1305 = vmatprep.subr.mxu0 %v654
    %1306 = vmatpush1.msra.mxu0 %v653
    %1307 = vmatprep.subr.mxu0 %v658
    %1308 = vmatpush1.msra.mxu0 %v657
    %1309 = vmatprep.subr.mxu0 %v662
    %1310 = vmatpush1.msra.mxu0 %v661
    %1311 = vmatprep.subr.mxu0 %v666
    %1312 = vmatpush1.msra.mxu0 %v665
    %1313 = vmatprep.subr.mxu0 %v670
    %1314 = vmatpush1.msra.mxu0 %v669
    %1315 = vmatprep.subr.mxu0 %v674
    %1316 = vmatpush1.msra.mxu0 %v673
    %1317 = vmatprep.subr.mxu0 %v678
    %1318 = vmatpush1.msra.mxu0 %v677
    %1319 = vmatprep.subr.mxu0 %v682
    %1320 = vmatpush1.msra.mxu0 %v681
    %1321 = vmatprep.subr.mxu0 %v686
    %1322 = vmatpush1.msra.mxu0 %v685
    %1323 = vmatprep.subr.mxu0 %v690
    %1324 = vmatpush1.msra.mxu0 %v689
    %1325 = vmatprep.subr.mxu0 %v694
    %1326 = vmatpush1.msra.mxu0 %v693
    %1327 = vmatprep.subr.mxu0 %v698
    %1328 = vmatpush1.msra.mxu0 %v697
    %1329 = vmatprep.subr.mxu0 %v702
    %1330 = vmatpush1.msra.mxu0 %v701
    %1331 = vmatprep.subr.mxu0 0.0
    %1332 = vmatpush1.msra.mxu0 0.0
    %1333 = vmatprep.subr.mxu0 0.0
    %1334 = vmatpush1.msra.mxu0 0.0
    %1335 = vmatprep.subr.mxu0 0.0
    %1336 = vmatpush1.msra.mxu0 0.0
    %1337 = vmatprep.subr.mxu0 0.0
    %1338 = vmatpush1.msra.mxu0 0.0
    %1339 = vmatprep.subr.mxu0 0.0
    %1340 = vmatpush1.msra.mxu0 0.0
    %1341 = vmatprep.subr.mxu0 0.0
    %1342 = vmatpush1.msra.mxu0 0.0
    %1343 = vmatprep.subr.mxu0 0.0
    %1344 = vmatpush1.msra.mxu0 0.0
    %1345 = vmatprep.subr.mxu0 0.0
    %1346 = vmatpush1.msra.mxu0 0.0
    %1347 = vmatprep.subr.mxu0 0.0
    %1348 = vmatpush1.msra.mxu0 0.0
    %1349 = vmatprep.subr.mxu0 0.0
    %1350 = vmatpush1.msra.mxu0 0.0
    %1351 = vmatprep.subr.mxu0 0.0
    %1352 = vmatpush1.msra.mxu0 0.0
    %1353 = vmatprep.subr.mxu0 0.0
    %1354 = vmatpush1.msra.mxu0 0.0
    %1355 = vmatprep.subr.mxu0 0.0
    %1356 = vmatpush1.msra.mxu0 0.0
    %1357 = vmatprep.subr.mxu0 0.0
    %1358 = vmatpush1.msra.mxu0 0.0
    %1359 = vmatprep.subr.mxu0 0.0
    %1360 = vmatpush1.msra.mxu0 0.0
    %1361 = vmatprep.subr.mxu0 0.0
    %1362 = vmatpush1.msra.mxu0 0.0
    %1363 = vmatprep.mubr.f32.mxu0 0.0
    %1364 = vmatmul.mubr.f32.gmra.mrb[0].mxu0 %v1222
    %v1365 = vpop.f32.mrb[0].mxu0
    %v1366 = vadd.f32 0.0, %v1365
    %v1367 = vpop.f32.mrb[0].mxu0
    %v1368 = vadd.f32 0.0, %v1367
    %1369 = vdwg.mxu0
    %v1370 = vadd.f32 %v1224, %v1295
    %v1371 = vadd.f32 %v1225, %v1297
    %v1372 = vadd.f32 %v1226, %v1366
    %v1373 = vadd.f32 %v1227, %v1368
    %v1374 = vxor.u32 %v1370, 2147483648
    %v1375 = vxor.u32 %v1371, 2147483648
    %v1376 = vxor.u32 %v1372, 2147483648
    %v1377 = vmul.f32 %v1374, 1.442695
    %v1378 = vpow.pop %v1377
    %v1379 = vmul.f32 %v1375, 1.442695
    %v1380 = vpow.pop %v1379
    %v1381 = vmul.f32 %v1376, 1.442695
    %v1382 = vpow.pop %v1381
    %v1383 = vadd.f32 %v1378, 1.0
    %v1384 = vadd.f32 %v1380, 1.0
    %v1385 = vadd.f32 %v1382, 1.0
    %v1386 = vrcp.pop %v1383
    %v1387 = vmul.f32 1.0, %v1386
    %v1388 = vrcp.pop %v1384
    %v1389 = vmul.f32 1.0, %v1388
    %v1390 = vrcp.pop %v1385
    %v1391 = vmul.f32 1.0, %v1390
    %v1392 = vtanh.pop %v1373
    %v1393 = vmul.f32 %v1389, %v1220
    %v1394 = vmul.f32 %v1387, %v1392
    %v1395 = vadd.f32 %v1393, %v1394
    %v1396 = vtanh.pop %v1395
    %v1397 = vmul.f32 %v1391, %v1396
    %s1398 = scalar_lea.vmem [#allocation2], 128
    %v1399 = vld [vmem:[%s1398] sm:$0xff]
    %v1400 = vld [vmem:[%s1398 + $0x8] sm:$0xff]
    %v1401 = vld [vmem:[%s1398 + $0x10] sm:$0xff]
    %v1402 = vld [vmem:[%s1398 + $0x18] sm:$0xff]
    %1403 = vmatprep.subr.mxu0 %v640
    %1404 = vmatpush1.msra.mxu0 %v639
    %1405 = vmatprep.subr.mxu0 %v644
    %1406 = vmatpush1.msra.mxu0 %v643
    %1407 = vmatprep.subr.mxu0 %v648
    %1408 = vmatpush1.msra.mxu0 %v647
    %1409 = vmatprep.subr.mxu0 %v652
    %1410 = vmatpush1.msra.mxu0 %v651
    %1411 = vmatprep.subr.mxu0 %v656
    %1412 = vmatpush1.msra.mxu0 %v655
    %1413 = vmatprep.subr.mxu0 %v660
    %1414 = vmatpush1.msra.mxu0 %v659
    %1415 = vmatprep.subr.mxu0 %v664
    %1416 = vmatpush1.msra.mxu0 %v663
    %1417 = vmatprep.subr.mxu0 %v668
    %1418 = vmatpush1.msra.mxu0 %v667
    %1419 = vmatprep.subr.mxu0 %v672
    %1420 = vmatpush1.msra.mxu0 %v671
    %1421 = vmatprep.subr.mxu0 %v676
    %1422 = vmatpush1.msra.mxu0 %v675
    %1423 = vmatprep.subr.mxu0 %v680
    %1424 = vmatpush1.msra.mxu0 %v679
    %1425 = vmatprep.subr.mxu0 %v684
    %1426 = vmatpush1.msra.mxu0 %v683
    %1427 = vmatprep.subr.mxu0 %v688
    %1428 = vmatpush1.msra.mxu0 %v687
    %1429 = vmatprep.subr.mxu0 %v692
    %1430 = vmatpush1.msra.mxu0 %v691
    %1431 = vmatprep.subr.mxu0 %v696
    %1432 = vmatpush1.msra.mxu0 %v695
    %1433 = vmatprep.subr.mxu0 %v700
    %1434 = vmatpush1.msra.mxu0 %v699
    %1435 = vmatprep.subr.mxu0 0.0
    %1436 = vmatpush1.msra.mxu0 0.0
    %1437 = vmatprep.subr.mxu0 0.0
    %1438 = vmatpush1.msra.mxu0 0.0
    %1439 = vmatprep.subr.mxu0 0.0
    %1440 = vmatpush1.msra.mxu0 0.0
    %1441 = vmatprep.subr.mxu0 0.0
    %1442 = vmatpush1.msra.mxu0 0.0
    %1443 = vmatprep.subr.mxu0 0.0
    %1444 = vmatpush1.msra.mxu0 0.0
    %1445 = vmatprep.subr.mxu0 0.0
    %1446 = vmatpush1.msra.mxu0 0.0
    %1447 = vmatprep.subr.mxu0 0.0
    %1448 = vmatpush1.msra.mxu0 0.0
    %1449 = vmatprep.subr.mxu0 0.0
    %1450 = vmatpush1.msra.mxu0 0.0
    %1451 = vmatprep.subr.mxu0 0.0
    %1452 = vmatpush1.msra.mxu0 0.0
    %1453 = vmatprep.subr.mxu0 0.0
    %1454 = vmatpush1.msra.mxu0 0.0
    %1455 = vmatprep.subr.mxu0 0.0
    %1456 = vmatpush1.msra.mxu0 0.0
    %1457 = vmatprep.subr.mxu0 0.0
    %1458 = vmatpush1.msra.mxu0 0.0
    %1459 = vmatprep.subr.mxu0 0.0
    %1460 = vmatpush1.msra.mxu0 0.0
    %1461 = vmatprep.subr.mxu0 0.0
    %1462 = vmatpush1.msra.mxu0 0.0
    %1463 = vmatprep.subr.mxu0 0.0
    %1464 = vmatpush1.msra.mxu0 0.0
    %1465 = vmatprep.subr.mxu0 0.0
    %1466 = vmatpush1.msra.mxu0 0.0
    %1467 = vmatprep.mubr.f32.mxu0 0.0
    %1468 = vmatmul.mubr.f32.gmra.mrb[0].mxu0 %v1397
    %v1469 = vpop.f32.mrb[0].mxu0
    %v1470 = vadd.f32 0.0, %v1469
    %v1471 = vpop.f32.mrb[0].mxu0
    %v1472 = vadd.f32 0.0, %v1471
    %1473 = vdwg.mxu0
    %1474 = vmatprep.subr.mxu0 %v642
    %1475 = vmatpush1.msra.mxu0 %v641
    %1476 = vmatprep.subr.mxu0 %v646
    %1477 = vmatpush1.msra.mxu0 %v645
    %1478 = vmatprep.subr.mxu0 %v650
    %1479 = vmatpush1.msra.mxu0 %v649
    %1480 = vmatprep.subr.mxu0 %v654
    %1481 = vmatpush1.msra.mxu0 %v653
    %1482 = vmatprep.subr.mxu0 %v658
    %1483 = vmatpush1.msra.mxu0 %v657
    %1484 = vmatprep.subr.mxu0 %v662
    %1485 = vmatpush1.msra.mxu0 %v661
    %1486 = vmatprep.subr.mxu0 %v666
    %1487 = vmatpush1.msra.mxu0 %v665
    %1488 = vmatprep.subr.mxu0 %v670
    %1489 = vmatpush1.msra.mxu0 %v669
    %1490 = vmatprep.subr.mxu0 %v674
    %1491 = vmatpush1.msra.mxu0 %v673
    %1492 = vmatprep.subr.mxu0 %v678
    %1493 = vmatpush1.msra.mxu0 %v677
    %1494 = vmatprep.subr.mxu0 %v682
    %1495 = vmatpush1.msra.mxu0 %v681
    %1496 = vmatprep.subr.mxu0 %v686
    %1497 = vmatpush1.msra.mxu0 %v685
    %1498 = vmatprep.subr.mxu0 %v690
    %1499 = vmatpush1.msra.mxu0 %v689
    %1500 = vmatprep.subr.mxu0 %v694
    %1501 = vmatpush1.msra.mxu0 %v693
    %1502 = vmatprep.subr.mxu0 %v698
    %1503 = vmatpush1.msra.mxu0 %v697
    %1504 = vmatprep.subr.mxu0 %v702
    %1505 = vmatpush1.msra.mxu0 %v701
    %1506 = vmatprep.subr.mxu0 0.0
    %1507 = vmatpush1.msra.mxu0 0.0
    %1508 = vmatprep.subr.mxu0 0.0
    %1509 = vmatpush1.msra.mxu0 0.0
    %1510 = vmatprep.subr.mxu0 0.0
    %1511 = vmatpush1.msra.mxu0 0.0
    %1512 = vmatprep.subr.mxu0 0.0
    %1513 = vmatpush1.msra.mxu0 0.0
    %1514 = vmatprep.subr.mxu0 0.0
    %1515 = vmatpush1.msra.mxu0 0.0
    %1516 = vmatprep.subr.mxu0 0.0
    %1517 = vmatpush1.msra.mxu0 0.0
    %1518 = vmatprep.subr.mxu0 0.0
    %1519 = vmatpush1.msra.mxu0 0.0
    %1520 = vmatprep.subr.mxu0 0.0
    %1521 = vmatpush1.msra.mxu0 0.0
    %1522 = vmatprep.subr.mxu0 0.0
    %1523 = vmatpush1.msra.mxu0 0.0
    %1524 = vmatprep.subr.mxu0 0.0
    %1525 = vmatpush1.msra.mxu0 0.0
    %1526 = vmatprep.subr.mxu0 0.0
    %1527 = vmatpush1.msra.mxu0 0.0
    %1528 = vmatprep.subr.mxu0 0.0
    %1529 = vmatpush1.msra.mxu0 0.0
    %1530 = vmatprep.subr.mxu0 0.0
    %1531 = vmatpush1.msra.mxu0 0.0
    %1532 = vmatprep.subr.mxu0 0.0
    %1533 = vmatpush1.msra.mxu0 0.0
    %1534 = vmatprep.subr.mxu0 0.0
    %1535 = vmatpush1.msra.mxu0 0.0
    %1536 = vmatprep.subr.mxu0 0.0
    %1537 = vmatpush1.msra.mxu0 0.0
    %1538 = vmatprep.mubr.f32.mxu0 0.0
    %1539 = vmatmul.mubr.f32.gmra.mrb[0].mxu0 %v1397
    %v1540 = vpop.f32.mrb[0].mxu0
    %v1541 = vadd.f32 0.0, %v1540
    %v1542 = vpop.f32.mrb[0].mxu0
    %v1543 = vadd.f32 0.0, %v1542
    %1544 = vdwg.mxu0
    %v1545 = vadd.f32 %v1399, %v1470
    %v1546 = vadd.f32 %v1400, %v1472
    %v1547 = vadd.f32 %v1401, %v1541
    %v1548 = vadd.f32 %v1402, %v1543
    %v1549 = vxor.u32 %v1545, 2147483648
    %v1550 = vxor.u32 %v1546, 2147483648
    %v1551 = vxor.u32 %v1547, 2147483648
    %v1552 = vmul.f32 %v1549, 1.442695
    %v1553 = vpow.pop %v1552
    %v1554 = vmul.f32 %v1550, 1.442695
    %v1555 = vpow.pop %v1554
    %v1556 = vmul.f32 %v1551, 1.442695
    %v1557 = vpow.pop %v1556
    %v1558 = vadd.f32 %v1553, 1.0
    %v1559 = vadd.f32 %v1555, 1.0
    %v1560 = vadd.f32 %v1557, 1.0
    %v1561 = vrcp.pop %v1558
    %v1562 = vmul.f32 1.0, %v1561
    %v1563 = vrcp.pop %v1559
    %v1564 = vmul.f32 1.0, %v1563
    %v1565 = vrcp.pop %v1560
    %v1566 = vmul.f32 1.0, %v1565
    %v1567 = vtanh.pop %v1548
    %v1568 = vmul.f32 %v1564, %v1395
    %v1569 = vmul.f32 %v1562, %v1567
    %v1570 = vadd.f32 %v1568, %v1569
    %v1571 = vtanh.pop %v1570
    %v1572 = vmul.f32 %v1566, %v1571
    %s1573 = scalar_lea.vmem [#allocation2], 160
    %v1574 = vld [vmem:[%s1573] sm:$0xff]
    %v1575 = vld [vmem:[%s1573 + $0x8] sm:$0xff]
    %v1576 = vld [vmem:[%s1573 + $0x10] sm:$0xff]
    %v1577 = vld [vmem:[%s1573 + $0x18] sm:$0xff]
    %1578 = vmatprep.subr.mxu0 %v640
    %1579 = vmatpush1.msra.mxu0 %v639
    %1580 = vmatprep.subr.mxu0 %v644
    %1581 = vmatpush1.msra.mxu0 %v643
    %1582 = vmatprep.subr.mxu0 %v648
    %1583 = vmatpush1.msra.mxu0 %v647
    %1584 = vmatprep.subr.mxu0 %v652
    %1585 = vmatpush1.msra.mxu0 %v651
    %1586 = vmatprep.subr.mxu0 %v656
    %1587 = vmatpush1.msra.mxu0 %v655
    %1588 = vmatprep.subr.mxu0 %v660
    %1589 = vmatpush1.msra.mxu0 %v659
    %1590 = vmatprep.subr.mxu0 %v664
    %1591 = vmatpush1.msra.mxu0 %v663
    %1592 = vmatprep.subr.mxu0 %v668
    %1593 = vmatpush1.msra.mxu0 %v667
    %1594 = vmatprep.subr.mxu0 %v672
    %1595 = vmatpush1.msra.mxu0 %v671
    %1596 = vmatprep.subr.mxu0 %v676
    %1597 = vmatpush1.msra.mxu0 %v675
    %1598 = vmatprep.subr.mxu0 %v680
    %1599 = vmatpush1.msra.mxu0 %v679
    %1600 = vmatprep.subr.mxu0 %v684
    %1601 = vmatpush1.msra.mxu0 %v683
    %1602 = vmatprep.subr.mxu0 %v688
    %1603 = vmatpush1.msra.mxu0 %v687
    %1604 = vmatprep.subr.mxu0 %v692
    %1605 = vmatpush1.msra.mxu0 %v691
    %1606 = vmatprep.subr.mxu0 %v696
    %1607 = vmatpush1.msra.mxu0 %v695
    %1608 = vmatprep.subr.mxu0 %v700
    %1609 = vmatpush1.msra.mxu0 %v699
    %1610 = vmatprep.subr.mxu0 0.0
    %1611 = vmatpush1.msra.mxu0 0.0
    %1612 = vmatprep.subr.mxu0 0.0
    %1613 = vmatpush1.msra.mxu0 0.0
    %1614 = vmatprep.subr.mxu0 0.0
    %1615 = vmatpush1.msra.mxu0 0.0
    %1616 = vmatprep.subr.mxu0 0.0
    %1617 = vmatpush1.msra.mxu0 0.0
    %1618 = vmatprep.subr.mxu0 0.0
    %1619 = vmatpush1.msra.mxu0 0.0
    %1620 = vmatprep.subr.mxu0 0.0
    %1621 = vmatpush1.msra.mxu0 0.0
    %1622 = vmatprep.subr.mxu0 0.0
    %1623 = vmatpush1.msra.mxu0 0.0
    %1624 = vmatprep.subr.mxu0 0.0
    %1625 = vmatpush1.msra.mxu0 0.0
    %1626 = vmatprep.subr.mxu0 0.0
    %1627 = vmatpush1.msra.mxu0 0.0
    %1628 = vmatprep.subr.mxu0 0.0
    %1629 = vmatpush1.msra.mxu0 0.0
    %1630 = vmatprep.subr.mxu0 0.0
    %1631 = vmatpush1.msra.mxu0 0.0
    %1632 = vmatprep.subr.mxu0 0.0
    %1633 = vmatpush1.msra.mxu0 0.0
    %1634 = vmatprep.subr.mxu0 0.0
    %1635 = vmatpush1.msra.mxu0 0.0
    %1636 = vmatprep.subr.mxu0 0.0
    %1637 = vmatpush1.msra.mxu0 0.0
    %1638 = vmatprep.subr.mxu0 0.0
    %1639 = vmatpush1.msra.mxu0 0.0
    %1640 = vmatprep.subr.mxu0 0.0
    %1641 = vmatpush1.msra.mxu0 0.0
    %1642 = vmatprep.mubr.f32.mxu0 0.0
    %1643 = vmatmul.mubr.f32.gmra.mrb[0].mxu0 %v1572
    %v1644 = vpop.f32.mrb[0].mxu0
    %v1645 = vadd.f32 0.0, %v1644
    %v1646 = vpop.f32.mrb[0].mxu0
    %v1647 = vadd.f32 0.0, %v1646
    %1648 = vdwg.mxu0
    %1649 = vmatprep.subr.mxu0 %v642
    %1650 = vmatpush1.msra.mxu0 %v641
    %1651 = vmatprep.subr.mxu0 %v646
    %1652 = vmatpush1.msra.mxu0 %v645
    %1653 = vmatprep.subr.mxu0 %v650
    %1654 = vmatpush1.msra.mxu0 %v649
    %1655 = vmatprep.subr.mxu0 %v654
    %1656 = vmatpush1.msra.mxu0 %v653
    %1657 = vmatprep.subr.mxu0 %v658
    %1658 = vmatpush1.msra.mxu0 %v657
    %1659 = vmatprep.subr.mxu0 %v662
    %1660 = vmatpush1.msra.mxu0 %v661
    %1661 = vmatprep.subr.mxu0 %v666
    %1662 = vmatpush1.msra.mxu0 %v665
    %1663 = vmatprep.subr.mxu0 %v670
    %1664 = vmatpush1.msra.mxu0 %v669
    %1665 = vmatprep.subr.mxu0 %v674
    %1666 = vmatpush1.msra.mxu0 %v673
    %1667 = vmatprep.subr.mxu0 %v678
    %1668 = vmatpush1.msra.mxu0 %v677
    %1669 = vmatprep.subr.mxu0 %v682
    %1670 = vmatpush1.msra.mxu0 %v681
    %1671 = vmatprep.subr.mxu0 %v686
    %1672 = vmatpush1.msra.mxu0 %v685
    %1673 = vmatprep.subr.mxu0 %v690
    %1674 = vmatpush1.msra.mxu0 %v689
    %1675 = vmatprep.subr.mxu0 %v694
    %1676 = vmatpush1.msra.mxu0 %v693
    %1677 = vmatprep.subr.mxu0 %v698
    %1678 = vmatpush1.msra.mxu0 %v697
    %1679 = vmatprep.subr.mxu0 %v702
    %1680 = vmatpush1.msra.mxu0 %v701
    %1681 = vmatprep.subr.mxu0 0.0
    %1682 = vmatpush1.msra.mxu0 0.0
    %1683 = vmatprep.subr.mxu0 0.0
    %1684 = vmatpush1.msra.mxu0 0.0
    %1685 = vmatprep.subr.mxu0 0.0
    %1686 = vmatpush1.msra.mxu0 0.0
    %1687 = vmatprep.subr.mxu0 0.0
    %1688 = vmatpush1.msra.mxu0 0.0
    %1689 = vmatprep.subr.mxu0 0.0
    %1690 = vmatpush1.msra.mxu0 0.0
    %1691 = vmatprep.subr.mxu0 0.0
    %1692 = vmatpush1.msra.mxu0 0.0
    %1693 = vmatprep.subr.mxu0 0.0
    %1694 = vmatpush1.msra.mxu0 0.0
    %1695 = vmatprep.subr.mxu0 0.0
    %1696 = vmatpush1.msra.mxu0 0.0
    %1697 = vmatprep.subr.mxu0 0.0
    %1698 = vmatpush1.msra.mxu0 0.0
    %1699 = vmatprep.subr.mxu0 0.0
    %1700 = vmatpush1.msra.mxu0 0.0
    %1701 = vmatprep.subr.mxu0 0.0
    %1702 = vmatpush1.msra.mxu0 0.0
    %1703 = vmatprep.subr.mxu0 0.0
    %1704 = vmatpush1.msra.mxu0 0.0
    %1705 = vmatprep.subr.mxu0 0.0
    %1706 = vmatpush1.msra.mxu0 0.0
    %1707 = vmatprep.subr.mxu0 0.0
    %1708 = vmatpush1.msra.mxu0 0.0
    %1709 = vmatprep.subr.mxu0 0.0
    %1710 = vmatpush1.msra.mxu0 0.0
    %1711 = vmatprep.subr.mxu0 0.0
    %1712 = vmatpush1.msra.mxu0 0.0
    %1713 = vmatprep.mubr.f32.mxu0 0.0
    %1714 = vmatmul.mubr.f32.gmra.mrb[0].mxu0 %v1572
    %v1715 = vpop.f32.mrb[0].mxu0
    %v1716 = vadd.f32 0.0, %v1715
    %v1717 = vpop.f32.mrb[0].mxu0
    %v1718 = vadd.f32 0.0, %v1717
    %1719 = vdwg.mxu0
    %v1720 = vadd.f32 %v1574, %v1645
    %v1721 = vadd.f32 %v1575, %v1647
    %v1722 = vadd.f32 %v1576, %v1716
    %v1723 = vadd.f32 %v1577, %v1718
    %v1724 = vxor.u32 %v1720, 2147483648
    %v1725 = vxor.u32 %v1721, 2147483648
    %v1726 = vxor.u32 %v1722, 2147483648
    %v1727 = vmul.f32 %v1724, 1.442695
    %v1728 = vpow.pop %v1727
    %v1729 = vmul.f32 %v1725, 1.442695
    %v1730 = vpow.pop %v1729
    %v1731 = vmul.f32 %v1726, 1.442695
    %v1732 = vpow.pop %v1731
    %v1733 = vadd.f32 %v1728, 1.0
    %v1734 = vadd.f32 %v1730, 1.0
    %v1735 = vadd.f32 %v1732, 1.0
    %v1736 = vrcp.pop %v1733
    %v1737 = vmul.f32 1.0, %v1736
    %v1738 = vrcp.pop %v1734
    %v1739 = vmul.f32 1.0, %v1738
    %v1740 = vrcp.pop %v1735
    %v1741 = vmul.f32 1.0, %v1740
    %v1742 = vtanh.pop %v1723
    %v1743 = vmul.f32 %v1739, %v1570
    %v1744 = vmul.f32 %v1737, %v1742
    %v1745 = vadd.f32 %v1743, %v1744
    %v1746 = vtanh.pop %v1745
    %v1747 = vmul.f32 %v1741, %v1746
    %s1748 = scalar_lea.vmem [#allocation2], 192
    %v1749 = vld [vmem:[%s1748] sm:$0xff]
    %v1750 = vld [vmem:[%s1748 + $0x8] sm:$0xff]
    %v1751 = vld [vmem:[%s1748 + $0x10] sm:$0xff]
    %v1752 = vld [vmem:[%s1748 + $0x18] sm:$0xff]
    %1753 = vmatprep.subr.mxu0 %v640
    %1754 = vmatpush1.msra.mxu0 %v639
    %1755 = vmatprep.subr.mxu0 %v644
    %1756 = vmatpush1.msra.mxu0 %v643
    %1757 = vmatprep.subr.mxu0 %v648
    %1758 = vmatpush1.msra.mxu0 %v647
    %1759 = vmatprep.subr.mxu0 %v652
    %1760 = vmatpush1.msra.mxu0 %v651
    %1761 = vmatprep.subr.mxu0 %v656
    %1762 = vmatpush1.msra.mxu0 %v655
    %1763 = vmatprep.subr.mxu0 %v660
    %1764 = vmatpush1.msra.mxu0 %v659
    %1765 = vmatprep.subr.mxu0 %v664
    %1766 = vmatpush1.msra.mxu0 %v663
    %1767 = vmatprep.subr.mxu0 %v668
    %1768 = vmatpush1.msra.mxu0 %v667
    %1769 = vmatprep.subr.mxu0 %v672
    %1770 = vmatpush1.msra.mxu0 %v671
    %1771 = vmatprep.subr.mxu0 %v676
    %1772 = vmatpush1.msra.mxu0 %v675
    %1773 = vmatprep.subr.mxu0 %v680
    %1774 = vmatpush1.msra.mxu0 %v679
    %1775 = vmatprep.subr.mxu0 %v684
    %1776 = vmatpush1.msra.mxu0 %v683
    %1777 = vmatprep.subr.mxu0 %v688
    %1778 = vmatpush1.msra.mxu0 %v687
    %1779 = vmatprep.subr.mxu0 %v692
    %1780 = vmatpush1.msra.mxu0 %v691
    %1781 = vmatprep.subr.mxu0 %v696
    %1782 = vmatpush1.msra.mxu0 %v695
    %1783 = vmatprep.subr.mxu0 %v700
    %1784 = vmatpush1.msra.mxu0 %v699
    %1785 = vmatprep.subr.mxu0 0.0
    %1786 = vmatpush1.msra.mxu0 0.0
    %1787 = vmatprep.subr.mxu0 0.0
    %1788 = vmatpush1.msra.mxu0 0.0
    %1789 = vmatprep.subr.mxu0 0.0
    %1790 = vmatpush1.msra.mxu0 0.0
    %1791 = vmatprep.subr.mxu0 0.0
    %1792 = vmatpush1.msra.mxu0 0.0
    %1793 = vmatprep.subr.mxu0 0.0
    %1794 = vmatpush1.msra.mxu0 0.0
    %1795 = vmatprep.subr.mxu0 0.0
    %1796 = vmatpush1.msra.mxu0 0.0
    %1797 = vmatprep.subr.mxu0 0.0
    %1798 = vmatpush1.msra.mxu0 0.0
    %1799 = vmatprep.subr.mxu0 0.0
    %1800 = vmatpush1.msra.mxu0 0.0
    %1801 = vmatprep.subr.mxu0 0.0
    %1802 = vmatpush1.msra.mxu0 0.0
    %1803 = vmatprep.subr.mxu0 0.0
    %1804 = vmatpush1.msra.mxu0 0.0
    %1805 = vmatprep.subr.mxu0 0.0
    %1806 = vmatpush1.msra.mxu0 0.0
    %1807 = vmatprep.subr.mxu0 0.0
    %1808 = vmatpush1.msra.mxu0 0.0
    %1809 = vmatprep.subr.mxu0 0.0
    %1810 = vmatpush1.msra.mxu0 0.0
    %1811 = vmatprep.subr.mxu0 0.0
    %1812 = vmatpush1.msra.mxu0 0.0
    %1813 = vmatprep.subr.mxu0 0.0
    %1814 = vmatpush1.msra.mxu0 0.0
    %1815 = vmatprep.subr.mxu0 0.0
    %1816 = vmatpush1.msra.mxu0 0.0
    %1817 = vmatprep.mubr.f32.mxu0 0.0
    %1818 = vmatmul.mubr.f32.gmra.mrb[0].mxu0 %v1747
    %v1819 = vpop.f32.mrb[0].mxu0
    %v1820 = vadd.f32 0.0, %v1819
    %v1821 = vpop.f32.mrb[0].mxu0
    %v1822 = vadd.f32 0.0, %v1821
    %1823 = vdwg.mxu0
    %1824 = vmatprep.subr.mxu0 %v642
    %1825 = vmatpush1.msra.mxu0 %v641
    %1826 = vmatprep.subr.mxu0 %v646
    %1827 = vmatpush1.msra.mxu0 %v645
    %1828 = vmatprep.subr.mxu0 %v650
    %1829 = vmatpush1.msra.mxu0 %v649
    %1830 = vmatprep.subr.mxu0 %v654
    %1831 = vmatpush1.msra.mxu0 %v653
    %1832 = vmatprep.subr.mxu0 %v658
    %1833 = vmatpush1.msra.mxu0 %v657
    %1834 = vmatprep.subr.mxu0 %v662
    %1835 = vmatpush1.msra.mxu0 %v661
    %1836 = vmatprep.subr.mxu0 %v666
    %1837 = vmatpush1.msra.mxu0 %v665
    %1838 = vmatprep.subr.mxu0 %v670
    %1839 = vmatpush1.msra.mxu0 %v669
    %1840 = vmatprep.subr.mxu0 %v674
    %1841 = vmatpush1.msra.mxu0 %v673
    %1842 = vmatprep.subr.mxu0 %v678
    %1843 = vmatpush1.msra.mxu0 %v677
    %1844 = vmatprep.subr.mxu0 %v682
    %1845 = vmatpush1.msra.mxu0 %v681
    %1846 = vmatprep.subr.mxu0 %v686
    %1847 = vmatpush1.msra.mxu0 %v685
    %1848 = vmatprep.subr.mxu0 %v690
    %1849 = vmatpush1.msra.mxu0 %v689
    %1850 = vmatprep.subr.mxu0 %v694
    %1851 = vmatpush1.msra.mxu0 %v693
    %1852 = vmatprep.subr.mxu0 %v698
    %1853 = vmatpush1.msra.mxu0 %v697
    %1854 = vmatprep.subr.mxu0 %v702
    %1855 = vmatpush1.msra.mxu0 %v701
    %1856 = vmatprep.subr.mxu0 0.0
    %1857 = vmatpush1.msra.mxu0 0.0
    %1858 = vmatprep.subr.mxu0 0.0
    %1859 = vmatpush1.msra.mxu0 0.0
    %1860 = vmatprep.subr.mxu0 0.0
    %1861 = vmatpush1.msra.mxu0 0.0
    %1862 = vmatprep.subr.mxu0 0.0
    %1863 = vmatpush1.msra.mxu0 0.0
    %1864 = vmatprep.subr.mxu0 0.0
    %1865 = vmatpush1.msra.mxu0 0.0
    %1866 = vmatprep.subr.mxu0 0.0
    %1867 = vmatpush1.msra.mxu0 0.0
    %1868 = vmatprep.subr.mxu0 0.0
    %1869 = vmatpush1.msra.mxu0 0.0
    %1870 = vmatprep.subr.mxu0 0.0
    %1871 = vmatpush1.msra.mxu0 0.0
    %1872 = vmatprep.subr.mxu0 0.0
    %1873 = vmatpush1.msra.mxu0 0.0
    %1874 = vmatprep.subr.mxu0 0.0
    %1875 = vmatpush1.msra.mxu0 0.0
    %1876 = vmatprep.subr.mxu0 0.0
    %1877 = vmatpush1.msra.mxu0 0.0
    %1878 = vmatprep.subr.mxu0 0.0
    %1879 = vmatpush1.msra.mxu0 0.0
    %1880 = vmatprep.subr.mxu0 0.0
    %1881 = vmatpush1.msra.mxu0 0.0
    %1882 = vmatprep.subr.mxu0 0.0
    %1883 = vmatpush1.msra.mxu0 0.0
    %1884 = vmatprep.subr.mxu0 0.0
    %1885 = vmatpush1.msra.mxu0 0.0
    %1886 = vmatprep.subr.mxu0 0.0
    %1887 = vmatpush1.msra.mxu0 0.0
    %1888 = vmatprep.mubr.f32.mxu0 0.0
    %1889 = vmatmul.mubr.f32.gmra.mrb[0].mxu0 %v1747
    %v1890 = vpop.f32.mrb[0].mxu0
    %v1891 = vadd.f32 0.0, %v1890
    %v1892 = vpop.f32.mrb[0].mxu0
    %v1893 = vadd.f32 0.0, %v1892
    %1894 = vdwg.mxu0
    %v1895 = vadd.f32 %v1749, %v1820
    %v1896 = vadd.f32 %v1750, %v1822
    %v1897 = vadd.f32 %v1751, %v1891
    %v1898 = vadd.f32 %v1752, %v1893
    %v1899 = vxor.u32 %v1895, 2147483648
    %v1900 = vxor.u32 %v1896, 2147483648
    %v1901 = vxor.u32 %v1897, 2147483648
    %v1902 = vmul.f32 %v1899, 1.442695
    %v1903 = vpow.pop %v1902
    %v1904 = vmul.f32 %v1900, 1.442695
    %v1905 = vpow.pop %v1904
    %v1906 = vmul.f32 %v1901, 1.442695
    %v1907 = vpow.pop %v1906
    %v1908 = vadd.f32 %v1903, 1.0
    %v1909 = vadd.f32 %v1905, 1.0
    %v1910 = vadd.f32 %v1907, 1.0
    %v1911 = vrcp.pop %v1908
    %v1912 = vmul.f32 1.0, %v1911
    %v1913 = vrcp.pop %v1909
    %v1914 = vmul.f32 1.0, %v1913
    %v1915 = vrcp.pop %v1910
    %v1916 = vmul.f32 1.0, %v1915
    %v1917 = vtanh.pop %v1898
    %v1918 = vmul.f32 %v1914, %v1745
    %v1919 = vmul.f32 %v1912, %v1917
    %v1920 = vadd.f32 %v1918, %v1919
    %v1921 = vtanh.pop %v1920
    %v1922 = vmul.f32 %v1916, %v1921
    %s1923 = scalar_lea.vmem [#allocation2], 224
    %v1924 = vld [vmem:[%s1923] sm:$0xff]
    %v1925 = vld [vmem:[%s1923 + $0x8] sm:$0xff]
    %v1926 = vld [vmem:[%s1923 + $0x10] sm:$0xff]
    %v1927 = vld [vmem:[%s1923 + $0x18] sm:$0xff]
    %1928 = vmatprep.subr.mxu0 %v640
    %1929 = vmatpush1.msra.mxu0 %v639
    %1930 = vmatprep.subr.mxu0 %v644
    %1931 = vmatpush1.msra.mxu0 %v643
    %1932 = vmatprep.subr.mxu0 %v648
    %1933 = vmatpush1.msra.mxu0 %v647
    %1934 = vmatprep.subr.mxu0 %v652
    %1935 = vmatpush1.msra.mxu0 %v651
    %1936 = vmatprep.subr.mxu0 %v656
    %1937 = vmatpush1.msra.mxu0 %v655
    %1938 = vmatprep.subr.mxu0 %v660
    %1939 = vmatpush1.msra.mxu0 %v659
    %1940 = vmatprep.subr.mxu0 %v664
    %1941 = vmatpush1.msra.mxu0 %v663
    %1942 = vmatprep.subr.mxu0 %v668
    %1943 = vmatpush1.msra.mxu0 %v667
    %1944 = vmatprep.subr.mxu0 %v672
    %1945 = vmatpush1.msra.mxu0 %v671
    %1946 = vmatprep.subr.mxu0 %v676
    %1947 = vmatpush1.msra.mxu0 %v675
    %1948 = vmatprep.subr.mxu0 %v680
    %1949 = vmatpush1.msra.mxu0 %v679
    %1950 = vmatprep.subr.mxu0 %v684
    %1951 = vmatpush1.msra.mxu0 %v683
    %1952 = vmatprep.subr.mxu0 %v688
    %1953 = vmatpush1.msra.mxu0 %v687
    %1954 = vmatprep.subr.mxu0 %v692
    %1955 = vmatpush1.msra.mxu0 %v691
    %1956 = vmatprep.subr.mxu0 %v696
    %1957 = vmatpush1.msra.mxu0 %v695
    %1958 = vmatprep.subr.mxu0 %v700
    %1959 = vmatpush1.msra.mxu0 %v699
    %1960 = vmatprep.subr.mxu0 0.0
    %1961 = vmatpush1.msra.mxu0 0.0
    %1962 = vmatprep.subr.mxu0 0.0
    %1963 = vmatpush1.msra.mxu0 0.0
    %1964 = vmatprep.subr.mxu0 0.0
    %1965 = vmatpush1.msra.mxu0 0.0
    %1966 = vmatprep.subr.mxu0 0.0
    %1967 = vmatpush1.msra.mxu0 0.0
    %1968 = vmatprep.subr.mxu0 0.0
    %1969 = vmatpush1.msra.mxu0 0.0
    %1970 = vmatprep.subr.mxu0 0.0
    %1971 = vmatpush1.msra.mxu0 0.0
    %1972 = vmatprep.subr.mxu0 0.0
    %1973 = vmatpush1.msra.mxu0 0.0
    %1974 = vmatprep.subr.mxu0 0.0
    %1975 = vmatpush1.msra.mxu0 0.0
    %1976 = vmatprep.subr.mxu0 0.0
    %1977 = vmatpush1.msra.mxu0 0.0
    %1978 = vmatprep.subr.mxu0 0.0
    %1979 = vmatpush1.msra.mxu0 0.0
    %1980 = vmatprep.subr.mxu0 0.0
    %1981 = vmatpush1.msra.mxu0 0.0
    %1982 = vmatprep.subr.mxu0 0.0
    %1983 = vmatpush1.msra.mxu0 0.0
    %1984 = vmatprep.subr.mxu0 0.0
    %1985 = vmatpush1.msra.mxu0 0.0
    %1986 = vmatprep.subr.mxu0 0.0
    %1987 = vmatpush1.msra.mxu0 0.0
    %1988 = vmatprep.subr.mxu0 0.0
    %1989 = vmatpush1.msra.mxu0 0.0
    %1990 = vmatprep.subr.mxu0 0.0
    %1991 = vmatpush1.msra.mxu0 0.0
    %1992 = vmatprep.mubr.f32.mxu0 0.0
    %1993 = vmatmul.mubr.f32.gmra.mrb[0].mxu0 %v1922
    %v1994 = vpop.f32.mrb[0].mxu0
    %v1995 = vadd.f32 0.0, %v1994
    %v1996 = vpop.f32.mrb[0].mxu0
    %v1997 = vadd.f32 0.0, %v1996
    %1998 = vdwg.mxu0
    %1999 = vmatprep.subr.mxu0 %v642
    %2000 = vmatpush1.msra.mxu0 %v641
    %2001 = vmatprep.subr.mxu0 %v646
    %2002 = vmatpush1.msra.mxu0 %v645
    %2003 = vmatprep.subr.mxu0 %v650
    %2004 = vmatpush1.msra.mxu0 %v649
    %2005 = vmatprep.subr.mxu0 %v654
    %2006 = vmatpush1.msra.mxu0 %v653
    %2007 = vmatprep.subr.mxu0 %v658
    %2008 = vmatpush1.msra.mxu0 %v657
    %2009 = vmatprep.subr.mxu0 %v662
    %2010 = vmatpush1.msra.mxu0 %v661
    %2011 = vmatprep.subr.mxu0 %v666
    %2012 = vmatpush1.msra.mxu0 %v665
    %2013 = vmatprep.subr.mxu0 %v670
    %2014 = vmatpush1.msra.mxu0 %v669
    %2015 = vmatprep.subr.mxu0 %v674
    %2016 = vmatpush1.msra.mxu0 %v673
    %2017 = vmatprep.subr.mxu0 %v678
    %2018 = vmatpush1.msra.mxu0 %v677
    %2019 = vmatprep.subr.mxu0 %v682
    %2020 = vmatpush1.msra.mxu0 %v681
    %2021 = vmatprep.subr.mxu0 %v686
    %2022 = vmatpush1.msra.mxu0 %v685
    %2023 = vmatprep.subr.mxu0 %v690
    %2024 = vmatpush1.msra.mxu0 %v689
    %2025 = vmatprep.subr.mxu0 %v694
    %2026 = vmatpush1.msra.mxu0 %v693
    %2027 = vmatprep.subr.mxu0 %v698
    %2028 = vmatpush1.msra.mxu0 %v697
    %2029 = vmatprep.subr.mxu0 %v702
    %2030 = vmatpush1.msra.mxu0 %v701
    %2031 = vmatprep.subr.mxu0 0.0
    %2032 = vmatpush1.msra.mxu0 0.0
    %2033 = vmatprep.subr.mxu0 0.0
    %2034 = vmatpush1.msra.mxu0 0.0
    %2035 = vmatprep.subr.mxu0 0.0
    %2036 = vmatpush1.msra.mxu0 0.0
    %2037 = vmatprep.subr.mxu0 0.0
    %2038 = vmatpush1.msra.mxu0 0.0
    %2039 = vmatprep.subr.mxu0 0.0
    %2040 = vmatpush1.msra.mxu0 0.0
    %2041 = vmatprep.subr.mxu0 0.0
    %2042 = vmatpush1.msra.mxu0 0.0
    %2043 = vmatprep.subr.mxu0 0.0
    %2044 = vmatpush1.msra.mxu0 0.0
    %2045 = vmatprep.subr.mxu0 0.0
    %2046 = vmatpush1.msra.mxu0 0.0
    %2047 = vmatprep.subr.mxu0 0.0
    %2048 = vmatpush1.msra.mxu0 0.0
    %2049 = vmatprep.subr.mxu0 0.0
    %2050 = vmatpush1.msra.mxu0 0.0
    %2051 = vmatprep.subr.mxu0 0.0
    %2052 = vmatpush1.msra.mxu0 0.0
    %2053 = vmatprep.subr.mxu0 0.0
    %2054 = vmatpush1.msra.mxu0 0.0
    %2055 = vmatprep.subr.mxu0 0.0
    %2056 = vmatpush1.msra.mxu0 0.0
    %2057 = vmatprep.subr.mxu0 0.0
    %2058 = vmatpush1.msra.mxu0 0.0
    %2059 = vmatprep.subr.mxu0 0.0
    %2060 = vmatpush1.msra.mxu0 0.0
    %2061 = vmatprep.subr.mxu0 0.0
    %2062 = vmatpush1.msra.mxu0 0.0
    %2063 = vmatprep.mubr.f32.mxu0 0.0
    %2064 = vmatmul.mubr.f32.gmra.mrb[0].mxu0 %v1922
    %v2065 = vpop.f32.mrb[0].mxu0
    %v2066 = vadd.f32 0.0, %v2065
    %v2067 = vpop.f32.mrb[0].mxu0
    %v2068 = vadd.f32 0.0, %v2067
    %2069 = vdwg.mxu0
    %v2070 = vadd.f32 %v1924, %v1995
    %v2071 = vadd.f32 %v1925, %v1997
    %v2072 = vadd.f32 %v1926, %v2066
    %v2073 = vadd.f32 %v1927, %v2068
    %v2074 = vxor.u32 %v2070, 2147483648
    %v2075 = vxor.u32 %v2071, 2147483648
    %v2076 = vxor.u32 %v2072, 2147483648
    %v2077 = vmul.f32 %v2074, 1.442695
    %v2078 = vpow.pop %v2077
    %v2079 = vmul.f32 %v2075, 1.442695
    %v2080 = vpow.pop %v2079
    %v2081 = vmul.f32 %v2076, 1.442695
    %v2082 = vpow.pop %v2081
    %v2083 = vadd.f32 %v2078, 1.0
    %v2084 = vadd.f32 %v2080, 1.0
    %v2085 = vadd.f32 %v2082, 1.0
    %v2086 = vrcp.pop %v2083
    %v2087 = vmul.f32 1.0, %v2086
    %v2088 = vrcp.pop %v2084
    %v2089 = vmul.f32 1.0, %v2088
    %v2090 = vrcp.pop %v2085
    %v2091 = vmul.f32 1.0, %v2090
    %v2092 = vtanh.pop %v2073
    %v2093 = vmul.f32 %v2089, %v1920
    %v2094 = vmul.f32 %v2087, %v2092
    %v2095 = vadd.f32 %v2093, %v2094
    %v2096 = vtanh.pop %v2095
    %v2097 = vmul.f32 %v2091, %v2096
    %s2098 = scalar_lea.vmem [#allocation2], 256
    %v2099 = vld [vmem:[%s2098] sm:$0xff]
    %v2100 = vld [vmem:[%s2098 + $0x8] sm:$0xff]
    %v2101 = vld [vmem:[%s2098 + $0x10] sm:$0xff]
    %v2102 = vld [vmem:[%s2098 + $0x18] sm:$0xff]
    %2103 = vmatprep.subr.mxu0 %v640
    %2104 = vmatpush1.msra.mxu0 %v639
    %2105 = vmatprep.subr.mxu0 %v644
    %2106 = vmatpush1.msra.mxu0 %v643
    %2107 = vmatprep.subr.mxu0 %v648
    %2108 = vmatpush1.msra.mxu0 %v647
    %2109 = vmatprep.subr.mxu0 %v652
    %2110 = vmatpush1.msra.mxu0 %v651
    %2111 = vmatprep.subr.mxu0 %v656
    %2112 = vmatpush1.msra.mxu0 %v655
    %2113 = vmatprep.subr.mxu0 %v660
    %2114 = vmatpush1.msra.mxu0 %v659
    %2115 = vmatprep.subr.mxu0 %v664
    %2116 = vmatpush1.msra.mxu0 %v663
    %2117 = vmatprep.subr.mxu0 %v668
    %2118 = vmatpush1.msra.mxu0 %v667
    %2119 = vmatprep.subr.mxu0 %v672
    %2120 = vmatpush1.msra.mxu0 %v671
    %2121 = vmatprep.subr.mxu0 %v676
    %2122 = vmatpush1.msra.mxu0 %v675
    %2123 = vmatprep.subr.mxu0 %v680
    %2124 = vmatpush1.msra.mxu0 %v679
    %2125 = vmatprep.subr.mxu0 %v684
    %2126 = vmatpush1.msra.mxu0 %v683
    %2127 = vmatprep.subr.mxu0 %v688
    %2128 = vmatpush1.msra.mxu0 %v687
    %2129 = vmatprep.subr.mxu0 %v692
    %2130 = vmatpush1.msra.mxu0 %v691
    %2131 = vmatprep.subr.mxu0 %v696
    %2132 = vmatpush1.msra.mxu0 %v695
    %2133 = vmatprep.subr.mxu0 %v700
    %2134 = vmatpush1.msra.mxu0 %v699
    %2135 = vmatprep.subr.mxu0 0.0
    %2136 = vmatpush1.msra.mxu0 0.0
    %2137 = vmatprep.subr.mxu0 0.0
    %2138 = vmatpush1.msra.mxu0 0.0
    %2139 = vmatprep.subr.mxu0 0.0
    %2140 = vmatpush1.msra.mxu0 0.0
    %2141 = vmatprep.subr.mxu0 0.0
    %2142 = vmatpush1.msra.mxu0 0.0
    %2143 = vmatprep.subr.mxu0 0.0
    %2144 = vmatpush1.msra.mxu0 0.0
    %2145 = vmatprep.subr.mxu0 0.0
    %2146 = vmatpush1.msra.mxu0 0.0
    %2147 = vmatprep.subr.mxu0 0.0
    %2148 = vmatpush1.msra.mxu0 0.0
    %2149 = vmatprep.subr.mxu0 0.0
    %2150 = vmatpush1.msra.mxu0 0.0
    %2151 = vmatprep.subr.mxu0 0.0
    %2152 = vmatpush1.msra.mxu0 0.0
    %2153 = vmatprep.subr.mxu0 0.0
    %2154 = vmatpush1.msra.mxu0 0.0
    %2155 = vmatprep.subr.mxu0 0.0
    %2156 = vmatpush1.msra.mxu0 0.0
    %2157 = vmatprep.subr.mxu0 0.0
    %2158 = vmatpush1.msra.mxu0 0.0
    %2159 = vmatprep.subr.mxu0 0.0
    %2160 = vmatpush1.msra.mxu0 0.0
    %2161 = vmatprep.subr.mxu0 0.0
    %2162 = vmatpush1.msra.mxu0 0.0
    %2163 = vmatprep.subr.mxu0 0.0
    %2164 = vmatpush1.msra.mxu0 0.0
    %2165 = vmatprep.subr.mxu0 0.0
    %2166 = vmatpush1.msra.mxu0 0.0
    %2167 = vmatprep.mubr.f32.mxu0 0.0
    %2168 = vmatmul.mubr.f32.gmra.mrb[0].mxu0 %v2097
    %v2169 = vpop.f32.mrb[0].mxu0
    %v2170 = vadd.f32 0.0, %v2169
    %v2171 = vpop.f32.mrb[0].mxu0
    %v2172 = vadd.f32 0.0, %v2171
    %2173 = vdwg.mxu0
    %2174 = vmatprep.subr.mxu0 %v642
    %2175 = vmatpush1.msra.mxu0 %v641
    %2176 = vmatprep.subr.mxu0 %v646
    %2177 = vmatpush1.msra.mxu0 %v645
    %2178 = vmatprep.subr.mxu0 %v650
    %2179 = vmatpush1.msra.mxu0 %v649
    %2180 = vmatprep.subr.mxu0 %v654
    %2181 = vmatpush1.msra.mxu0 %v653
    %2182 = vmatprep.subr.mxu0 %v658
    %2183 = vmatpush1.msra.mxu0 %v657
    %2184 = vmatprep.subr.mxu0 %v662
    %2185 = vmatpush1.msra.mxu0 %v661
    %2186 = vmatprep.subr.mxu0 %v666
    %2187 = vmatpush1.msra.mxu0 %v665
    %2188 = vmatprep.subr.mxu0 %v670
    %2189 = vmatpush1.msra.mxu0 %v669
    %2190 = vmatprep.subr.mxu0 %v674
    %2191 = vmatpush1.msra.mxu0 %v673
    %2192 = vmatprep.subr.mxu0 %v678
    %2193 = vmatpush1.msra.mxu0 %v677
    %2194 = vmatprep.subr.mxu0 %v682
    %2195 = vmatpush1.msra.mxu0 %v681
    %2196 = vmatprep.subr.mxu0 %v686
    %2197 = vmatpush1.msra.mxu0 %v685
    %2198 = vmatprep.subr.mxu0 %v690
    %2199 = vmatpush1.msra.mxu0 %v689
    %2200 = vmatprep.subr.mxu0 %v694
    %2201 = vmatpush1.msra.mxu0 %v693
    %2202 = vmatprep.subr.mxu0 %v698
    %2203 = vmatpush1.msra.mxu0 %v697
    %2204 = vmatprep.subr.mxu0 %v702
    %2205 = vmatpush1.msra.mxu0 %v701
    %2206 = vmatprep.subr.mxu0 0.0
    %2207 = vmatpush1.msra.mxu0 0.0
    %2208 = vmatprep.subr.mxu0 0.0
    %2209 = vmatpush1.msra.mxu0 0.0
    %2210 = vmatprep.subr.mxu0 0.0
    %2211 = vmatpush1.msra.mxu0 0.0
    %2212 = vmatprep.subr.mxu0 0.0
    %2213 = vmatpush1.msra.mxu0 0.0
    %2214 = vmatprep.subr.mxu0 0.0
    %2215 = vmatpush1.msra.mxu0 0.0
    %2216 = vmatprep.subr.mxu0 0.0
    %2217 = vmatpush1.msra.mxu0 0.0
    %2218 = vmatprep.subr.mxu0 0.0
    %2219 = vmatpush1.msra.mxu0 0.0
    %2220 = vmatprep.subr.mxu0 0.0
    %2221 = vmatpush1.msra.mxu0 0.0
    %2222 = vmatprep.subr.mxu0 0.0
    %2223 = vmatpush1.msra.mxu0 0.0
    %2224 = vmatprep.subr.mxu0 0.0
    %2225 = vmatpush1.msra.mxu0 0.0
    %2226 = vmatprep.subr.mxu0 0.0
    %2227 = vmatpush1.msra.mxu0 0.0
    %2228 = vmatprep.subr.mxu0 0.0
    %2229 = vmatpush1.msra.mxu0 0.0
    %2230 = vmatprep.subr.mxu0 0.0
    %2231 = vmatpush1.msra.mxu0 0.0
    %2232 = vmatprep.subr.mxu0 0.0
    %2233 = vmatpush1.msra.mxu0 0.0
    %2234 = vmatprep.subr.mxu0 0.0
    %2235 = vmatpush1.msra.mxu0 0.0
    %2236 = vmatprep.subr.mxu0 0.0
    %2237 = vmatpush1.msra.mxu0 0.0
    %2238 = vmatprep.mubr.f32.mxu0 0.0
    %2239 = vmatmul.mubr.f32.gmra.mrb[0].mxu0 %v2097
    %v2240 = vpop.f32.mrb[0].mxu0
    %v2241 = vadd.f32 0.0, %v2240
    %v2242 = vpop.f32.mrb[0].mxu0
    %v2243 = vadd.f32 0.0, %v2242
    %2244 = vdwg.mxu0
    %v2245 = vadd.f32 %v2099, %v2170
    %v2246 = vadd.f32 %v2100, %v2172
    %v2247 = vadd.f32 %v2101, %v2241
    %v2248 = vadd.f32 %v2102, %v2243
    %v2249 = vxor.u32 %v2245, 2147483648
    %v2250 = vxor.u32 %v2246, 2147483648
    %v2251 = vxor.u32 %v2247, 2147483648
    %v2252 = vmul.f32 %v2249, 1.442695
    %v2253 = vpow.pop %v2252
    %v2254 = vmul.f32 %v2250, 1.442695
    %v2255 = vpow.pop %v2254
    %v2256 = vmul.f32 %v2251, 1.442695
    %v2257 = vpow.pop %v2256
    %v2258 = vadd.f32 %v2253, 1.0
    %v2259 = vadd.f32 %v2255, 1.0
    %v2260 = vadd.f32 %v2257, 1.0
    %v2261 = vrcp.pop %v2258
    %v2262 = vmul.f32 1.0, %v2261
    %v2263 = vrcp.pop %v2259
    %v2264 = vmul.f32 1.0, %v2263
    %v2265 = vrcp.pop %v2260
    %v2266 = vmul.f32 1.0, %v2265
    %v2267 = vtanh.pop %v2248
    %v2268 = vmul.f32 %v2264, %v2095
    %v2269 = vmul.f32 %v2262, %v2267
    %v2270 = vadd.f32 %v2268, %v2269
    %v2271 = vtanh.pop %v2270
    %v2272 = vmul.f32 %v2266, %v2271
    %s2273 = scalar_lea.vmem [#allocation2], 288
    %v2274 = vld [vmem:[%s2273] sm:$0xff]
    %v2275 = vld [vmem:[%s2273 + $0x8] sm:$0xff]
    %v2276 = vld [vmem:[%s2273 + $0x10] sm:$0xff]
    %v2277 = vld [vmem:[%s2273 + $0x18] sm:$0xff]
    %2278 = vmatprep.subr.mxu0 %v640
    %2279 = vmatpush1.msra.mxu0 %v639
    %2280 = vmatprep.subr.mxu0 %v644
    %2281 = vmatpush1.msra.mxu0 %v643
    %2282 = vmatprep.subr.mxu0 %v648
    %2283 = vmatpush1.msra.mxu0 %v647
    %2284 = vmatprep.subr.mxu0 %v652
    %2285 = vmatpush1.msra.mxu0 %v651
    %2286 = vmatprep.subr.mxu0 %v656
    %2287 = vmatpush1.msra.mxu0 %v655
    %2288 = vmatprep.subr.mxu0 %v660
    %2289 = vmatpush1.msra.mxu0 %v659
    %2290 = vmatprep.subr.mxu0 %v664
    %2291 = vmatpush1.msra.mxu0 %v663
    %2292 = vmatprep.subr.mxu0 %v668
    %2293 = vmatpush1.msra.mxu0 %v667
    %2294 = vmatprep.subr.mxu0 %v672
    %2295 = vmatpush1.msra.mxu0 %v671
    %2296 = vmatprep.subr.mxu0 %v676
    %2297 = vmatpush1.msra.mxu0 %v675
    %2298 = vmatprep.subr.mxu0 %v680
    %2299 = vmatpush1.msra.mxu0 %v679
    %2300 = vmatprep.subr.mxu0 %v684
    %2301 = vmatpush1.msra.mxu0 %v683
    %2302 = vmatprep.subr.mxu0 %v688
    %2303 = vmatpush1.msra.mxu0 %v687
    %2304 = vmatprep.subr.mxu0 %v692
    %2305 = vmatpush1.msra.mxu0 %v691
    %2306 = vmatprep.subr.mxu0 %v696
    %2307 = vmatpush1.msra.mxu0 %v695
    %2308 = vmatprep.subr.mxu0 %v700
    %2309 = vmatpush1.msra.mxu0 %v699
    %2310 = vmatprep.subr.mxu0 0.0
    %2311 = vmatpush1.msra.mxu0 0.0
    %2312 = vmatprep.subr.mxu0 0.0
    %2313 = vmatpush1.msra.mxu0 0.0
    %2314 = vmatprep.subr.mxu0 0.0
    %2315 = vmatpush1.msra.mxu0 0.0
    %2316 = vmatprep.subr.mxu0 0.0
    %2317 = vmatpush1.msra.mxu0 0.0
    %2318 = vmatprep.subr.mxu0 0.0
    %2319 = vmatpush1.msra.mxu0 0.0
    %2320 = vmatprep.subr.mxu0 0.0
    %2321 = vmatpush1.msra.mxu0 0.0
    %2322 = vmatprep.subr.mxu0 0.0
    %2323 = vmatpush1.msra.mxu0 0.0
    %2324 = vmatprep.subr.mxu0 0.0
    %2325 = vmatpush1.msra.mxu0 0.0
    %2326 = vmatprep.subr.mxu0 0.0
    %2327 = vmatpush1.msra.mxu0 0.0
    %2328 = vmatprep.subr.mxu0 0.0
    %2329 = vmatpush1.msra.mxu0 0.0
    %2330 = vmatprep.subr.mxu0 0.0
    %2331 = vmatpush1.msra.mxu0 0.0
    %2332 = vmatprep.subr.mxu0 0.0
    %2333 = vmatpush1.msra.mxu0 0.0
    %2334 = vmatprep.subr.mxu0 0.0
    %2335 = vmatpush1.msra.mxu0 0.0
    %2336 = vmatprep.subr.mxu0 0.0
    %2337 = vmatpush1.msra.mxu0 0.0
    %2338 = vmatprep.subr.mxu0 0.0
    %2339 = vmatpush1.msra.mxu0 0.0
    %2340 = vmatprep.subr.mxu0 0.0
    %2341 = vmatpush1.msra.mxu0 0.0
    %2342 = vmatprep.mubr.f32.mxu0 0.0
    %2343 = vmatmul.mubr.f32.gmra.mrb[0].mxu0 %v2272
    %v2344 = vpop.f32.mrb[0].mxu0
    %v2345 = vadd.f32 0.0, %v2344
    %v2346 = vpop.f32.mrb[0].mxu0
    %v2347 = vadd.f32 0.0, %v2346
    %2348 = vdwg.mxu0
    %2349 = vmatprep.subr.mxu0 %v642
    %2350 = vmatpush1.msra.mxu0 %v641
    %2351 = vmatprep.subr.mxu0 %v646
    %2352 = vmatpush1.msra.mxu0 %v645
    %2353 = vmatprep.subr.mxu0 %v650
    %2354 = vmatpush1.msra.mxu0 %v649
    %2355 = vmatprep.subr.mxu0 %v654
    %2356 = vmatpush1.msra.mxu0 %v653
    %2357 = vmatprep.subr.mxu0 %v658
    %2358 = vmatpush1.msra.mxu0 %v657
    %2359 = vmatprep.subr.mxu0 %v662
    %2360 = vmatpush1.msra.mxu0 %v661
    %2361 = vmatprep.subr.mxu0 %v666
    %2362 = vmatpush1.msra.mxu0 %v665
    %2363 = vmatprep.subr.mxu0 %v670
    %2364 = vmatpush1.msra.mxu0 %v669
    %2365 = vmatprep.subr.mxu0 %v674
    %2366 = vmatpush1.msra.mxu0 %v673
    %2367 = vmatprep.subr.mxu0 %v678
    %2368 = vmatpush1.msra.mxu0 %v677
    %2369 = vmatprep.subr.mxu0 %v682
    %2370 = vmatpush1.msra.mxu0 %v681
    %2371 = vmatprep.subr.mxu0 %v686
    %2372 = vmatpush1.msra.mxu0 %v685
    %2373 = vmatprep.subr.mxu0 %v690
    %2374 = vmatpush1.msra.mxu0 %v689
    %2375 = vmatprep.subr.mxu0 %v694
    %2376 = vmatpush1.msra.mxu0 %v693
    %2377 = vmatprep.subr.mxu0 %v698
    %2378 = vmatpush1.msra.mxu0 %v697
    %2379 = vmatprep.subr.mxu0 %v702
    %2380 = vmatpush1.msra.mxu0 %v701
    %2381 = vmatprep.subr.mxu0 0.0
    %2382 = vmatpush1.msra.mxu0 0.0
    %2383 = vmatprep.subr.mxu0 0.0
    %2384 = vmatpush1.msra.mxu0 0.0
    %2385 = vmatprep.subr.mxu0 0.0
    %2386 = vmatpush1.msra.mxu0 0.0
    %2387 = vmatprep.subr.mxu0 0.0
    %2388 = vmatpush1.msra.mxu0 0.0
    %2389 = vmatprep.subr.mxu0 0.0
    %2390 = vmatpush1.msra.mxu0 0.0
    %2391 = vmatprep.subr.mxu0 0.0
    %2392 = vmatpush1.msra.mxu0 0.0
    %2393 = vmatprep.subr.mxu0 0.0
    %2394 = vmatpush1.msra.mxu0 0.0
    %2395 = vmatprep.subr.mxu0 0.0
    %2396 = vmatpush1.msra.mxu0 0.0
    %2397 = vmatprep.subr.mxu0 0.0
    %2398 = vmatpush1.msra.mxu0 0.0
    %2399 = vmatprep.subr.mxu0 0.0
    %2400 = vmatpush1.msra.mxu0 0.0
    %2401 = vmatprep.subr.mxu0 0.0
    %2402 = vmatpush1.msra.mxu0 0.0
    %2403 = vmatprep.subr.mxu0 0.0
    %2404 = vmatpush1.msra.mxu0 0.0
    %2405 = vmatprep.subr.mxu0 0.0
    %2406 = vmatpush1.msra.mxu0 0.0
    %2407 = vmatprep.subr.mxu0 0.0
    %2408 = vmatpush1.msra.mxu0 0.0
    %2409 = vmatprep.subr.mxu0 0.0
    %2410 = vmatpush1.msra.mxu0 0.0
    %2411 = vmatprep.subr.mxu0 0.0
    %2412 = vmatpush1.msra.mxu0 0.0
    %2413 = vmatprep.mubr.f32.mxu0 0.0
    %2414 = vmatmul.mubr.f32.gmra.mrb[0].mxu0 %v2272
    %v2415 = vpop.f32.mrb[0].mxu0
    %v2416 = vadd.f32 0.0, %v2415
    %v2417 = vpop.f32.mrb[0].mxu0
    %v2418 = vadd.f32 0.0, %v2417
    %2419 = vdwg.mxu0
    %v2420 = vadd.f32 %v2274, %v2345
    %v2421 = vadd.f32 %v2275, %v2347
    %v2422 = vadd.f32 %v2276, %v2416
    %v2423 = vadd.f32 %v2277, %v2418
    %v2424 = vxor.u32 %v2420, 2147483648
    %v2425 = vxor.u32 %v2421, 2147483648
    %v2426 = vxor.u32 %v2422, 2147483648
    %v2427 = vmul.f32 %v2424, 1.442695
    %v2428 = vpow.pop %v2427
    %v2429 = vmul.f32 %v2425, 1.442695
    %v2430 = vpow.pop %v2429
    %v2431 = vmul.f32 %v2426, 1.442695
    %v2432 = vpow.pop %v2431
    %v2433 = vadd.f32 %v2428, 1.0
    %v2434 = vadd.f32 %v2430, 1.0
    %v2435 = vadd.f32 %v2432, 1.0
    %v2436 = vrcp.pop %v2433
    %v2437 = vmul.f32 1.0, %v2436
    %v2438 = vrcp.pop %v2434
    %v2439 = vmul.f32 1.0, %v2438
    %v2440 = vrcp.pop %v2435
    %v2441 = vmul.f32 1.0, %v2440
    %v2442 = vtanh.pop %v2423
    %v2443 = vmul.f32 %v2439, %v2270
    %v2444 = vmul.f32 %v2437, %v2442
    %v2445 = vadd.f32 %v2443, %v2444
    %v2446 = vtanh.pop %v2445
    %v2447 = vmul.f32 %v2441, %v2446
    %s2448 = scalar_lea.vmem [#allocation2], 320
    %v2449 = vld [vmem:[%s2448] sm:$0xff]
    %v2450 = vld [vmem:[%s2448 + $0x8] sm:$0xff]
    %v2451 = vld [vmem:[%s2448 + $0x10] sm:$0xff]
    %v2452 = vld [vmem:[%s2448 + $0x18] sm:$0xff]
    %2453 = vmatprep.subr.mxu0 %v640
    %2454 = vmatpush1.msra.mxu0 %v639
    %2455 = vmatprep.subr.mxu0 %v644
    %2456 = vmatpush1.msra.mxu0 %v643
    %2457 = vmatprep.subr.mxu0 %v648
    %2458 = vmatpush1.msra.mxu0 %v647
    %2459 = vmatprep.subr.mxu0 %v652
    %2460 = vmatpush1.msra.mxu0 %v651
    %2461 = vmatprep.subr.mxu0 %v656
    %2462 = vmatpush1.msra.mxu0 %v655
    %2463 = vmatprep.subr.mxu0 %v660
    %2464 = vmatpush1.msra.mxu0 %v659
    %2465 = vmatprep.subr.mxu0 %v664
    %2466 = vmatpush1.msra.mxu0 %v663
    %2467 = vmatprep.subr.mxu0 %v668
    %2468 = vmatpush1.msra.mxu0 %v667
    %2469 = vmatprep.subr.mxu0 %v672
    %2470 = vmatpush1.msra.mxu0 %v671
    %2471 = vmatprep.subr.mxu0 %v676
    %2472 = vmatpush1.msra.mxu0 %v675
    %2473 = vmatprep.subr.mxu0 %v680
    %2474 = vmatpush1.msra.mxu0 %v679
    %2475 = vmatprep.subr.mxu0 %v684
    %2476 = vmatpush1.msra.mxu0 %v683
    %2477 = vmatprep.subr.mxu0 %v688
    %2478 = vmatpush1.msra.mxu0 %v687
    %2479 = vmatprep.subr.mxu0 %v692
    %2480 = vmatpush1.msra.mxu0 %v691
    %2481 = vmatprep.subr.mxu0 %v696
    %2482 = vmatpush1.msra.mxu0 %v695
    %2483 = vmatprep.subr.mxu0 %v700
    %2484 = vmatpush1.msra.mxu0 %v699
    %2485 = vmatprep.subr.mxu0 0.0
    %2486 = vmatpush1.msra.mxu0 0.0
    %2487 = vmatprep.subr.mxu0 0.0
    %2488 = vmatpush1.msra.mxu0 0.0
    %2489 = vmatprep.subr.mxu0 0.0
    %2490 = vmatpush1.msra.mxu0 0.0
    %2491 = vmatprep.subr.mxu0 0.0
    %2492 = vmatpush1.msra.mxu0 0.0
    %2493 = vmatprep.subr.mxu0 0.0
    %2494 = vmatpush1.msra.mxu0 0.0
    %2495 = vmatprep.subr.mxu0 0.0
    %2496 = vmatpush1.msra.mxu0 0.0
    %2497 = vmatprep.subr.mxu0 0.0
    %2498 = vmatpush1.msra.mxu0 0.0
    %2499 = vmatprep.subr.mxu0 0.0
    %2500 = vmatpush1.msra.mxu0 0.0
    %2501 = vmatprep.subr.mxu0 0.0
    %2502 = vmatpush1.msra.mxu0 0.0
    %2503 = vmatprep.subr.mxu0 0.0
    %2504 = vmatpush1.msra.mxu0 0.0
    %2505 = vmatprep.subr.mxu0 0.0
    %2506 = vmatpush1.msra.mxu0 0.0
    %2507 = vmatprep.subr.mxu0 0.0
    %2508 = vmatpush1.msra.mxu0 0.0
    %2509 = vmatprep.subr.mxu0 0.0
    %2510 = vmatpush1.msra.mxu0 0.0
    %2511 = vmatprep.subr.mxu0 0.0
    %2512 = vmatpush1.msra.mxu0 0.0
    %2513 = vmatprep.subr.mxu0 0.0
    %2514 = vmatpush1.msra.mxu0 0.0
    %2515 = vmatprep.subr.mxu0 0.0
    %2516 = vmatpush1.msra.mxu0 0.0
    %2517 = vmatprep.mubr.f32.mxu0 0.0
    %2518 = vmatmul.mubr.f32.gmra.mrb[0].mxu0 %v2447
    %v2519 = vpop.f32.mrb[0].mxu0
    %v2520 = vadd.f32 0.0, %v2519
    %v2521 = vpop.f32.mrb[0].mxu0
    %v2522 = vadd.f32 0.0, %v2521
    %2523 = vdwg.mxu0
    %2524 = vmatprep.subr.mxu0 %v642
    %2525 = vmatpush1.msra.mxu0 %v641
    %2526 = vmatprep.subr.mxu0 %v646
    %2527 = vmatpush1.msra.mxu0 %v645
    %2528 = vmatprep.subr.mxu0 %v650
    %2529 = vmatpush1.msra.mxu0 %v649
    %2530 = vmatprep.subr.mxu0 %v654
    %2531 = vmatpush1.msra.mxu0 %v653
    %2532 = vmatprep.subr.mxu0 %v658
    %2533 = vmatpush1.msra.mxu0 %v657
    %2534 = vmatprep.subr.mxu0 %v662
    %2535 = vmatpush1.msra.mxu0 %v661
    %2536 = vmatprep.subr.mxu0 %v666
    %2537 = vmatpush1.msra.mxu0 %v665
    %2538 = vmatprep.subr.mxu0 %v670
    %2539 = vmatpush1.msra.mxu0 %v669
    %2540 = vmatprep.subr.mxu0 %v674
    %2541 = vmatpush1.msra.mxu0 %v673
    %2542 = vmatprep.subr.mxu0 %v678
    %2543 = vmatpush1.msra.mxu0 %v677
    %2544 = vmatprep.subr.mxu0 %v682
    %2545 = vmatpush1.msra.mxu0 %v681
    %2546 = vmatprep.subr.mxu0 %v686
    %2547 = vmatpush1.msra.mxu0 %v685
    %2548 = vmatprep.subr.mxu0 %v690
    %2549 = vmatpush1.msra.mxu0 %v689
    %2550 = vmatprep.subr.mxu0 %v694
    %2551 = vmatpush1.msra.mxu0 %v693
    %2552 = vmatprep.subr.mxu0 %v698
    %2553 = vmatpush1.msra.mxu0 %v697
    %2554 = vmatprep.subr.mxu0 %v702
    %2555 = vmatpush1.msra.mxu0 %v701
    %2556 = vmatprep.subr.mxu0 0.0
    %2557 = vmatpush1.msra.mxu0 0.0
    %2558 = vmatprep.subr.mxu0 0.0
    %2559 = vmatpush1.msra.mxu0 0.0
    %2560 = vmatprep.subr.mxu0 0.0
    %2561 = vmatpush1.msra.mxu0 0.0
    %2562 = vmatprep.subr.mxu0 0.0
    %2563 = vmatpush1.msra.mxu0 0.0
    %2564 = vmatprep.subr.mxu0 0.0
    %2565 = vmatpush1.msra.mxu0 0.0
    %2566 = vmatprep.subr.mxu0 0.0
    %2567 = vmatpush1.msra.mxu0 0.0
    %2568 = vmatprep.subr.mxu0 0.0
    %2569 = vmatpush1.msra.mxu0 0.0
    %2570 = vmatprep.subr.mxu0 0.0
    %2571 = vmatpush1.msra.mxu0 0.0
    %2572 = vmatprep.subr.mxu0 0.0
    %2573 = vmatpush1.msra.mxu0 0.0
    %2574 = vmatprep.subr.mxu0 0.0
    %2575 = vmatpush1.msra.mxu0 0.0
    %2576 = vmatprep.subr.mxu0 0.0
    %2577 = vmatpush1.msra.mxu0 0.0
    %2578 = vmatprep.subr.mxu0 0.0
    %2579 = vmatpush1.msra.mxu0 0.0
    %2580 = vmatprep.subr.mxu0 0.0
    %2581 = vmatpush1.msra.mxu0 0.0
    %2582 = vmatprep.subr.mxu0 0.0
    %2583 = vmatpush1.msra.mxu0 0.0
    %2584 = vmatprep.subr.mxu0 0.0
    %2585 = vmatpush1.msra.mxu0 0.0
    %2586 = vmatprep.subr.mxu0 0.0
    %2587 = vmatpush1.msra.mxu0 0.0
    %2588 = vmatprep.mubr.f32.mxu0 0.0
    %2589 = vmatmul.mubr.f32.gmra.mrb[0].mxu0 %v2447
    %v2590 = vpop.f32.mrb[0].mxu0
    %v2591 = vadd.f32 0.0, %v2590
    %v2592 = vpop.f32.mrb[0].mxu0
    %v2593 = vadd.f32 0.0, %v2592
    %2594 = vdwg.mxu0
    %v2595 = vadd.f32 %v2449, %v2520
    %v2596 = vadd.f32 %v2450, %v2522
    %v2597 = vadd.f32 %v2451, %v2591
    %v2598 = vadd.f32 %v2452, %v2593
    %v2599 = vxor.u32 %v2595, 2147483648
    %v2600 = vxor.u32 %v2596, 2147483648
    %v2601 = vxor.u32 %v2597, 2147483648
    %v2602 = vmul.f32 %v2599, 1.442695
    %v2603 = vpow.pop %v2602
    %v2604 = vmul.f32 %v2600, 1.442695
    %v2605 = vpow.pop %v2604
    %v2606 = vmul.f32 %v2601, 1.442695
    %v2607 = vpow.pop %v2606
    %v2608 = vadd.f32 %v2603, 1.0
    %v2609 = vadd.f32 %v2605, 1.0
    %v2610 = vadd.f32 %v2607, 1.0
    %v2611 = vrcp.pop %v2608
    %v2612 = vmul.f32 1.0, %v2611
    %v2613 = vrcp.pop %v2609
    %v2614 = vmul.f32 1.0, %v2613
    %v2615 = vrcp.pop %v2610
    %v2616 = vmul.f32 1.0, %v2615
    %v2617 = vtanh.pop %v2598
    %v2618 = vmul.f32 %v2614, %v2445
    %v2619 = vmul.f32 %v2612, %v2617
    %v2620 = vadd.f32 %v2618, %v2619
    %v2621 = vtanh.pop %v2620
    %v2622 = vmul.f32 %v2616, %v2621
    %s2623 = scalar_lea.vmem [#allocation2], 352
    %v2624 = vld [vmem:[%s2623] sm:$0xff]
    %v2625 = vld [vmem:[%s2623 + $0x8] sm:$0xff]
    %v2626 = vld [vmem:[%s2623 + $0x10] sm:$0xff]
    %v2627 = vld [vmem:[%s2623 + $0x18] sm:$0xff]
    %2628 = vmatprep.subr.mxu0 %v640
    %2629 = vmatpush1.msra.mxu0 %v639
    %2630 = vmatprep.subr.mxu0 %v644
    %2631 = vmatpush1.msra.mxu0 %v643
    %2632 = vmatprep.subr.mxu0 %v648
    %2633 = vmatpush1.msra.mxu0 %v647
    %2634 = vmatprep.subr.mxu0 %v652
    %2635 = vmatpush1.msra.mxu0 %v651
    %2636 = vmatprep.subr.mxu0 %v656
    %2637 = vmatpush1.msra.mxu0 %v655
    %2638 = vmatprep.subr.mxu0 %v660
    %2639 = vmatpush1.msra.mxu0 %v659
    %2640 = vmatprep.subr.mxu0 %v664
    %2641 = vmatpush1.msra.mxu0 %v663
    %2642 = vmatprep.subr.mxu0 %v668
    %2643 = vmatpush1.msra.mxu0 %v667
    %2644 = vmatprep.subr.mxu0 %v672
    %2645 = vmatpush1.msra.mxu0 %v671
    %2646 = vmatprep.subr.mxu0 %v676
    %2647 = vmatpush1.msra.mxu0 %v675
    %2648 = vmatprep.subr.mxu0 %v680
    %2649 = vmatpush1.msra.mxu0 %v679
    %2650 = vmatprep.subr.mxu0 %v684
    %2651 = vmatpush1.msra.mxu0 %v683
    %2652 = vmatprep.subr.mxu0 %v688
    %2653 = vmatpush1.msra.mxu0 %v687
    %2654 = vmatprep.subr.mxu0 %v692
    %2655 = vmatpush1.msra.mxu0 %v691
    %2656 = vmatprep.subr.mxu0 %v696
    %2657 = vmatpush1.msra.mxu0 %v695
    %2658 = vmatprep.subr.mxu0 %v700
    %2659 = vmatpush1.msra.mxu0 %v699
    %2660 = vmatprep.subr.mxu0 0.0
    %2661 = vmatpush1.msra.mxu0 0.0
    %2662 = vmatprep.subr.mxu0 0.0
    %2663 = vmatpush1.msra.mxu0 0.0
    %2664 = vmatprep.subr.mxu0 0.0
    %2665 = vmatpush1.msra.mxu0 0.0
    %2666 = vmatprep.subr.mxu0 0.0
    %2667 = vmatpush1.msra.mxu0 0.0
    %2668 = vmatprep.subr.mxu0 0.0
    %2669 = vmatpush1.msra.mxu0 0.0
    %2670 = vmatprep.subr.mxu0 0.0
    %2671 = vmatpush1.msra.mxu0 0.0
    %2672 = vmatprep.subr.mxu0 0.0
    %2673 = vmatpush1.msra.mxu0 0.0
    %2674 = vmatprep.subr.mxu0 0.0
    %2675 = vmatpush1.msra.mxu0 0.0
    %2676 = vmatprep.subr.mxu0 0.0
    %2677 = vmatpush1.msra.mxu0 0.0
    %2678 = vmatprep.subr.mxu0 0.0
    %2679 = vmatpush1.msra.mxu0 0.0
    %2680 = vmatprep.subr.mxu0 0.0
    %2681 = vmatpush1.msra.mxu0 0.0
    %2682 = vmatprep.subr.mxu0 0.0
    %2683 = vmatpush1.msra.mxu0 0.0
    %2684 = vmatprep.subr.mxu0 0.0
    %2685 = vmatpush1.msra.mxu0 0.0
    %2686 = vmatprep.subr.mxu0 0.0
    %2687 = vmatpush1.msra.mxu0 0.0
    %2688 = vmatprep.subr.mxu0 0.0
    %2689 = vmatpush1.msra.mxu0 0.0
    %2690 = vmatprep.subr.mxu0 0.0
    %2691 = vmatpush1.msra.mxu0 0.0
    %2692 = vmatprep.mubr.f32.mxu0 0.0
    %2693 = vmatmul.mubr.f32.gmra.mrb[0].mxu0 %v2622
    %v2694 = vpop.f32.mrb[0].mxu0
    %v2695 = vadd.f32 0.0, %v2694
    %v2696 = vpop.f32.mrb[0].mxu0
    %v2697 = vadd.f32 0.0, %v2696
    %2698 = vdwg.mxu0
    %2699 = vmatprep.subr.mxu0 %v642
    %2700 = vmatpush1.msra.mxu0 %v641
    %2701 = vmatprep.subr.mxu0 %v646
    %2702 = vmatpush1.msra.mxu0 %v645
    %2703 = vmatprep.subr.mxu0 %v650
    %2704 = vmatpush1.msra.mxu0 %v649
    %2705 = vmatprep.subr.mxu0 %v654
    %2706 = vmatpush1.msra.mxu0 %v653
    %2707 = vmatprep.subr.mxu0 %v658
    %2708 = vmatpush1.msra.mxu0 %v657
    %2709 = vmatprep.subr.mxu0 %v662
    %2710 = vmatpush1.msra.mxu0 %v661
    %2711 = vmatprep.subr.mxu0 %v666
    %2712 = vmatpush1.msra.mxu0 %v665
    %2713 = vmatprep.subr.mxu0 %v670
    %2714 = vmatpush1.msra.mxu0 %v669
    %2715 = vmatprep.subr.mxu0 %v674
    %2716 = vmatpush1.msra.mxu0 %v673
    %2717 = vmatprep.subr.mxu0 %v678
    %2718 = vmatpush1.msra.mxu0 %v677
    %2719 = vmatprep.subr.mxu0 %v682
    %2720 = vmatpush1.msra.mxu0 %v681
    %2721 = vmatprep.subr.mxu0 %v686
    %2722 = vmatpush1.msra.mxu0 %v685
    %2723 = vmatprep.subr.mxu0 %v690
    %2724 = vmatpush1.msra.mxu0 %v689
    %2725 = vmatprep.subr.mxu0 %v694
    %2726 = vmatpush1.msra.mxu0 %v693
    %2727 = vmatprep.subr.mxu0 %v698
    %2728 = vmatpush1.msra.mxu0 %v697
    %2729 = vmatprep.subr.mxu0 %v702
    %2730 = vmatpush1.msra.mxu0 %v701
    %2731 = vmatprep.subr.mxu0 0.0
    %2732 = vmatpush1.msra.mxu0 0.0
    %2733 = vmatprep.subr.mxu0 0.0
    %2734 = vmatpush1.msra.mxu0 0.0
    %2735 = vmatprep.subr.mxu0 0.0
    %2736 = vmatpush1.msra.mxu0 0.0
    %2737 = vmatprep.subr.mxu0 0.0
    %2738 = vmatpush1.msra.mxu0 0.0
    %2739 = vmatprep.subr.mxu0 0.0
    %2740 = vmatpush1.msra.mxu0 0.0
    %2741 = vmatprep.subr.mxu0 0.0
    %2742 = vmatpush1.msra.mxu0 0.0
    %2743 = vmatprep.subr.mxu0 0.0
    %2744 = vmatpush1.msra.mxu0 0.0
    %2745 = vmatprep.subr.mxu0 0.0
    %2746 = vmatpush1.msra.mxu0 0.0
    %2747 = vmatprep.subr.mxu0 0.0
    %2748 = vmatpush1.msra.mxu0 0.0
    %2749 = vmatprep.subr.mxu0 0.0
    %2750 = vmatpush1.msra.mxu0 0.0
    %2751 = vmatprep.subr.mxu0 0.0
    %2752 = vmatpush1.msra.mxu0 0.0
    %2753 = vmatprep.subr.mxu0 0.0
    %2754 = vmatpush1.msra.mxu0 0.0
    %2755 = vmatprep.subr.mxu0 0.0
    %2756 = vmatpush1.msra.mxu0 0.0
    %2757 = vmatprep.subr.mxu0 0.0
    %2758 = vmatpush1.msra.mxu0 0.0
    %2759 = vmatprep.subr.mxu0 0.0
    %2760 = vmatpush1.msra.mxu0 0.0
    %2761 = vmatprep.subr.mxu0 0.0
    %2762 = vmatpush1.msra.mxu0 0.0
    %2763 = vmatprep.mubr.f32.mxu0 0.0
    %2764 = vmatmul.mubr.f32.gmra.mrb[0].mxu0 %v2622
    %v2765 = vpop.f32.mrb[0].mxu0
    %v2766 = vadd.f32 0.0, %v2765
    %v2767 = vpop.f32.mrb[0].mxu0
    %v2768 = vadd.f32 0.0, %v2767
    %2769 = vdwg.mxu0
    %v2770 = vadd.f32 %v2624, %v2695
    %v2771 = vadd.f32 %v2625, %v2697
    %v2772 = vadd.f32 %v2626, %v2766
    %v2773 = vadd.f32 %v2627, %v2768
    %v2774 = vxor.u32 %v2770, 2147483648
    %v2775 = vxor.u32 %v2771, 2147483648
    %v2776 = vxor.u32 %v2772, 2147483648
    %v2777 = vmul.f32 %v2774, 1.442695
    %v2778 = vpow.pop %v2777
    %v2779 = vmul.f32 %v2775, 1.442695
    %v2780 = vpow.pop %v2779
    %v2781 = vmul.f32 %v2776, 1.442695
    %v2782 = vpow.pop %v2781
    %v2783 = vadd.f32 %v2778, 1.0
    %v2784 = vadd.f32 %v2780, 1.0
    %v2785 = vadd.f32 %v2782, 1.0
    %v2786 = vrcp.pop %v2783
    %v2787 = vmul.f32 1.0, %v2786
    %v2788 = vrcp.pop %v2784
    %v2789 = vmul.f32 1.0, %v2788
    %v2790 = vrcp.pop %v2785
    %v2791 = vmul.f32 1.0, %v2790
    %v2792 = vtanh.pop %v2773
    %v2793 = vmul.f32 %v2789, %v2620
    %v2794 = vmul.f32 %v2787, %v2792
    %v2795 = vadd.f32 %v2793, %v2794
    %v2796 = vtanh.pop %v2795
    %v2797 = vmul.f32 %v2791, %v2796
    %s2798 = scalar_lea.vmem [#allocation2], 384
    %v2799 = vld [vmem:[%s2798] sm:$0xff]
    %v2800 = vld [vmem:[%s2798 + $0x8] sm:$0xff]
    %v2801 = vld [vmem:[%s2798 + $0x10] sm:$0xff]
    %v2802 = vld [vmem:[%s2798 + $0x18] sm:$0xff]
    %2803 = vmatprep.subr.mxu0 %v640
    %2804 = vmatpush1.msra.mxu0 %v639
    %2805 = vmatprep.subr.mxu0 %v644
    %2806 = vmatpush1.msra.mxu0 %v643
    %2807 = vmatprep.subr.mxu0 %v648
    %2808 = vmatpush1.msra.mxu0 %v647
    %2809 = vmatprep.subr.mxu0 %v652
    %2810 = vmatpush1.msra.mxu0 %v651
    %2811 = vmatprep.subr.mxu0 %v656
    %2812 = vmatpush1.msra.mxu0 %v655
    %2813 = vmatprep.subr.mxu0 %v660
    %2814 = vmatpush1.msra.mxu0 %v659
    %2815 = vmatprep.subr.mxu0 %v664
    %2816 = vmatpush1.msra.mxu0 %v663
    %2817 = vmatprep.subr.mxu0 %v668
    %2818 = vmatpush1.msra.mxu0 %v667
    %2819 = vmatprep.subr.mxu0 %v672
    %2820 = vmatpush1.msra.mxu0 %v671
    %2821 = vmatprep.subr.mxu0 %v676
    %2822 = vmatpush1.msra.mxu0 %v675
    %2823 = vmatprep.subr.mxu0 %v680
    %2824 = vmatpush1.msra.mxu0 %v679
    %2825 = vmatprep.subr.mxu0 %v684
    %2826 = vmatpush1.msra.mxu0 %v683
    %2827 = vmatprep.subr.mxu0 %v688
    %2828 = vmatpush1.msra.mxu0 %v687
    %2829 = vmatprep.subr.mxu0 %v692
    %2830 = vmatpush1.msra.mxu0 %v691
    %2831 = vmatprep.subr.mxu0 %v696
    %2832 = vmatpush1.msra.mxu0 %v695
    %2833 = vmatprep.subr.mxu0 %v700
    %2834 = vmatpush1.msra.mxu0 %v699
    %2835 = vmatprep.subr.mxu0 0.0
    %2836 = vmatpush1.msra.mxu0 0.0
    %2837 = vmatprep.subr.mxu0 0.0
    %2838 = vmatpush1.msra.mxu0 0.0
    %2839 = vmatprep.subr.mxu0 0.0
    %2840 = vmatpush1.msra.mxu0 0.0
    %2841 = vmatprep.subr.mxu0 0.0
    %2842 = vmatpush1.msra.mxu0 0.0
    %2843 = vmatprep.subr.mxu0 0.0
    %2844 = vmatpush1.msra.mxu0 0.0
    %2845 = vmatprep.subr.mxu0 0.0
    %2846 = vmatpush1.msra.mxu0 0.0
    %2847 = vmatprep.subr.mxu0 0.0
    %2848 = vmatpush1.msra.mxu0 0.0
    %2849 = vmatprep.subr.mxu0 0.0
    %2850 = vmatpush1.msra.mxu0 0.0
    %2851 = vmatprep.subr.mxu0 0.0
    %2852 = vmatpush1.msra.mxu0 0.0
    %2853 = vmatprep.subr.mxu0 0.0
    %2854 = vmatpush1.msra.mxu0 0.0
    %2855 = vmatprep.subr.mxu0 0.0
    %2856 = vmatpush1.msra.mxu0 0.0
    %2857 = vmatprep.subr.mxu0 0.0
    %2858 = vmatpush1.msra.mxu0 0.0
    %2859 = vmatprep.subr.mxu0 0.0
    %2860 = vmatpush1.msra.mxu0 0.0
    %2861 = vmatprep.subr.mxu0 0.0
    %2862 = vmatpush1.msra.mxu0 0.0
    %2863 = vmatprep.subr.mxu0 0.0
    %2864 = vmatpush1.msra.mxu0 0.0
    %2865 = vmatprep.subr.mxu0 0.0
    %2866 = vmatpush1.msra.mxu0 0.0
    %2867 = vmatprep.mubr.f32.mxu0 0.0
    %2868 = vmatmul.mubr.f32.gmra.mrb[0].mxu0 %v2797
    %v2869 = vpop.f32.mrb[0].mxu0
    %v2870 = vadd.f32 0.0, %v2869
    %v2871 = vpop.f32.mrb[0].mxu0
    %v2872 = vadd.f32 0.0, %v2871
    %2873 = vdwg.mxu0
    %2874 = vmatprep.subr.mxu0 %v642
    %2875 = vmatpush1.msra.mxu0 %v641
    %2876 = vmatprep.subr.mxu0 %v646
    %2877 = vmatpush1.msra.mxu0 %v645
    %2878 = vmatprep.subr.mxu0 %v650
    %2879 = vmatpush1.msra.mxu0 %v649
    %2880 = vmatprep.subr.mxu0 %v654
    %2881 = vmatpush1.msra.mxu0 %v653
    %2882 = vmatprep.subr.mxu0 %v658
    %2883 = vmatpush1.msra.mxu0 %v657
    %2884 = vmatprep.subr.mxu0 %v662
    %2885 = vmatpush1.msra.mxu0 %v661
    %2886 = vmatprep.subr.mxu0 %v666
    %2887 = vmatpush1.msra.mxu0 %v665
    %2888 = vmatprep.subr.mxu0 %v670
    %2889 = vmatpush1.msra.mxu0 %v669
    %2890 = vmatprep.subr.mxu0 %v674
    %2891 = vmatpush1.msra.mxu0 %v673
    %2892 = vmatprep.subr.mxu0 %v678
    %2893 = vmatpush1.msra.mxu0 %v677
    %2894 = vmatprep.subr.mxu0 %v682
    %2895 = vmatpush1.msra.mxu0 %v681
    %2896 = vmatprep.subr.mxu0 %v686
    %2897 = vmatpush1.msra.mxu0 %v685
    %2898 = vmatprep.subr.mxu0 %v690
    %2899 = vmatpush1.msra.mxu0 %v689
    %2900 = vmatprep.subr.mxu0 %v694
    %2901 = vmatpush1.msra.mxu0 %v693
    %2902 = vmatprep.subr.mxu0 %v698
    %2903 = vmatpush1.msra.mxu0 %v697
    %2904 = vmatprep.subr.mxu0 %v702
    %2905 = vmatpush1.msra.mxu0 %v701
    %2906 = vmatprep.subr.mxu0 0.0
    %2907 = vmatpush1.msra.mxu0 0.0
    %2908 = vmatprep.subr.mxu0 0.0
    %2909 = vmatpush1.msra.mxu0 0.0
    %2910 = vmatprep.subr.mxu0 0.0
    %2911 = vmatpush1.msra.mxu0 0.0
    %2912 = vmatprep.subr.mxu0 0.0
    %2913 = vmatpush1.msra.mxu0 0.0
    %2914 = vmatprep.subr.mxu0 0.0
    %2915 = vmatpush1.msra.mxu0 0.0
    %2916 = vmatprep.subr.mxu0 0.0
    %2917 = vmatpush1.msra.mxu0 0.0
    %2918 = vmatprep.subr.mxu0 0.0
    %2919 = vmatpush1.msra.mxu0 0.0
    %2920 = vmatprep.subr.mxu0 0.0
    %2921 = vmatpush1.msra.mxu0 0.0
    %2922 = vmatprep.subr.mxu0 0.0
    %2923 = vmatpush1.msra.mxu0 0.0
    %2924 = vmatprep.subr.mxu0 0.0
    %2925 = vmatpush1.msra.mxu0 0.0
    %2926 = vmatprep.subr.mxu0 0.0
    %2927 = vmatpush1.msra.mxu0 0.0
    %2928 = vmatprep.subr.mxu0 0.0
    %2929 = vmatpush1.msra.mxu0 0.0
    %2930 = vmatprep.subr.mxu0 0.0
    %2931 = vmatpush1.msra.mxu0 0.0
    %2932 = vmatprep.subr.mxu0 0.0
    %2933 = vmatpush1.msra.mxu0 0.0
    %2934 = vmatprep.subr.mxu0 0.0
    %2935 = vmatpush1.msra.mxu0 0.0
    %2936 = vmatprep.subr.mxu0 0.0
    %2937 = vmatpush1.msra.mxu0 0.0
    %2938 = vmatprep.mubr.f32.mxu0 0.0
    %2939 = vmatmul.mubr.f32.gmra.mrb[0].mxu0 %v2797
    %v2940 = vpop.f32.mrb[0].mxu0
    %v2941 = vadd.f32 0.0, %v2940
    %v2942 = vpop.f32.mrb[0].mxu0
    %v2943 = vadd.f32 0.0, %v2942
    %2944 = vdwg.mxu0
    %v2945 = vadd.f32 %v2799, %v2870
    %v2946 = vadd.f32 %v2800, %v2872
    %v2947 = vadd.f32 %v2801, %v2941
    %v2948 = vadd.f32 %v2802, %v2943
    %v2949 = vxor.u32 %v2945, 2147483648
    %v2950 = vxor.u32 %v2946, 2147483648
    %v2951 = vxor.u32 %v2947, 2147483648
    %v2952 = vmul.f32 %v2949, 1.442695
    %v2953 = vpow.pop %v2952
    %v2954 = vmul.f32 %v2950, 1.442695
    %v2955 = vpow.pop %v2954
    %v2956 = vmul.f32 %v2951, 1.442695
    %v2957 = vpow.pop %v2956
    %v2958 = vadd.f32 %v2953, 1.0
    %v2959 = vadd.f32 %v2955, 1.0
    %v2960 = vadd.f32 %v2957, 1.0
    %v2961 = vrcp.pop %v2958
    %v2962 = vmul.f32 1.0, %v2961
    %v2963 = vrcp.pop %v2959
    %v2964 = vmul.f32 1.0, %v2963
    %v2965 = vrcp.pop %v2960
    %v2966 = vmul.f32 1.0, %v2965
    %v2967 = vtanh.pop %v2948
    %v2968 = vmul.f32 %v2964, %v2795
    %v2969 = vmul.f32 %v2962, %v2967
    %v2970 = vadd.f32 %v2968, %v2969
    %v2971 = vtanh.pop %v2970
    %v2972 = vmul.f32 %v2966, %v2971
    %s2973 = scalar_lea.vmem [#allocation2], 416
    %v2974 = vld [vmem:[%s2973] sm:$0xff]
    %v2975 = vld [vmem:[%s2973 + $0x8] sm:$0xff]
    %v2976 = vld [vmem:[%s2973 + $0x10] sm:$0xff]
    %v2977 = vld [vmem:[%s2973 + $0x18] sm:$0xff]
    %2978 = vmatprep.subr.mxu0 %v640
    %2979 = vmatpush1.msra.mxu0 %v639
    %2980 = vmatprep.subr.mxu0 %v644
    %2981 = vmatpush1.msra.mxu0 %v643
    %2982 = vmatprep.subr.mxu0 %v648
    %2983 = vmatpush1.msra.mxu0 %v647
    %2984 = vmatprep.subr.mxu0 %v652
    %2985 = vmatpush1.msra.mxu0 %v651
    %2986 = vmatprep.subr.mxu0 %v656
    %2987 = vmatpush1.msra.mxu0 %v655
    %2988 = vmatprep.subr.mxu0 %v660
    %2989 = vmatpush1.msra.mxu0 %v659
    %2990 = vmatprep.subr.mxu0 %v664
    %2991 = vmatpush1.msra.mxu0 %v663
    %2992 = vmatprep.subr.mxu0 %v668
    %2993 = vmatpush1.msra.mxu0 %v667
    %2994 = vmatprep.subr.mxu0 %v672
    %2995 = vmatpush1.msra.mxu0 %v671
    %2996 = vmatprep.subr.mxu0 %v676
    %2997 = vmatpush1.msra.mxu0 %v675
    %2998 = vmatprep.subr.mxu0 %v680
    %2999 = vmatpush1.msra.mxu0 %v679
    %3000 = vmatprep.subr.mxu0 %v684
    %3001 = vmatpush1.msra.mxu0 %v683
    %3002 = vmatprep.subr.mxu0 %v688
    %3003 = vmatpush1.msra.mxu0 %v687
    %3004 = vmatprep.subr.mxu0 %v692
    %3005 = vmatpush1.msra.mxu0 %v691
    %3006 = vmatprep.subr.mxu0 %v696
    %3007 = vmatpush1.msra.mxu0 %v695
    %3008 = vmatprep.subr.mxu0 %v700
    %3009 = vmatpush1.msra.mxu0 %v699
    %3010 = vmatprep.subr.mxu0 0.0
    %3011 = vmatpush1.msra.mxu0 0.0
    %3012 = vmatprep.subr.mxu0 0.0
    %3013 = vmatpush1.msra.mxu0 0.0
    %3014 = vmatprep.subr.mxu0 0.0
    %3015 = vmatpush1.msra.mxu0 0.0
    %3016 = vmatprep.subr.mxu0 0.0
    %3017 = vmatpush1.msra.mxu0 0.0
    %3018 = vmatprep.subr.mxu0 0.0
    %3019 = vmatpush1.msra.mxu0 0.0
    %3020 = vmatprep.subr.mxu0 0.0
    %3021 = vmatpush1.msra.mxu0 0.0
    %3022 = vmatprep.subr.mxu0 0.0
    %3023 = vmatpush1.msra.mxu0 0.0
    %3024 = vmatprep.subr.mxu0 0.0
    %3025 = vmatpush1.msra.mxu0 0.0
    %3026 = vmatprep.subr.mxu0 0.0
    %3027 = vmatpush1.msra.mxu0 0.0
    %3028 = vmatprep.subr.mxu0 0.0
    %3029 = vmatpush1.msra.mxu0 0.0
    %3030 = vmatprep.subr.mxu0 0.0
    %3031 = vmatpush1.msra.mxu0 0.0
    %3032 = vmatprep.subr.mxu0 0.0
    %3033 = vmatpush1.msra.mxu0 0.0
    %3034 = vmatprep.subr.mxu0 0.0
    %3035 = vmatpush1.msra.mxu0 0.0
    %3036 = vmatprep.subr.mxu0 0.0
    %3037 = vmatpush1.msra.mxu0 0.0
    %3038 = vmatprep.subr.mxu0 0.0
    %3039 = vmatpush1.msra.mxu0 0.0
    %3040 = vmatprep.subr.mxu0 0.0
    %3041 = vmatpush1.msra.mxu0 0.0
    %3042 = vmatprep.mubr.f32.mxu0 0.0
    %3043 = vmatmul.mubr.f32.gmra.mrb[0].mxu0 %v2972
    %v3044 = vpop.f32.mrb[0].mxu0
    %v3045 = vadd.f32 0.0, %v3044
    %v3046 = vpop.f32.mrb[0].mxu0
    %v3047 = vadd.f32 0.0, %v3046
    %3048 = vdwg.mxu0
    %3049 = vmatprep.subr.mxu0 %v642
    %3050 = vmatpush1.msra.mxu0 %v641
    %3051 = vmatprep.subr.mxu0 %v646
    %3052 = vmatpush1.msra.mxu0 %v645
    %3053 = vmatprep.subr.mxu0 %v650
    %3054 = vmatpush1.msra.mxu0 %v649
    %3055 = vmatprep.subr.mxu0 %v654
    %3056 = vmatpush1.msra.mxu0 %v653
    %3057 = vmatprep.subr.mxu0 %v658
    %3058 = vmatpush1.msra.mxu0 %v657
    %3059 = vmatprep.subr.mxu0 %v662
    %3060 = vmatpush1.msra.mxu0 %v661
    %3061 = vmatprep.subr.mxu0 %v666
    %3062 = vmatpush1.msra.mxu0 %v665
    %3063 = vmatprep.subr.mxu0 %v670
    %3064 = vmatpush1.msra.mxu0 %v669
    %3065 = vmatprep.subr.mxu0 %v674
    %3066 = vmatpush1.msra.mxu0 %v673
    %3067 = vmatprep.subr.mxu0 %v678
    %3068 = vmatpush1.msra.mxu0 %v677
    %3069 = vmatprep.subr.mxu0 %v682
    %3070 = vmatpush1.msra.mxu0 %v681
    %3071 = vmatprep.subr.mxu0 %v686
    %3072 = vmatpush1.msra.mxu0 %v685
    %3073 = vmatprep.subr.mxu0 %v690
    %3074 = vmatpush1.msra.mxu0 %v689
    %3075 = vmatprep.subr.mxu0 %v694
    %3076 = vmatpush1.msra.mxu0 %v693
    %3077 = vmatprep.subr.mxu0 %v698
    %3078 = vmatpush1.msra.mxu0 %v697
    %3079 = vmatprep.subr.mxu0 %v702
    %3080 = vmatpush1.msra.mxu0 %v701
    %3081 = vmatprep.subr.mxu0 0.0
    %3082 = vmatpush1.msra.mxu0 0.0
    %3083 = vmatprep.subr.mxu0 0.0
    %3084 = vmatpush1.msra.mxu0 0.0
    %3085 = vmatprep.subr.mxu0 0.0
    %3086 = vmatpush1.msra.mxu0 0.0
    %3087 = vmatprep.subr.mxu0 0.0
    %3088 = vmatpush1.msra.mxu0 0.0
    %3089 = vmatprep.subr.mxu0 0.0
    %3090 = vmatpush1.msra.mxu0 0.0
    %3091 = vmatprep.subr.mxu0 0.0
    %3092 = vmatpush1.msra.mxu0 0.0
    %3093 = vmatprep.subr.mxu0 0.0
    %3094 = vmatpush1.msra.mxu0 0.0
    %3095 = vmatprep.subr.mxu0 0.0
    %3096 = vmatpush1.msra.mxu0 0.0
    %3097 = vmatprep.subr.mxu0 0.0
    %3098 = vmatpush1.msra.mxu0 0.0
    %3099 = vmatprep.subr.mxu0 0.0
    %3100 = vmatpush1.msra.mxu0 0.0
    %3101 = vmatprep.subr.mxu0 0.0
    %3102 = vmatpush1.msra.mxu0 0.0
    %3103 = vmatprep.subr.mxu0 0.0
    %3104 = vmatpush1.msra.mxu0 0.0
    %3105 = vmatprep.subr.mxu0 0.0
    %3106 = vmatpush1.msra.mxu0 0.0
    %3107 = vmatprep.subr.mxu0 0.0
    %3108 = vmatpush1.msra.mxu0 0.0
    %3109 = vmatprep.subr.mxu0 0.0
    %3110 = vmatpush1.msra.mxu0 0.0
    %3111 = vmatprep.subr.mxu0 0.0
    %3112 = vmatpush1.msra.mxu0 0.0
    %3113 = vmatprep.mubr.f32.mxu0 0.0
    %3114 = vmatmul.mubr.f32.gmra.mrb[0].mxu0 %v2972
    %v3115 = vpop.f32.mrb[0].mxu0
    %v3116 = vadd.f32 0.0, %v3115
    %v3117 = vpop.f32.mrb[0].mxu0
    %v3118 = vadd.f32 0.0, %v3117
    %3119 = vdwg.mxu0
    %v3120 = vadd.f32 %v2974, %v3045
    %v3121 = vadd.f32 %v2975, %v3047
    %v3122 = vadd.f32 %v2976, %v3116
    %v3123 = vadd.f32 %v2977, %v3118
    %v3124 = vxor.u32 %v3120, 2147483648
    %v3125 = vxor.u32 %v3121, 2147483648
    %v3126 = vxor.u32 %v3122, 2147483648
    %v3127 = vmul.f32 %v3124, 1.442695
    %v3128 = vpow.pop %v3127
    %v3129 = vmul.f32 %v3125, 1.442695
    %v3130 = vpow.pop %v3129
    %v3131 = vmul.f32 %v3126, 1.442695
    %v3132 = vpow.pop %v3131
    %v3133 = vadd.f32 %v3128, 1.0
    %v3134 = vadd.f32 %v3130, 1.0
    %v3135 = vadd.f32 %v3132, 1.0
    %v3136 = vrcp.pop %v3133
    %v3137 = vmul.f32 1.0, %v3136
    %v3138 = vrcp.pop %v3134
    %v3139 = vmul.f32 1.0, %v3138
    %v3140 = vrcp.pop %v3135
    %v3141 = vmul.f32 1.0, %v3140
    %v3142 = vtanh.pop %v3123
    %v3143 = vmul.f32 %v3139, %v2970
    %v3144 = vmul.f32 %v3137, %v3142
    %v3145 = vadd.f32 %v3143, %v3144
    %v3146 = vtanh.pop %v3145
    %v3147 = vmul.f32 %v3141, %v3146
    %s3148 = scalar_lea.vmem [#allocation2], 448
    %v3149 = vld [vmem:[%s3148] sm:$0xff]
    %v3150 = vld [vmem:[%s3148 + $0x8] sm:$0xff]
    %v3151 = vld [vmem:[%s3148 + $0x10] sm:$0xff]
    %v3152 = vld [vmem:[%s3148 + $0x18] sm:$0xff]
    %3153 = vmatprep.subr.mxu0 %v640
    %3154 = vmatpush1.msra.mxu0 %v639
    %3155 = vmatprep.subr.mxu0 %v644
    %3156 = vmatpush1.msra.mxu0 %v643
    %3157 = vmatprep.subr.mxu0 %v648
    %3158 = vmatpush1.msra.mxu0 %v647
    %3159 = vmatprep.subr.mxu0 %v652
    %3160 = vmatpush1.msra.mxu0 %v651
    %3161 = vmatprep.subr.mxu0 %v656
    %3162 = vmatpush1.msra.mxu0 %v655
    %3163 = vmatprep.subr.mxu0 %v660
    %3164 = vmatpush1.msra.mxu0 %v659
    %3165 = vmatprep.subr.mxu0 %v664
    %3166 = vmatpush1.msra.mxu0 %v663
    %3167 = vmatprep.subr.mxu0 %v668
    %3168 = vmatpush1.msra.mxu0 %v667
    %3169 = vmatprep.subr.mxu0 %v672
    %3170 = vmatpush1.msra.mxu0 %v671
    %3171 = vmatprep.subr.mxu0 %v676
    %3172 = vmatpush1.msra.mxu0 %v675
    %3173 = vmatprep.subr.mxu0 %v680
    %3174 = vmatpush1.msra.mxu0 %v679
    %3175 = vmatprep.subr.mxu0 %v684
    %3176 = vmatpush1.msra.mxu0 %v683
    %3177 = vmatprep.subr.mxu0 %v688
    %3178 = vmatpush1.msra.mxu0 %v687
    %3179 = vmatprep.subr.mxu0 %v692
    %3180 = vmatpush1.msra.mxu0 %v691
    %3181 = vmatprep.subr.mxu0 %v696
    %3182 = vmatpush1.msra.mxu0 %v695
    %3183 = vmatprep.subr.mxu0 %v700
    %3184 = vmatpush1.msra.mxu0 %v699
    %3185 = vmatprep.subr.mxu0 0.0
    %3186 = vmatpush1.msra.mxu0 0.0
    %3187 = vmatprep.subr.mxu0 0.0
    %3188 = vmatpush1.msra.mxu0 0.0
    %3189 = vmatprep.subr.mxu0 0.0
    %3190 = vmatpush1.msra.mxu0 0.0
    %3191 = vmatprep.subr.mxu0 0.0
    %3192 = vmatpush1.msra.mxu0 0.0
    %3193 = vmatprep.subr.mxu0 0.0
    %3194 = vmatpush1.msra.mxu0 0.0
    %3195 = vmatprep.subr.mxu0 0.0
    %3196 = vmatpush1.msra.mxu0 0.0
    %3197 = vmatprep.subr.mxu0 0.0
    %3198 = vmatpush1.msra.mxu0 0.0
    %3199 = vmatprep.subr.mxu0 0.0
    %3200 = vmatpush1.msra.mxu0 0.0
    %3201 = vmatprep.subr.mxu0 0.0
    %3202 = vmatpush1.msra.mxu0 0.0
    %3203 = vmatprep.subr.mxu0 0.0
    %3204 = vmatpush1.msra.mxu0 0.0
    %3205 = vmatprep.subr.mxu0 0.0
    %3206 = vmatpush1.msra.mxu0 0.0
    %3207 = vmatprep.subr.mxu0 0.0
    %3208 = vmatpush1.msra.mxu0 0.0
    %3209 = vmatprep.subr.mxu0 0.0
    %3210 = vmatpush1.msra.mxu0 0.0
    %3211 = vmatprep.subr.mxu0 0.0
    %3212 = vmatpush1.msra.mxu0 0.0
    %3213 = vmatprep.subr.mxu0 0.0
    %3214 = vmatpush1.msra.mxu0 0.0
    %3215 = vmatprep.subr.mxu0 0.0
    %3216 = vmatpush1.msra.mxu0 0.0
    %3217 = vmatprep.mubr.f32.mxu0 0.0
    %3218 = vmatmul.mubr.f32.gmra.mrb[0].mxu0 %v3147
    %v3219 = vpop.f32.mrb[0].mxu0
    %v3220 = vadd.f32 0.0, %v3219
    %v3221 = vpop.f32.mrb[0].mxu0
    %v3222 = vadd.f32 0.0, %v3221
    %3223 = vdwg.mxu0
    %3224 = vmatprep.subr.mxu0 %v642
    %3225 = vmatpush1.msra.mxu0 %v641
    %3226 = vmatprep.subr.mxu0 %v646
    %3227 = vmatpush1.msra.mxu0 %v645
    %3228 = vmatprep.subr.mxu0 %v650
    %3229 = vmatpush1.msra.mxu0 %v649
    %3230 = vmatprep.subr.mxu0 %v654
    %3231 = vmatpush1.msra.mxu0 %v653
    %3232 = vmatprep.subr.mxu0 %v658
    %3233 = vmatpush1.msra.mxu0 %v657
    %3234 = vmatprep.subr.mxu0 %v662
    %3235 = vmatpush1.msra.mxu0 %v661
    %3236 = vmatprep.subr.mxu0 %v666
    %3237 = vmatpush1.msra.mxu0 %v665
    %3238 = vmatprep.subr.mxu0 %v670
    %3239 = vmatpush1.msra.mxu0 %v669
    %3240 = vmatprep.subr.mxu0 %v674
    %3241 = vmatpush1.msra.mxu0 %v673
    %3242 = vmatprep.subr.mxu0 %v678
    %3243 = vmatpush1.msra.mxu0 %v677
    %3244 = vmatprep.subr.mxu0 %v682
    %3245 = vmatpush1.msra.mxu0 %v681
    %3246 = vmatprep.subr.mxu0 %v686
    %3247 = vmatpush1.msra.mxu0 %v685
    %3248 = vmatprep.subr.mxu0 %v690
    %3249 = vmatpush1.msra.mxu0 %v689
    %3250 = vmatprep.subr.mxu0 %v694
    %3251 = vmatpush1.msra.mxu0 %v693
    %3252 = vmatprep.subr.mxu0 %v698
    %3253 = vmatpush1.msra.mxu0 %v697
    %3254 = vmatprep.subr.mxu0 %v702
    %3255 = vmatpush1.msra.mxu0 %v701
    %3256 = vmatprep.subr.mxu0 0.0
    %3257 = vmatpush1.msra.mxu0 0.0
    %3258 = vmatprep.subr.mxu0 0.0
    %3259 = vmatpush1.msra.mxu0 0.0
    %3260 = vmatprep.subr.mxu0 0.0
    %3261 = vmatpush1.msra.mxu0 0.0
    %3262 = vmatprep.subr.mxu0 0.0
    %3263 = vmatpush1.msra.mxu0 0.0
    %3264 = vmatprep.subr.mxu0 0.0
    %3265 = vmatpush1.msra.mxu0 0.0
    %3266 = vmatprep.subr.mxu0 0.0
    %3267 = vmatpush1.msra.mxu0 0.0
    %3268 = vmatprep.subr.mxu0 0.0
    %3269 = vmatpush1.msra.mxu0 0.0
    %3270 = vmatprep.subr.mxu0 0.0
    %3271 = vmatpush1.msra.mxu0 0.0
    %3272 = vmatprep.subr.mxu0 0.0
    %3273 = vmatpush1.msra.mxu0 0.0
    %3274 = vmatprep.subr.mxu0 0.0
    %3275 = vmatpush1.msra.mxu0 0.0
    %3276 = vmatprep.subr.mxu0 0.0
    %3277 = vmatpush1.msra.mxu0 0.0
    %3278 = vmatprep.subr.mxu0 0.0
    %3279 = vmatpush1.msra.mxu0 0.0
    %3280 = vmatprep.subr.mxu0 0.0
    %3281 = vmatpush1.msra.mxu0 0.0
    %3282 = vmatprep.subr.mxu0 0.0
    %3283 = vmatpush1.msra.mxu0 0.0
    %3284 = vmatprep.subr.mxu0 0.0
    %3285 = vmatpush1.msra.mxu0 0.0
    %3286 = vmatprep.subr.mxu0 0.0
    %3287 = vmatpush1.msra.mxu0 0.0
    %3288 = vmatprep.mubr.f32.mxu0 0.0
    %3289 = vmatmul.mubr.f32.gmra.mrb[0].mxu0 %v3147
    %v3290 = vpop.f32.mrb[0].mxu0
    %v3291 = vadd.f32 0.0, %v3290
    %v3292 = vpop.f32.mrb[0].mxu0
    %v3293 = vadd.f32 0.0, %v3292
    %3294 = vdwg.mxu0
    %v3295 = vadd.f32 %v3149, %v3220
    %v3296 = vadd.f32 %v3150, %v3222
    %v3297 = vadd.f32 %v3151, %v3291
    %v3298 = vadd.f32 %v3152, %v3293
    %v3299 = vxor.u32 %v3295, 2147483648
    %v3300 = vxor.u32 %v3296, 2147483648
    %v3301 = vxor.u32 %v3297, 2147483648
    %v3302 = vmul.f32 %v3299, 1.442695
    %v3303 = vpow.pop %v3302
    %v3304 = vmul.f32 %v3300, 1.442695
    %v3305 = vpow.pop %v3304
    %v3306 = vmul.f32 %v3301, 1.442695
    %v3307 = vpow.pop %v3306
    %v3308 = vadd.f32 %v3303, 1.0
    %v3309 = vadd.f32 %v3305, 1.0
    %v3310 = vadd.f32 %v3307, 1.0
    %v3311 = vrcp.pop %v3308
    %v3312 = vmul.f32 1.0, %v3311
    %v3313 = vrcp.pop %v3309
    %v3314 = vmul.f32 1.0, %v3313
    %v3315 = vrcp.pop %v3310
    %v3316 = vmul.f32 1.0, %v3315
    %v3317 = vtanh.pop %v3298
    %v3318 = vmul.f32 %v3314, %v3145
    %v3319 = vmul.f32 %v3312, %v3317
    %v3320 = vadd.f32 %v3318, %v3319
    %v3321 = vtanh.pop %v3320
    %v3322 = vmul.f32 %v3316, %v3321
    %s3323 = scalar_lea.vmem [#allocation2], 480
    %v3324 = vld [vmem:[%s3323] sm:$0xff]
    %v3325 = vld [vmem:[%s3323 + $0x8] sm:$0xff]
    %v3326 = vld [vmem:[%s3323 + $0x10] sm:$0xff]
    %v3327 = vld [vmem:[%s3323 + $0x18] sm:$0xff]
    %3328 = vmatprep.subr.mxu0 %v640
    %3329 = vmatpush1.msra.mxu0 %v639
    %3330 = vmatprep.subr.mxu0 %v644
    %3331 = vmatpush1.msra.mxu0 %v643
    %3332 = vmatprep.subr.mxu0 %v648
    %3333 = vmatpush1.msra.mxu0 %v647
    %3334 = vmatprep.subr.mxu0 %v652
    %3335 = vmatpush1.msra.mxu0 %v651
    %3336 = vmatprep.subr.mxu0 %v656
    %3337 = vmatpush1.msra.mxu0 %v655
    %3338 = vmatprep.subr.mxu0 %v660
    %3339 = vmatpush1.msra.mxu0 %v659
    %3340 = vmatprep.subr.mxu0 %v664
    %3341 = vmatpush1.msra.mxu0 %v663
    %3342 = vmatprep.subr.mxu0 %v668
    %3343 = vmatpush1.msra.mxu0 %v667
    %3344 = vmatprep.subr.mxu0 %v672
    %3345 = vmatpush1.msra.mxu0 %v671
    %3346 = vmatprep.subr.mxu0 %v676
    %3347 = vmatpush1.msra.mxu0 %v675
    %3348 = vmatprep.subr.mxu0 %v680
    %3349 = vmatpush1.msra.mxu0 %v679
    %3350 = vmatprep.subr.mxu0 %v684
    %3351 = vmatpush1.msra.mxu0 %v683
    %3352 = vmatprep.subr.mxu0 %v688
    %3353 = vmatpush1.msra.mxu0 %v687
    %3354 = vmatprep.subr.mxu0 %v692
    %3355 = vmatpush1.msra.mxu0 %v691
    %3356 = vmatprep.subr.mxu0 %v696
    %3357 = vmatpush1.msra.mxu0 %v695
    %3358 = vmatprep.subr.mxu0 %v700
    %3359 = vmatpush1.msra.mxu0 %v699
    %3360 = vmatprep.subr.mxu0 0.0
    %3361 = vmatpush1.msra.mxu0 0.0
    %3362 = vmatprep.subr.mxu0 0.0
    %3363 = vmatpush1.msra.mxu0 0.0
    %3364 = vmatprep.subr.mxu0 0.0
    %3365 = vmatpush1.msra.mxu0 0.0
    %3366 = vmatprep.subr.mxu0 0.0
    %3367 = vmatpush1.msra.mxu0 0.0
    %3368 = vmatprep.subr.mxu0 0.0
    %3369 = vmatpush1.msra.mxu0 0.0
    %3370 = vmatprep.subr.mxu0 0.0
    %3371 = vmatpush1.msra.mxu0 0.0
    %3372 = vmatprep.subr.mxu0 0.0
    %3373 = vmatpush1.msra.mxu0 0.0
    %3374 = vmatprep.subr.mxu0 0.0
    %3375 = vmatpush1.msra.mxu0 0.0
    %3376 = vmatprep.subr.mxu0 0.0
    %3377 = vmatpush1.msra.mxu0 0.0
    %3378 = vmatprep.subr.mxu0 0.0
    %3379 = vmatpush1.msra.mxu0 0.0
    %3380 = vmatprep.subr.mxu0 0.0
    %3381 = vmatpush1.msra.mxu0 0.0
    %3382 = vmatprep.subr.mxu0 0.0
    %3383 = vmatpush1.msra.mxu0 0.0
    %3384 = vmatprep.subr.mxu0 0.0
    %3385 = vmatpush1.msra.mxu0 0.0
    %3386 = vmatprep.subr.mxu0 0.0
    %3387 = vmatpush1.msra.mxu0 0.0
    %3388 = vmatprep.subr.mxu0 0.0
    %3389 = vmatpush1.msra.mxu0 0.0
    %3390 = vmatprep.subr.mxu0 0.0
    %3391 = vmatpush1.msra.mxu0 0.0
    %3392 = vmatprep.mubr.f32.mxu0 0.0
    %3393 = vmatmul.mubr.f32.gmra.mrb[0].mxu0 %v3322
    %v3394 = vpop.f32.mrb[0].mxu0
    %v3395 = vadd.f32 0.0, %v3394
    %v3396 = vpop.f32.mrb[0].mxu0
    %v3397 = vadd.f32 0.0, %v3396
    %3398 = vdwg.mxu0
    %3399 = vmatprep.subr.mxu0 %v642
    %3400 = vmatpush1.msra.mxu0 %v641
    %3401 = vmatprep.subr.mxu0 %v646
    %3402 = vmatpush1.msra.mxu0 %v645
    %3403 = vmatprep.subr.mxu0 %v650
    %3404 = vmatpush1.msra.mxu0 %v649
    %3405 = vmatprep.subr.mxu0 %v654
    %3406 = vmatpush1.msra.mxu0 %v653
    %3407 = vmatprep.subr.mxu0 %v658
    %3408 = vmatpush1.msra.mxu0 %v657
    %3409 = vmatprep.subr.mxu0 %v662
    %3410 = vmatpush1.msra.mxu0 %v661
    %3411 = vmatprep.subr.mxu0 %v666
    %3412 = vmatpush1.msra.mxu0 %v665
    %3413 = vmatprep.subr.mxu0 %v670
    %3414 = vmatpush1.msra.mxu0 %v669
    %3415 = vmatprep.subr.mxu0 %v674
    %3416 = vmatpush1.msra.mxu0 %v673
    %3417 = vmatprep.subr.mxu0 %v678
    %3418 = vmatpush1.msra.mxu0 %v677
    %3419 = vmatprep.subr.mxu0 %v682
    %3420 = vmatpush1.msra.mxu0 %v681
    %3421 = vmatprep.subr.mxu0 %v686
    %3422 = vmatpush1.msra.mxu0 %v685
    %3423 = vmatprep.subr.mxu0 %v690
    %3424 = vmatpush1.msra.mxu0 %v689
    %3425 = vmatprep.subr.mxu0 %v694
    %3426 = vmatpush1.msra.mxu0 %v693
    %3427 = vmatprep.subr.mxu0 %v698
    %3428 = vmatpush1.msra.mxu0 %v697
    %3429 = vmatprep.subr.mxu0 %v702
    %3430 = vmatpush1.msra.mxu0 %v701
    %3431 = vmatprep.subr.mxu0 0.0
    %3432 = vmatpush1.msra.mxu0 0.0
    %3433 = vmatprep.subr.mxu0 0.0
    %3434 = vmatpush1.msra.mxu0 0.0
    %3435 = vmatprep.subr.mxu0 0.0
    %3436 = vmatpush1.msra.mxu0 0.0
    %3437 = vmatprep.subr.mxu0 0.0
    %3438 = vmatpush1.msra.mxu0 0.0
    %3439 = vmatprep.subr.mxu0 0.0
    %3440 = vmatpush1.msra.mxu0 0.0
    %3441 = vmatprep.subr.mxu0 0.0
    %3442 = vmatpush1.msra.mxu0 0.0
    %3443 = vmatprep.subr.mxu0 0.0
    %3444 = vmatpush1.msra.mxu0 0.0
    %3445 = vmatprep.subr.mxu0 0.0
    %3446 = vmatpush1.msra.mxu0 0.0
    %3447 = vmatprep.subr.mxu0 0.0
    %3448 = vmatpush1.msra.mxu0 0.0
    %3449 = vmatprep.subr.mxu0 0.0
    %3450 = vmatpush1.msra.mxu0 0.0
    %3451 = vmatprep.subr.mxu0 0.0
    %3452 = vmatpush1.msra.mxu0 0.0
    %3453 = vmatprep.subr.mxu0 0.0
    %3454 = vmatpush1.msra.mxu0 0.0
    %3455 = vmatprep.subr.mxu0 0.0
    %3456 = vmatpush1.msra.mxu0 0.0
    %3457 = vmatprep.subr.mxu0 0.0
    %3458 = vmatpush1.msra.mxu0 0.0
    %3459 = vmatprep.subr.mxu0 0.0
    %3460 = vmatpush1.msra.mxu0 0.0
    %3461 = vmatprep.subr.mxu0 0.0
    %3462 = vmatpush1.msra.mxu0 0.0
    %3463 = vmatprep.mubr.f32.mxu0 0.0
    %3464 = vmatmul.mubr.f32.gmra.mrb[0].mxu0 %v3322
    %v3465 = vpop.f32.mrb[0].mxu0
    %v3466 = vadd.f32 0.0, %v3465
    %v3467 = vpop.f32.mrb[0].mxu0
    %v3468 = vadd.f32 0.0, %v3467
    %3469 = vdwg.mxu0
    %v3470 = vadd.f32 %v3324, %v3395
    %v3471 = vadd.f32 %v3325, %v3397
    %v3472 = vadd.f32 %v3326, %v3466
    %v3473 = vadd.f32 %v3327, %v3468
    %v3474 = vxor.u32 %v3470, 2147483648
    %v3475 = vxor.u32 %v3471, 2147483648
    %v3476 = vxor.u32 %v3472, 2147483648
    %v3477 = vmul.f32 %v3474, 1.442695
    %v3478 = vpow.pop %v3477
    %v3479 = vmul.f32 %v3475, 1.442695
    %v3480 = vpow.pop %v3479
    %v3481 = vmul.f32 %v3476, 1.442695
    %v3482 = vpow.pop %v3481
    %v3483 = vadd.f32 %v3478, 1.0
    %v3484 = vadd.f32 %v3480, 1.0
    %v3485 = vadd.f32 %v3482, 1.0
    %v3486 = vrcp.pop %v3483
    %v3487 = vmul.f32 1.0, %v3486
    %v3488 = vrcp.pop %v3484
    %v3489 = vmul.f32 1.0, %v3488
    %v3490 = vrcp.pop %v3485
    %v3491 = vmul.f32 1.0, %v3490
    %v3492 = vtanh.pop %v3473
    %v3493 = vmul.f32 %v3489, %v3320
    %v3494 = vmul.f32 %v3487, %v3492
    %v3495 = vadd.f32 %v3493, %v3494
    %v3496 = vtanh.pop %v3495
    %v3497 = vmul.f32 %v3491, %v3496
    %s3498 = scalar_lea.vmem [#allocation2], 512
    %v3499 = vld [vmem:[%s3498] sm:$0xff]
    %v3500 = vld [vmem:[%s3498 + $0x8] sm:$0xff]
    %v3501 = vld [vmem:[%s3498 + $0x10] sm:$0xff]
    %v3502 = vld [vmem:[%s3498 + $0x18] sm:$0xff]
    %3503 = vmatprep.subr.mxu0 %v640
    %3504 = vmatpush1.msra.mxu0 %v639
    %3505 = vmatprep.subr.mxu0 %v644
    %3506 = vmatpush1.msra.mxu0 %v643
    %3507 = vmatprep.subr.mxu0 %v648
    %3508 = vmatpush1.msra.mxu0 %v647
    %3509 = vmatprep.subr.mxu0 %v652
    %3510 = vmatpush1.msra.mxu0 %v651
    %3511 = vmatprep.subr.mxu0 %v656
    %3512 = vmatpush1.msra.mxu0 %v655
    %3513 = vmatprep.subr.mxu0 %v660
    %3514 = vmatpush1.msra.mxu0 %v659
    %3515 = vmatprep.subr.mxu0 %v664
    %3516 = vmatpush1.msra.mxu0 %v663
    %3517 = vmatprep.subr.mxu0 %v668
    %3518 = vmatpush1.msra.mxu0 %v667
    %3519 = vmatprep.subr.mxu0 %v672
    %3520 = vmatpush1.msra.mxu0 %v671
    %3521 = vmatprep.subr.mxu0 %v676
    %3522 = vmatpush1.msra.mxu0 %v675
    %3523 = vmatprep.subr.mxu0 %v680
    %3524 = vmatpush1.msra.mxu0 %v679
    %3525 = vmatprep.subr.mxu0 %v684
    %3526 = vmatpush1.msra.mxu0 %v683
    %3527 = vmatprep.subr.mxu0 %v688
    %3528 = vmatpush1.msra.mxu0 %v687
    %3529 = vmatprep.subr.mxu0 %v692
    %3530 = vmatpush1.msra.mxu0 %v691
    %3531 = vmatprep.subr.mxu0 %v696
    %3532 = vmatpush1.msra.mxu0 %v695
    %3533 = vmatprep.subr.mxu0 %v700
    %3534 = vmatpush1.msra.mxu0 %v699
    %3535 = vmatprep.subr.mxu0 0.0
    %3536 = vmatpush1.msra.mxu0 0.0
    %3537 = vmatprep.subr.mxu0 0.0
    %3538 = vmatpush1.msra.mxu0 0.0
    %3539 = vmatprep.subr.mxu0 0.0
    %3540 = vmatpush1.msra.mxu0 0.0
    %3541 = vmatprep.subr.mxu0 0.0
    %3542 = vmatpush1.msra.mxu0 0.0
    %3543 = vmatprep.subr.mxu0 0.0
    %3544 = vmatpush1.msra.mxu0 0.0
    %3545 = vmatprep.subr.mxu0 0.0
    %3546 = vmatpush1.msra.mxu0 0.0
    %3547 = vmatprep.subr.mxu0 0.0
    %3548 = vmatpush1.msra.mxu0 0.0
    %3549 = vmatprep.subr.mxu0 0.0
    %3550 = vmatpush1.msra.mxu0 0.0
    %3551 = vmatprep.subr.mxu0 0.0
    %3552 = vmatpush1.msra.mxu0 0.0
    %3553 = vmatprep.subr.mxu0 0.0
    %3554 = vmatpush1.msra.mxu0 0.0
    %3555 = vmatprep.subr.mxu0 0.0
    %3556 = vmatpush1.msra.mxu0 0.0
    %3557 = vmatprep.subr.mxu0 0.0
    %3558 = vmatpush1.msra.mxu0 0.0
    %3559 = vmatprep.subr.mxu0 0.0
    %3560 = vmatpush1.msra.mxu0 0.0
    %3561 = vmatprep.subr.mxu0 0.0
    %3562 = vmatpush1.msra.mxu0 0.0
    %3563 = vmatprep.subr.mxu0 0.0
    %3564 = vmatpush1.msra.mxu0 0.0
    %3565 = vmatprep.subr.mxu0 0.0
    %3566 = vmatpush1.msra.mxu0 0.0
    %3567 = vmatprep.mubr.f32.mxu0 0.0
    %3568 = vmatmul.mubr.f32.gmra.mrb[0].mxu0 %v3497
    %v3569 = vpop.f32.mrb[0].mxu0
    %v3570 = vadd.f32 0.0, %v3569
    %v3571 = vpop.f32.mrb[0].mxu0
    %v3572 = vadd.f32 0.0, %v3571
    %3573 = vdwg.mxu0
    %3574 = vmatprep.subr.mxu0 %v642
    %3575 = vmatpush1.msra.mxu0 %v641
    %3576 = vmatprep.subr.mxu0 %v646
    %3577 = vmatpush1.msra.mxu0 %v645
    %3578 = vmatprep.subr.mxu0 %v650
    %3579 = vmatpush1.msra.mxu0 %v649
    %3580 = vmatprep.subr.mxu0 %v654
    %3581 = vmatpush1.msra.mxu0 %v653
    %3582 = vmatprep.subr.mxu0 %v658
    %3583 = vmatpush1.msra.mxu0 %v657
    %3584 = vmatprep.subr.mxu0 %v662
    %3585 = vmatpush1.msra.mxu0 %v661
    %3586 = vmatprep.subr.mxu0 %v666
    %3587 = vmatpush1.msra.mxu0 %v665
    %3588 = vmatprep.subr.mxu0 %v670
    %3589 = vmatpush1.msra.mxu0 %v669
    %3590 = vmatprep.subr.mxu0 %v674
    %3591 = vmatpush1.msra.mxu0 %v673
    %3592 = vmatprep.subr.mxu0 %v678
    %3593 = vmatpush1.msra.mxu0 %v677
    %3594 = vmatprep.subr.mxu0 %v682
    %3595 = vmatpush1.msra.mxu0 %v681
    %3596 = vmatprep.subr.mxu0 %v686
    %3597 = vmatpush1.msra.mxu0 %v685
    %3598 = vmatprep.subr.mxu0 %v690
    %3599 = vmatpush1.msra.mxu0 %v689
    %3600 = vmatprep.subr.mxu0 %v694
    %3601 = vmatpush1.msra.mxu0 %v693
    %3602 = vmatprep.subr.mxu0 %v698
    %3603 = vmatpush1.msra.mxu0 %v697
    %3604 = vmatprep.subr.mxu0 %v702
    %3605 = vmatpush1.msra.mxu0 %v701
    %3606 = vmatprep.subr.mxu0 0.0
    %3607 = vmatpush1.msra.mxu0 0.0
    %3608 = vmatprep.subr.mxu0 0.0
    %3609 = vmatpush1.msra.mxu0 0.0
    %3610 = vmatprep.subr.mxu0 0.0
    %3611 = vmatpush1.msra.mxu0 0.0
    %3612 = vmatprep.subr.mxu0 0.0
    %3613 = vmatpush1.msra.mxu0 0.0
    %3614 = vmatprep.subr.mxu0 0.0
    %3615 = vmatpush1.msra.mxu0 0.0
    %3616 = vmatprep.subr.mxu0 0.0
    %3617 = vmatpush1.msra.mxu0 0.0
    %3618 = vmatprep.subr.mxu0 0.0
    %3619 = vmatpush1.msra.mxu0 0.0
    %3620 = vmatprep.subr.mxu0 0.0
    %3621 = vmatpush1.msra.mxu0 0.0
    %3622 = vmatprep.subr.mxu0 0.0
    %3623 = vmatpush1.msra.mxu0 0.0
    %3624 = vmatprep.subr.mxu0 0.0
    %3625 = vmatpush1.msra.mxu0 0.0
    %3626 = vmatprep.subr.mxu0 0.0
    %3627 = vmatpush1.msra.mxu0 0.0
    %3628 = vmatprep.subr.mxu0 0.0
    %3629 = vmatpush1.msra.mxu0 0.0
    %3630 = vmatprep.subr.mxu0 0.0
    %3631 = vmatpush1.msra.mxu0 0.0
    %3632 = vmatprep.subr.mxu0 0.0
    %3633 = vmatpush1.msra.mxu0 0.0
    %3634 = vmatprep.subr.mxu0 0.0
    %3635 = vmatpush1.msra.mxu0 0.0
    %3636 = vmatprep.subr.mxu0 0.0
    %3637 = vmatpush1.msra.mxu0 0.0
    %3638 = vmatprep.mubr.f32.mxu0 0.0
    %3639 = vmatmul.mubr.f32.gmra.mrb[0].mxu0 %v3497
    %v3640 = vpop.f32.mrb[0].mxu0
    %v3641 = vadd.f32 0.0, %v3640
    %v3642 = vpop.f32.mrb[0].mxu0
    %v3643 = vadd.f32 0.0, %v3642
    %3644 = vdwg.mxu0
    %v3645 = vadd.f32 %v3499, %v3570
    %v3646 = vadd.f32 %v3500, %v3572
    %v3647 = vadd.f32 %v3501, %v3641
    %v3648 = vadd.f32 %v3502, %v3643
    %v3649 = vxor.u32 %v3645, 2147483648
    %v3650 = vxor.u32 %v3646, 2147483648
    %v3651 = vxor.u32 %v3647, 2147483648
    %v3652 = vmul.f32 %v3649, 1.442695
    %v3653 = vpow.pop %v3652
    %v3654 = vmul.f32 %v3650, 1.442695
    %v3655 = vpow.pop %v3654
    %v3656 = vmul.f32 %v3651, 1.442695
    %v3657 = vpow.pop %v3656
    %v3658 = vadd.f32 %v3653, 1.0
    %v3659 = vadd.f32 %v3655, 1.0
    %v3660 = vadd.f32 %v3657, 1.0
    %v3661 = vrcp.pop %v3658
    %v3662 = vmul.f32 1.0, %v3661
    %v3663 = vrcp.pop %v3659
    %v3664 = vmul.f32 1.0, %v3663
    %v3665 = vrcp.pop %v3660
    %v3666 = vmul.f32 1.0, %v3665
    %v3667 = vtanh.pop %v3648
    %v3668 = vmul.f32 %v3664, %v3495
    %v3669 = vmul.f32 %v3662, %v3667
    %v3670 = vadd.f32 %v3668, %v3669
    %v3671 = vtanh.pop %v3670
    %v3672 = vmul.f32 %v3666, %v3671
    %s3673 = scalar_lea.vmem [#allocation2], 544
    %v3674 = vld [vmem:[%s3673] sm:$0xff]
    %v3675 = vld [vmem:[%s3673 + $0x8] sm:$0xff]
    %v3676 = vld [vmem:[%s3673 + $0x10] sm:$0xff]
    %v3677 = vld [vmem:[%s3673 + $0x18] sm:$0xff]
    %3678 = vmatprep.subr.mxu0 %v640
    %3679 = vmatpush1.msra.mxu0 %v639
    %3680 = vmatprep.subr.mxu0 %v644
    %3681 = vmatpush1.msra.mxu0 %v643
    %3682 = vmatprep.subr.mxu0 %v648
    %3683 = vmatpush1.msra.mxu0 %v647
    %3684 = vmatprep.subr.mxu0 %v652
    %3685 = vmatpush1.msra.mxu0 %v651
    %3686 = vmatprep.subr.mxu0 %v656
    %3687 = vmatpush1.msra.mxu0 %v655
    %3688 = vmatprep.subr.mxu0 %v660
    %3689 = vmatpush1.msra.mxu0 %v659
    %3690 = vmatprep.subr.mxu0 %v664
    %3691 = vmatpush1.msra.mxu0 %v663
    %3692 = vmatprep.subr.mxu0 %v668
    %3693 = vmatpush1.msra.mxu0 %v667
    %3694 = vmatprep.subr.mxu0 %v672
    %3695 = vmatpush1.msra.mxu0 %v671
    %3696 = vmatprep.subr.mxu0 %v676
    %3697 = vmatpush1.msra.mxu0 %v675
    %3698 = vmatprep.subr.mxu0 %v680
    %3699 = vmatpush1.msra.mxu0 %v679
    %3700 = vmatprep.subr.mxu0 %v684
    %3701 = vmatpush1.msra.mxu0 %v683
    %3702 = vmatprep.subr.mxu0 %v688
    %3703 = vmatpush1.msra.mxu0 %v687
    %3704 = vmatprep.subr.mxu0 %v692
    %3705 = vmatpush1.msra.mxu0 %v691
    %3706 = vmatprep.subr.mxu0 %v696
    %3707 = vmatpush1.msra.mxu0 %v695
    %3708 = vmatprep.subr.mxu0 %v700
    %3709 = vmatpush1.msra.mxu0 %v699
    %3710 = vmatprep.subr.mxu0 0.0
    %3711 = vmatpush1.msra.mxu0 0.0
    %3712 = vmatprep.subr.mxu0 0.0
    %3713 = vmatpush1.msra.mxu0 0.0
    %3714 = vmatprep.subr.mxu0 0.0
    %3715 = vmatpush1.msra.mxu0 0.0
    %3716 = vmatprep.subr.mxu0 0.0
    %3717 = vmatpush1.msra.mxu0 0.0
    %3718 = vmatprep.subr.mxu0 0.0
    %3719 = vmatpush1.msra.mxu0 0.0
    %3720 = vmatprep.subr.mxu0 0.0
    %3721 = vmatpush1.msra.mxu0 0.0
    %3722 = vmatprep.subr.mxu0 0.0
    %3723 = vmatpush1.msra.mxu0 0.0
    %3724 = vmatprep.subr.mxu0 0.0
    %3725 = vmatpush1.msra.mxu0 0.0
    %3726 = vmatprep.subr.mxu0 0.0
    %3727 = vmatpush1.msra.mxu0 0.0
    %3728 = vmatprep.subr.mxu0 0.0
    %3729 = vmatpush1.msra.mxu0 0.0
    %3730 = vmatprep.subr.mxu0 0.0
    %3731 = vmatpush1.msra.mxu0 0.0
    %3732 = vmatprep.subr.mxu0 0.0
    %3733 = vmatpush1.msra.mxu0 0.0
    %3734 = vmatprep.subr.mxu0 0.0
    %3735 = vmatpush1.msra.mxu0 0.0
    %3736 = vmatprep.subr.mxu0 0.0
    %3737 = vmatpush1.msra.mxu0 0.0
    %3738 = vmatprep.subr.mxu0 0.0
    %3739 = vmatpush1.msra.mxu0 0.0
    %3740 = vmatprep.subr.mxu0 0.0
    %3741 = vmatpush1.msra.mxu0 0.0
    %3742 = vmatprep.mubr.f32.mxu0 0.0
    %3743 = vmatmul.mubr.f32.gmra.mrb[0].mxu0 %v3672
    %v3744 = vpop.f32.mrb[0].mxu0
    %v3745 = vadd.f32 0.0, %v3744
    %v3746 = vpop.f32.mrb[0].mxu0
    %v3747 = vadd.f32 0.0, %v3746
    %3748 = vdwg.mxu0
    %3749 = vmatprep.subr.mxu0 %v642
    %3750 = vmatpush1.msra.mxu0 %v641
    %3751 = vmatprep.subr.mxu0 %v646
    %3752 = vmatpush1.msra.mxu0 %v645
    %3753 = vmatprep.subr.mxu0 %v650
    %3754 = vmatpush1.msra.mxu0 %v649
    %3755 = vmatprep.subr.mxu0 %v654
    %3756 = vmatpush1.msra.mxu0 %v653
    %3757 = vmatprep.subr.mxu0 %v658
    %3758 = vmatpush1.msra.mxu0 %v657
    %3759 = vmatprep.subr.mxu0 %v662
    %3760 = vmatpush1.msra.mxu0 %v661
    %3761 = vmatprep.subr.mxu0 %v666
    %3762 = vmatpush1.msra.mxu0 %v665
    %3763 = vmatprep.subr.mxu0 %v670
    %3764 = vmatpush1.msra.mxu0 %v669
    %3765 = vmatprep.subr.mxu0 %v674
    %3766 = vmatpush1.msra.mxu0 %v673
    %3767 = vmatprep.subr.mxu0 %v678
    %3768 = vmatpush1.msra.mxu0 %v677
    %3769 = vmatprep.subr.mxu0 %v682
    %3770 = vmatpush1.msra.mxu0 %v681
    %3771 = vmatprep.subr.mxu0 %v686
    %3772 = vmatpush1.msra.mxu0 %v685
    %3773 = vmatprep.subr.mxu0 %v690
    %3774 = vmatpush1.msra.mxu0 %v689
    %3775 = vmatprep.subr.mxu0 %v694
    %3776 = vmatpush1.msra.mxu0 %v693
    %3777 = vmatprep.subr.mxu0 %v698
    %3778 = vmatpush1.msra.mxu0 %v697
    %3779 = vmatprep.subr.mxu0 %v702
    %3780 = vmatpush1.msra.mxu0 %v701
    %3781 = vmatprep.subr.mxu0 0.0
    %3782 = vmatpush1.msra.mxu0 0.0
    %3783 = vmatprep.subr.mxu0 0.0
    %3784 = vmatpush1.msra.mxu0 0.0
    %3785 = vmatprep.subr.mxu0 0.0
    %3786 = vmatpush1.msra.mxu0 0.0
    %3787 = vmatprep.subr.mxu0 0.0
    %3788 = vmatpush1.msra.mxu0 0.0
    %3789 = vmatprep.subr.mxu0 0.0
    %3790 = vmatpush1.msra.mxu0 0.0
    %3791 = vmatprep.subr.mxu0 0.0
    %3792 = vmatpush1.msra.mxu0 0.0
    %3793 = vmatprep.subr.mxu0 0.0
    %3794 = vmatpush1.msra.mxu0 0.0
    %3795 = vmatprep.subr.mxu0 0.0
    %3796 = vmatpush1.msra.mxu0 0.0
    %3797 = vmatprep.subr.mxu0 0.0
    %3798 = vmatpush1.msra.mxu0 0.0
    %3799 = vmatprep.subr.mxu0 0.0
    %3800 = vmatpush1.msra.mxu0 0.0
    %3801 = vmatprep.subr.mxu0 0.0
    %3802 = vmatpush1.msra.mxu0 0.0
    %3803 = vmatprep.subr.mxu0 0.0
    %3804 = vmatpush1.msra.mxu0 0.0
    %3805 = vmatprep.subr.mxu0 0.0
    %3806 = vmatpush1.msra.mxu0 0.0
    %3807 = vmatprep.subr.mxu0 0.0
    %3808 = vmatpush1.msra.mxu0 0.0
    %3809 = vmatprep.subr.mxu0 0.0
    %3810 = vmatpush1.msra.mxu0 0.0
    %3811 = vmatprep.subr.mxu0 0.0
    %3812 = vmatpush1.msra.mxu0 0.0
    %3813 = vmatprep.mubr.f32.mxu0 0.0
    %3814 = vmatmul.mubr.f32.gmra.mrb[0].mxu0 %v3672
    %v3815 = vpop.f32.mrb[0].mxu0
    %v3816 = vadd.f32 0.0, %v3815
    %v3817 = vpop.f32.mrb[0].mxu0
    %v3818 = vadd.f32 0.0, %v3817
    %3819 = vdwg.mxu0
    %v3820 = vadd.f32 %v3674, %v3745
    %v3821 = vadd.f32 %v3675, %v3747
    %v3822 = vadd.f32 %v3676, %v3816
    %v3823 = vadd.f32 %v3677, %v3818
    %v3824 = vxor.u32 %v3820, 2147483648
    %v3825 = vxor.u32 %v3821, 2147483648
    %v3826 = vxor.u32 %v3822, 2147483648
    %v3827 = vmul.f32 %v3824, 1.442695
    %v3828 = vpow.pop %v3827
    %v3829 = vmul.f32 %v3825, 1.442695
    %v3830 = vpow.pop %v3829
    %v3831 = vmul.f32 %v3826, 1.442695
    %v3832 = vpow.pop %v3831
    %v3833 = vadd.f32 %v3828, 1.0
    %v3834 = vadd.f32 %v3830, 1.0
    %v3835 = vadd.f32 %v3832, 1.0
    %v3836 = vrcp.pop %v3833
    %v3837 = vmul.f32 1.0, %v3836
    %v3838 = vrcp.pop %v3834
    %v3839 = vmul.f32 1.0, %v3838
    %v3840 = vrcp.pop %v3835
    %v3841 = vmul.f32 1.0, %v3840
    %v3842 = vtanh.pop %v3823
    %v3843 = vmul.f32 %v3839, %v3670
    %v3844 = vmul.f32 %v3837, %v3842
    %v3845 = vadd.f32 %v3843, %v3844
    %v3846 = vtanh.pop %v3845
    %v3847 = vmul.f32 %v3841, %v3846
    %s3848 = scalar_lea.vmem [#allocation2], 576
    %v3849 = vld [vmem:[%s3848] sm:$0xff]
    %v3850 = vld [vmem:[%s3848 + $0x8] sm:$0xff]
    %v3851 = vld [vmem:[%s3848 + $0x10] sm:$0xff]
    %v3852 = vld [vmem:[%s3848 + $0x18] sm:$0xff]
    %3853 = vmatprep.subr.mxu0 %v640
    %3854 = vmatpush1.msra.mxu0 %v639
    %3855 = vmatprep.subr.mxu0 %v644
    %3856 = vmatpush1.msra.mxu0 %v643
    %3857 = vmatprep.subr.mxu0 %v648
    %3858 = vmatpush1.msra.mxu0 %v647
    %3859 = vmatprep.subr.mxu0 %v652
    %3860 = vmatpush1.msra.mxu0 %v651
    %3861 = vmatprep.subr.mxu0 %v656
    %3862 = vmatpush1.msra.mxu0 %v655
    %3863 = vmatprep.subr.mxu0 %v660
    %3864 = vmatpush1.msra.mxu0 %v659
    %3865 = vmatprep.subr.mxu0 %v664
    %3866 = vmatpush1.msra.mxu0 %v663
    %3867 = vmatprep.subr.mxu0 %v668
    %3868 = vmatpush1.msra.mxu0 %v667
    %3869 = vmatprep.subr.mxu0 %v672
    %3870 = vmatpush1.msra.mxu0 %v671
    %3871 = vmatprep.subr.mxu0 %v676
    %3872 = vmatpush1.msra.mxu0 %v675
    %3873 = vmatprep.subr.mxu0 %v680
    %3874 = vmatpush1.msra.mxu0 %v679
    %3875 = vmatprep.subr.mxu0 %v684
    %3876 = vmatpush1.msra.mxu0 %v683
    %3877 = vmatprep.subr.mxu0 %v688
    %3878 = vmatpush1.msra.mxu0 %v687
    %3879 = vmatprep.subr.mxu0 %v692
    %3880 = vmatpush1.msra.mxu0 %v691
    %3881 = vmatprep.subr.mxu0 %v696
    %3882 = vmatpush1.msra.mxu0 %v695
    %3883 = vmatprep.subr.mxu0 %v700
    %3884 = vmatpush1.msra.mxu0 %v699
    %3885 = vmatprep.subr.mxu0 0.0
    %3886 = vmatpush1.msra.mxu0 0.0
    %3887 = vmatprep.subr.mxu0 0.0
    %3888 = vmatpush1.msra.mxu0 0.0
    %3889 = vmatprep.subr.mxu0 0.0
    %3890 = vmatpush1.msra.mxu0 0.0
    %3891 = vmatprep.subr.mxu0 0.0
    %3892 = vmatpush1.msra.mxu0 0.0
    %3893 = vmatprep.subr.mxu0 0.0
    %3894 = vmatpush1.msra.mxu0 0.0
    %3895 = vmatprep.subr.mxu0 0.0
    %3896 = vmatpush1.msra.mxu0 0.0
    %3897 = vmatprep.subr.mxu0 0.0
    %3898 = vmatpush1.msra.mxu0 0.0
    %3899 = vmatprep.subr.mxu0 0.0
    %3900 = vmatpush1.msra.mxu0 0.0
    %3901 = vmatprep.subr.mxu0 0.0
    %3902 = vmatpush1.msra.mxu0 0.0
    %3903 = vmatprep.subr.mxu0 0.0
    %3904 = vmatpush1.msra.mxu0 0.0
    %3905 = vmatprep.subr.mxu0 0.0
    %3906 = vmatpush1.msra.mxu0 0.0
    %3907 = vmatprep.subr.mxu0 0.0
    %3908 = vmatpush1.msra.mxu0 0.0
    %3909 = vmatprep.subr.mxu0 0.0
    %3910 = vmatpush1.msra.mxu0 0.0
    %3911 = vmatprep.subr.mxu0 0.0
    %3912 = vmatpush1.msra.mxu0 0.0
    %3913 = vmatprep.subr.mxu0 0.0
    %3914 = vmatpush1.msra.mxu0 0.0
    %3915 = vmatprep.subr.mxu0 0.0
    %3916 = vmatpush1.msra.mxu0 0.0
    %3917 = vmatprep.mubr.f32.mxu0 0.0
    %3918 = vmatmul.mubr.f32.gmra.mrb[0].mxu0 %v3847
    %v3919 = vpop.f32.mrb[0].mxu0
    %v3920 = vadd.f32 0.0, %v3919
    %v3921 = vpop.f32.mrb[0].mxu0
    %v3922 = vadd.f32 0.0, %v3921
    %3923 = vdwg.mxu0
    %3924 = vmatprep.subr.mxu0 %v642
    %3925 = vmatpush1.msra.mxu0 %v641
    %3926 = vmatprep.subr.mxu0 %v646
    %3927 = vmatpush1.msra.mxu0 %v645
    %3928 = vmatprep.subr.mxu0 %v650
    %3929 = vmatpush1.msra.mxu0 %v649
    %3930 = vmatprep.subr.mxu0 %v654
    %3931 = vmatpush1.msra.mxu0 %v653
    %3932 = vmatprep.subr.mxu0 %v658
    %3933 = vmatpush1.msra.mxu0 %v657
    %3934 = vmatprep.subr.mxu0 %v662
    %3935 = vmatpush1.msra.mxu0 %v661
    %3936 = vmatprep.subr.mxu0 %v666
    %3937 = vmatpush1.msra.mxu0 %v665
    %3938 = vmatprep.subr.mxu0 %v670
    %3939 = vmatpush1.msra.mxu0 %v669
    %3940 = vmatprep.subr.mxu0 %v674
    %3941 = vmatpush1.msra.mxu0 %v673
    %3942 = vmatprep.subr.mxu0 %v678
    %3943 = vmatpush1.msra.mxu0 %v677
    %3944 = vmatprep.subr.mxu0 %v682
    %3945 = vmatpush1.msra.mxu0 %v681
    %3946 = vmatprep.subr.mxu0 %v686
    %3947 = vmatpush1.msra.mxu0 %v685
    %3948 = vmatprep.subr.mxu0 %v690
    %3949 = vmatpush1.msra.mxu0 %v689
    %3950 = vmatprep.subr.mxu0 %v694
    %3951 = vmatpush1.msra.mxu0 %v693
    %3952 = vmatprep.subr.mxu0 %v698
    %3953 = vmatpush1.msra.mxu0 %v697
    %3954 = vmatprep.subr.mxu0 %v702
    %3955 = vmatpush1.msra.mxu0 %v701
    %3956 = vmatprep.subr.mxu0 0.0
    %3957 = vmatpush1.msra.mxu0 0.0
    %3958 = vmatprep.subr.mxu0 0.0
    %3959 = vmatpush1.msra.mxu0 0.0
    %3960 = vmatprep.subr.mxu0 0.0
    %3961 = vmatpush1.msra.mxu0 0.0
    %3962 = vmatprep.subr.mxu0 0.0
    %3963 = vmatpush1.msra.mxu0 0.0
    %3964 = vmatprep.subr.mxu0 0.0
    %3965 = vmatpush1.msra.mxu0 0.0
    %3966 = vmatprep.subr.mxu0 0.0
    %3967 = vmatpush1.msra.mxu0 0.0
    %3968 = vmatprep.subr.mxu0 0.0
    %3969 = vmatpush1.msra.mxu0 0.0
    %3970 = vmatprep.subr.mxu0 0.0
    %3971 = vmatpush1.msra.mxu0 0.0
    %3972 = vmatprep.subr.mxu0 0.0
    %3973 = vmatpush1.msra.mxu0 0.0
    %3974 = vmatprep.subr.mxu0 0.0
    %3975 = vmatpush1.msra.mxu0 0.0
    %3976 = vmatprep.subr.mxu0 0.0
    %3977 = vmatpush1.msra.mxu0 0.0
    %3978 = vmatprep.subr.mxu0 0.0
    %3979 = vmatpush1.msra.mxu0 0.0
    %3980 = vmatprep.subr.mxu0 0.0
    %3981 = vmatpush1.msra.mxu0 0.0
    %3982 = vmatprep.subr.mxu0 0.0
    %3983 = vmatpush1.msra.mxu0 0.0
    %3984 = vmatprep.subr.mxu0 0.0
    %3985 = vmatpush1.msra.mxu0 0.0
    %3986 = vmatprep.subr.mxu0 0.0
    %3987 = vmatpush1.msra.mxu0 0.0
    %3988 = vmatprep.mubr.f32.mxu0 0.0
    %3989 = vmatmul.mubr.f32.gmra.mrb[0].mxu0 %v3847
    %v3990 = vpop.f32.mrb[0].mxu0
    %v3991 = vadd.f32 0.0, %v3990
    %v3992 = vpop.f32.mrb[0].mxu0
    %v3993 = vadd.f32 0.0, %v3992
    %3994 = vdwg.mxu0
    %v3995 = vadd.f32 %v3849, %v3920
    %v3996 = vadd.f32 %v3850, %v3922
    %v3997 = vadd.f32 %v3851, %v3991
    %v3998 = vadd.f32 %v3852, %v3993
    %v3999 = vxor.u32 %v3995, 2147483648
    %v4000 = vxor.u32 %v3996, 2147483648
    %v4001 = vxor.u32 %v3997, 2147483648
    %v4002 = vmul.f32 %v3999, 1.442695
    %v4003 = vpow.pop %v4002
    %v4004 = vmul.f32 %v4000, 1.442695
    %v4005 = vpow.pop %v4004
    %v4006 = vmul.f32 %v4001, 1.442695
    %v4007 = vpow.pop %v4006
    %v4008 = vadd.f32 %v4003, 1.0
    %v4009 = vadd.f32 %v4005, 1.0
    %v4010 = vadd.f32 %v4007, 1.0
    %v4011 = vrcp.pop %v4008
    %v4012 = vmul.f32 1.0, %v4011
    %v4013 = vrcp.pop %v4009
    %v4014 = vmul.f32 1.0, %v4013
    %v4015 = vrcp.pop %v4010
    %v4016 = vmul.f32 1.0, %v4015
    %v4017 = vtanh.pop %v3998
    %v4018 = vmul.f32 %v4014, %v3845
    %v4019 = vmul.f32 %v4012, %v4017
    %v4020 = vadd.f32 %v4018, %v4019
    %v4021 = vtanh.pop %v4020
    %v4022 = vmul.f32 %v4016, %v4021
    %s4023 = scalar_lea.vmem [#allocation2], 608
    %v4024 = vld [vmem:[%s4023] sm:$0xff]
    %v4025 = vld [vmem:[%s4023 + $0x8] sm:$0xff]
    %v4026 = vld [vmem:[%s4023 + $0x10] sm:$0xff]
    %v4027 = vld [vmem:[%s4023 + $0x18] sm:$0xff]
    %4028 = vmatprep.subr.mxu0 %v640
    %4029 = vmatpush1.msra.mxu0 %v639
    %4030 = vmatprep.subr.mxu0 %v644
    %4031 = vmatpush1.msra.mxu0 %v643
    %4032 = vmatprep.subr.mxu0 %v648
    %4033 = vmatpush1.msra.mxu0 %v647
    %4034 = vmatprep.subr.mxu0 %v652
    %4035 = vmatpush1.msra.mxu0 %v651
    %4036 = vmatprep.subr.mxu0 %v656
    %4037 = vmatpush1.msra.mxu0 %v655
    %4038 = vmatprep.subr.mxu0 %v660
    %4039 = vmatpush1.msra.mxu0 %v659
    %4040 = vmatprep.subr.mxu0 %v664
    %4041 = vmatpush1.msra.mxu0 %v663
    %4042 = vmatprep.subr.mxu0 %v668
    %4043 = vmatpush1.msra.mxu0 %v667
    %4044 = vmatprep.subr.mxu0 %v672
    %4045 = vmatpush1.msra.mxu0 %v671
    %4046 = vmatprep.subr.mxu0 %v676
    %4047 = vmatpush1.msra.mxu0 %v675
    %4048 = vmatprep.subr.mxu0 %v680
    %4049 = vmatpush1.msra.mxu0 %v679
    %4050 = vmatprep.subr.mxu0 %v684
    %4051 = vmatpush1.msra.mxu0 %v683
    %4052 = vmatprep.subr.mxu0 %v688
    %4053 = vmatpush1.msra.mxu0 %v687
    %4054 = vmatprep.subr.mxu0 %v692
    %4055 = vmatpush1.msra.mxu0 %v691
    %4056 = vmatprep.subr.mxu0 %v696
    %4057 = vmatpush1.msra.mxu0 %v695
    %4058 = vmatprep.subr.mxu0 %v700
    %4059 = vmatpush1.msra.mxu0 %v699
    %4060 = vmatprep.subr.mxu0 0.0
    %4061 = vmatpush1.msra.mxu0 0.0
    %4062 = vmatprep.subr.mxu0 0.0
    %4063 = vmatpush1.msra.mxu0 0.0
    %4064 = vmatprep.subr.mxu0 0.0
    %4065 = vmatpush1.msra.mxu0 0.0
    %4066 = vmatprep.subr.mxu0 0.0
    %4067 = vmatpush1.msra.mxu0 0.0
    %4068 = vmatprep.subr.mxu0 0.0
    %4069 = vmatpush1.msra.mxu0 0.0
    %4070 = vmatprep.subr.mxu0 0.0
    %4071 = vmatpush1.msra.mxu0 0.0
    %4072 = vmatprep.subr.mxu0 0.0
    %4073 = vmatpush1.msra.mxu0 0.0
    %4074 = vmatprep.subr.mxu0 0.0
    %4075 = vmatpush1.msra.mxu0 0.0
    %4076 = vmatprep.subr.mxu0 0.0
    %4077 = vmatpush1.msra.mxu0 0.0
    %4078 = vmatprep.subr.mxu0 0.0
    %4079 = vmatpush1.msra.mxu0 0.0
    %4080 = vmatprep.subr.mxu0 0.0
    %4081 = vmatpush1.msra.mxu0 0.0
    %4082 = vmatprep.subr.mxu0 0.0
    %4083 = vmatpush1.msra.mxu0 0.0
    %4084 = vmatprep.subr.mxu0 0.0
    %4085 = vmatpush1.msra.mxu0 0.0
    %4086 = vmatprep.subr.mxu0 0.0
    %4087 = vmatpush1.msra.mxu0 0.0
    %4088 = vmatprep.subr.mxu0 0.0
    %4089 = vmatpush1.msra.mxu0 0.0
    %4090 = vmatprep.subr.mxu0 0.0
    %4091 = vmatpush1.msra.mxu0 0.0
    %4092 = vmatprep.mubr.f32.mxu0 0.0
    %4093 = vmatmul.mubr.f32.gmra.mrb[0].mxu0 %v4022
    %v4094 = vpop.f32.mrb[0].mxu0
    %v4095 = vadd.f32 0.0, %v4094
    %v4096 = vpop.f32.mrb[0].mxu0
    %v4097 = vadd.f32 0.0, %v4096
    %4098 = vdwg.mxu0
    %4099 = vmatprep.subr.mxu0 %v642
    %4100 = vmatpush1.msra.mxu0 %v641
    %4101 = vmatprep.subr.mxu0 %v646
    %4102 = vmatpush1.msra.mxu0 %v645
    %4103 = vmatprep.subr.mxu0 %v650
    %4104 = vmatpush1.msra.mxu0 %v649
    %4105 = vmatprep.subr.mxu0 %v654
    %4106 = vmatpush1.msra.mxu0 %v653
    %4107 = vmatprep.subr.mxu0 %v658
    %4108 = vmatpush1.msra.mxu0 %v657
    %4109 = vmatprep.subr.mxu0 %v662
    %4110 = vmatpush1.msra.mxu0 %v661
    %4111 = vmatprep.subr.mxu0 %v666
    %4112 = vmatpush1.msra.mxu0 %v665
    %4113 = vmatprep.subr.mxu0 %v670
    %4114 = vmatpush1.msra.mxu0 %v669
    %4115 = vmatprep.subr.mxu0 %v674
    %4116 = vmatpush1.msra.mxu0 %v673
    %4117 = vmatprep.subr.mxu0 %v678
    %4118 = vmatpush1.msra.mxu0 %v677
    %4119 = vmatprep.subr.mxu0 %v682
    %4120 = vmatpush1.msra.mxu0 %v681
    %4121 = vmatprep.subr.mxu0 %v686
    %4122 = vmatpush1.msra.mxu0 %v685
    %4123 = vmatprep.subr.mxu0 %v690
    %4124 = vmatpush1.msra.mxu0 %v689
    %4125 = vmatprep.subr.mxu0 %v694
    %4126 = vmatpush1.msra.mxu0 %v693
    %4127 = vmatprep.subr.mxu0 %v698
    %4128 = vmatpush1.msra.mxu0 %v697
    %4129 = vmatprep.subr.mxu0 %v702
    %4130 = vmatpush1.msra.mxu0 %v701
    %4131 = vmatprep.subr.mxu0 0.0
    %4132 = vmatpush1.msra.mxu0 0.0
    %4133 = vmatprep.subr.mxu0 0.0
    %4134 = vmatpush1.msra.mxu0 0.0
    %4135 = vmatprep.subr.mxu0 0.0
    %4136 = vmatpush1.msra.mxu0 0.0
    %4137 = vmatprep.subr.mxu0 0.0
    %4138 = vmatpush1.msra.mxu0 0.0
    %4139 = vmatprep.subr.mxu0 0.0
    %4140 = vmatpush1.msra.mxu0 0.0
    %4141 = vmatprep.subr.mxu0 0.0
    %4142 = vmatpush1.msra.mxu0 0.0
    %4143 = vmatprep.subr.mxu0 0.0
    %4144 = vmatpush1.msra.mxu0 0.0
    %4145 = vmatprep.subr.mxu0 0.0
    %4146 = vmatpush1.msra.mxu0 0.0
    %4147 = vmatprep.subr.mxu0 0.0
    %4148 = vmatpush1.msra.mxu0 0.0
    %4149 = vmatprep.subr.mxu0 0.0
    %4150 = vmatpush1.msra.mxu0 0.0
    %4151 = vmatprep.subr.mxu0 0.0
    %4152 = vmatpush1.msra.mxu0 0.0
    %4153 = vmatprep.subr.mxu0 0.0
    %4154 = vmatpush1.msra.mxu0 0.0
    %4155 = vmatprep.subr.mxu0 0.0
    %4156 = vmatpush1.msra.mxu0 0.0
    %4157 = vmatprep.subr.mxu0 0.0
    %4158 = vmatpush1.msra.mxu0 0.0
    %4159 = vmatprep.subr.mxu0 0.0
    %4160 = vmatpush1.msra.mxu0 0.0
    %4161 = vmatprep.subr.mxu0 0.0
    %4162 = vmatpush1.msra.mxu0 0.0
    %4163 = vmatprep.mubr.f32.mxu0 0.0
    %4164 = vmatmul.mubr.f32.gmra.mrb[0].mxu0 %v4022
    %v4165 = vpop.f32.mrb[0].mxu0
    %v4166 = vadd.f32 0.0, %v4165
    %v4167 = vpop.f32.mrb[0].mxu0
    %v4168 = vadd.f32 0.0, %v4167
    %4169 = vdwg.mxu0
    %v4170 = vadd.f32 %v4024, %v4095
    %v4171 = vadd.f32 %v4025, %v4097
    %v4172 = vadd.f32 %v4026, %v4166
    %v4173 = vadd.f32 %v4027, %v4168
    %v4174 = vxor.u32 %v4170, 2147483648
    %v4175 = vxor.u32 %v4171, 2147483648
    %v4176 = vxor.u32 %v4172, 2147483648
    %v4177 = vmul.f32 %v4174, 1.442695
    %v4178 = vpow.pop %v4177
    %v4179 = vmul.f32 %v4175, 1.442695
    %v4180 = vpow.pop %v4179
    %v4181 = vmul.f32 %v4176, 1.442695
    %v4182 = vpow.pop %v4181
    %v4183 = vadd.f32 %v4178, 1.0
    %v4184 = vadd.f32 %v4180, 1.0
    %v4185 = vadd.f32 %v4182, 1.0
    %v4186 = vrcp.pop %v4183
    %v4187 = vmul.f32 1.0, %v4186
    %v4188 = vrcp.pop %v4184
    %v4189 = vmul.f32 1.0, %v4188
    %v4190 = vrcp.pop %v4185
    %v4191 = vmul.f32 1.0, %v4190
    %v4192 = vtanh.pop %v4173
    %v4193 = vmul.f32 %v4189, %v4020
    %v4194 = vmul.f32 %v4187, %v4192
    %v4195 = vadd.f32 %v4193, %v4194
    %v4196 = vtanh.pop %v4195
    %v4197 = vmul.f32 %v4191, %v4196
    %v4198 = vld [vmem:[#allocation9] sm:$0xff]
    %v4199 = vld [vmem:[#allocation9 + $0x8] sm:$0xff]
    %v4200 = vld [vmem:[#allocation9 + $0x10] sm:$0xff]
    %v4201 = vld [vmem:[#allocation9 + $0x18] sm:$0xff]
    %v4202 = vld [vmem:[#allocation9 + $0x20] sm:$0xff]
    %v4203 = vld [vmem:[#allocation9 + $0x28] sm:$0xff]
    %v4204 = vld [vmem:[#allocation9 + $0x30] sm:$0xff]
    %v4205 = vld [vmem:[#allocation9 + $0x38] sm:$0xff]
    %v4206 = vld [vmem:[#allocation9 + $0x40] sm:$0xff]
    %v4207 = vld [vmem:[#allocation9 + $0x48] sm:$0xff]
    %v4208 = vld [vmem:[#allocation9 + $0x50] sm:$0xff]
    %v4209 = vld [vmem:[#allocation9 + $0x58] sm:$0xff]
    %v4210 = vld [vmem:[#allocation9 + $0x60] sm:$0xff]
    %v4211 = vld [vmem:[#allocation9 + $0x68] sm:$0xff]
    %v4212 = vld [vmem:[#allocation9 + $0x70] sm:$0xff]
    %v4213 = vld [vmem:[#allocation9 + $0x78] sm:$0xff]
    %v4214 = vld [vmem:[%s5] sm:$0x1]
    %v4216 = vlaneseq
    %v4217 = vshrl.u32 %v4216, 7
    %v4218 = vsub.s32 0, %v4217
    %v4219 = vrot.slane %v4214, %v4218
    %4221 = vmatprep.subr.mxu0 0.0
    %4222 = vmatpush1.msra.mxu0 %v4198
    %4223 = vmatprep.subr.mxu0 0.0
    %4224 = vmatpush1.msra.mxu0 %v4199
    %4225 = vmatprep.subr.mxu0 0.0
    %4226 = vmatpush1.msra.mxu0 %v4200
    %4227 = vmatprep.subr.mxu0 0.0
    %4228 = vmatpush1.msra.mxu0 %v4201
    %4229 = vmatprep.subr.mxu0 0.0
    %4230 = vmatpush1.msra.mxu0 %v4202
    %4231 = vmatprep.subr.mxu0 0.0
    %4232 = vmatpush1.msra.mxu0 %v4203
    %4233 = vmatprep.subr.mxu0 0.0
    %4234 = vmatpush1.msra.mxu0 %v4204
    %4235 = vmatprep.subr.mxu0 0.0
    %4236 = vmatpush1.msra.mxu0 %v4205
    %4237 = vmatprep.subr.mxu0 0.0
    %4238 = vmatpush1.msra.mxu0 %v4206
    %4239 = vmatprep.subr.mxu0 0.0
    %4240 = vmatpush1.msra.mxu0 %v4207
    %4241 = vmatprep.subr.mxu0 0.0
    %4242 = vmatpush1.msra.mxu0 %v4208
    %4243 = vmatprep.subr.mxu0 0.0
    %4244 = vmatpush1.msra.mxu0 %v4209
    %4245 = vmatprep.subr.mxu0 0.0
    %4246 = vmatpush1.msra.mxu0 %v4210
    %4247 = vmatprep.subr.mxu0 0.0
    %4248 = vmatpush1.msra.mxu0 %v4211
    %4249 = vmatprep.subr.mxu0 0.0
    %4250 = vmatpush1.msra.mxu0 %v4212
    %4251 = vmatprep.subr.mxu0 0.0
    %4252 = vmatpush1.msra.mxu0 %v4213
    %4253 = vmatprep.subr.mxu0 0.0
    %4254 = vmatpush1.msra.mxu0 0.0
    %4255 = vmatprep.subr.mxu0 0.0
    %4256 = vmatpush1.msra.mxu0 0.0
    %4257 = vmatprep.subr.mxu0 0.0
    %4258 = vmatpush1.msra.mxu0 0.0
    %4259 = vmatprep.subr.mxu0 0.0
    %4260 = vmatpush1.msra.mxu0 0.0
    %4261 = vmatprep.subr.mxu0 0.0
    %4262 = vmatpush1.msra.mxu0 0.0
    %4263 = vmatprep.subr.mxu0 0.0
    %4264 = vmatpush1.msra.mxu0 0.0
    %4265 = vmatprep.subr.mxu0 0.0
    %4266 = vmatpush1.msra.mxu0 0.0
    %4267 = vmatprep.subr.mxu0 0.0
    %4268 = vmatpush1.msra.mxu0 0.0
    %4269 = vmatprep.subr.mxu0 0.0
    %4270 = vmatpush1.msra.mxu0 0.0
    %4271 = vmatprep.subr.mxu0 0.0
    %4272 = vmatpush1.msra.mxu0 0.0
    %4273 = vmatprep.subr.mxu0 0.0
    %4274 = vmatpush1.msra.mxu0 0.0
    %4275 = vmatprep.subr.mxu0 0.0
    %4276 = vmatpush1.msra.mxu0 0.0
    %4277 = vmatprep.subr.mxu0 0.0
    %4278 = vmatpush1.msra.mxu0 0.0
    %4279 = vmatprep.subr.mxu0 0.0
    %4280 = vmatpush1.msra.mxu0 0.0
    %4281 = vmatprep.subr.mxu0 0.0
    %4282 = vmatpush1.msra.mxu0 0.0
    %4283 = vmatprep.subr.mxu0 0.0
    %4284 = vmatpush1.msra.mxu0 0.0
    %4285 = vmatprep.mubr.f32.mxu0 0.0
    %4286 = vmatmul.mubr.f32.gmra.mrb[0].mxu0 %v4197
    %v4287 = vpop.f32.mrb[0].mxu0
    %v4288 = vadd.f32 %v4219, %v4287
    %v4289 = vpop.f32.mrb[0].mxu0
    %4290 = vdwg.mxu0
    %v4291 = vxor.u32 %v4288, 2147483648
    %v4292 = vmul.f32 %v4291, 1.442695
    %v4293 = vpow.pop %v4292
    %v4294 = vadd.f32 %v4293, 1.0
    %v4295 = vrcp.pop %v4294
    %v4296 = vmul.f32 1.0, %v4295
    %4297 = vst [vmem:[#allocation11] sm:$0xff] %v4296
    // Predicated region
    $region42: #{tpu_custom_call.1} parent=1 // pred_check
      _
    $region43: #{tpu_custom_call.1} parent=1 // pred_check_branch
      %4299 = sbr.rel (0) target = $region45
    $region44: #{tpu_custom_call.1} parent=1 // pred_region
      %s4301 = ssub.s32 128, 128
      %4302 = vsyncadd [#allocation5], %s4301
      %s4304 = sshll.u32 [#allocation11], 4
      %s4305 = int_to_ptr.vmem [resolvable:$true] %s4304
      %4307 = dma.vmem_to_hbm [thread:$0]  %s4305, 128, %s6, [#allocation5]
    $region45: #{tpu_custom_call.1} parent=1 // pred_fallthru
      _
    // Predicated region
    $region46: #{tpu_custom_call.1} parent=1 // pred_check
      _
    $region47: #{tpu_custom_call.1} parent=1 // pred_check_branch
      %4309 = sbr.rel (0) target = $region49
    $region48: #{tpu_custom_call.1} parent=1 // pred_region
      %4310 = dma.done [#allocation5], 128
    $region49: #{tpu_custom_call.1} parent=1 // pred_fallthru
      _
    %4311 = vsyncpa [#allocation4], 1
    %4312 = vsyncpa [#allocation7], 1
    %4313 = vsyncpa [#allocation10], 1
    %4314 = vsyncpa [#allocation5], 1

</llo_original>
